<compile_context>
chip_gen: v7x
topology: tpu7x:2x2x1
jax: 0.10.0
libtpu: 0.0.40
codegen_flags: <defaults>
</compile_context>

<pallas_src>
import functools

import jax
import jax.numpy as jnp
from jax.experimental import pallas as pl
from jax.experimental.pallas import tpu as pltpu

_K1PAD = 160  # conv1 im2col K (7*7*3 = 147) padded to a multiple of 16 (bf16 sublane)

_CPARAMS = pltpu.CompilerParams(
    dimension_semantics=("parallel",),
    vmem_limit_bytes=48 * 1024 * 1024,
)


# ----------------------------------------------------------------------------
# Pallas kernels
# ----------------------------------------------------------------------------
def _conv1_pool_kernel(p_ref, w_ref, b_ref, o_ref, *, W2, Mp):
    """One image: relu(patches @ w + b) followed by fused 3x3/s2/p1 maxpool.

    Patch rows are phase-major (2x2 pixel-unshuffle): plane0 = (even h, even w),
    plane1 = (even h, odd w), plane2 = (odd h, even w), plane3 = (odd h, odd w),
    each in (H2, W2) raster order.  The stride-2 pool output at (h2, w2) is the
    max of the 2x2 block plus the left column / top row / top-left corner, which
    reduces to: max(plane0..3) ∪ shifted(max(p1,p3), -1) ∪ shifted(max(p2,p3), -W2)
    ∪ shifted(p3, -W2-1).  Zero padding is valid because ReLU output is >= 0.
    """
    y = jnp.dot(p_ref[0], w_ref[...], preferred_element_type=jnp.float32)
    y = jnp.maximum(y + b_ref[...], 0.0)                    # (4*Mp, C) f32, >= 0
    C = y.shape[1]
    y0 = y[0 * Mp:1 * Mp]
    y1 = y[1 * Mp:2 * Mp]
    y2 = y[2 * Mp:3 * Mp]
    y3 = y[3 * Mp:4 * Mp]

    base = jnp.maximum(jnp.maximum(y0, y1), jnp.maximum(y2, y3))
    not_left = (jax.lax.broadcasted_iota(jnp.int32, (Mp, 1), 0) % W2) > 0
    zp = jnp.zeros((W2 + 1, C), jnp.float32)

    def shifted(plane, off):
        ypad = jnp.concatenate([zp, plane], axis=0)          # (Mp + W2 + 1, C)
        s = W2 + 1 + off
        return ypad[s:s + Mp]

    m = base
    m = jnp.maximum(m, jnp.where(not_left, shifted(jnp.maximum(y1, y3), -1), 0.0))
    m = jnp.maximum(m, shifted(jnp.maximum(y2, y3), -W2))
    m = jnp.maximum(m, jnp.where(not_left, shifted(y3, -W2 - 1), 0.0))
    o_ref[0] = m.astype(o_ref.dtype)


def _bottleneck_core(x, w1_ref, b1_ref, w2_ref, b2_ref, w3_ref, b3_ref,
                     not_left, not_right, W, M):
    """conv1x1+BN+ReLU -> conv3x3(pad1)+BN+ReLU -> conv1x1+BN (no ReLU).

    x: (M, Cin) bf16 for one image.  All intermediates live in VMEM/vregs.
    The 3x3 conv is a SINGLE K=9*C1 matmul over a stacked bf16 slab of the 9
    shifted taps; left/right edge masks are (M, 1) broadcasts, vertical borders
    come from zero-pad rows.
    """
    t1 = jnp.dot(x, w1_ref[...], preferred_element_type=jnp.float32) + b1_ref[...]
    t1 = jnp.maximum(t1, 0.0).astype(jnp.bfloat16)           # single f32->bf16 cast
    C1 = t1.shape[1]

    P = W + 1                                                # covers |offset| <= W+1
    zpad = jnp.zeros((P, C1), jnp.bfloat16)
    t1p = jnp.concatenate([zpad, t1, zpad], axis=0)          # (M + 2P, C1) bf16
    zero = jnp.zeros((), jnp.bfloat16)

    taps = []
    for dh in (-1, 0, 1):
        for dw in (-1, 0, 1):
            off = dh * W + dw
            sh = t1p[P + off: P + off + M]                   # (M, C1) shifted tap
            if dw == -1:
                sh = jnp.where(not_left, sh, zero)
            elif dw == 1:
                sh = jnp.where(not_right, sh, zero)
            taps.append(sh)
    slab = jnp.concatenate(taps, axis=1)                     # (M, 9*C1) bf16

    t2 = jnp.dot(slab, w2_ref[...], preferred_element_type=jnp.float32) + b2_ref[...]
    t2 = jnp.maximum(t2, 0.0).astype(jnp.bfloat16)

    return jnp.dot(t2, w3_ref[...], preferred_element_type=jnp.float32) + b3_ref[...]


def _layer1_kernel(x_ref, *refs, W):
    """All three layer1 bottlenecks fused; inter-block activations stay in VMEM."""
    (w1a, b1a, w2a, b2a, w3a, b3a, wda, bda,
     w1b, b1b, w2b, b2b, w3b, b3b,
     w1c, b1c, w2c, b2c, w3c, b3c, o_ref) = refs

    M = x_ref.shape[1]
    not_left = (jax.lax.broadcasted_iota(jnp.int32, (M, 1), 0) % W) > 0
    not_right = (jax.lax.broadcasted_iota(jnp.int32, (M, 1), 0) % W) < (W - 1)

    x = x_ref[0]                                             # (M, 64) bf16

    # Block 0 (1x1 downsample projection on the residual path).
    y = _bottleneck_core(x, w1a, b1a, w2a, b2a, w3a, b3a, not_left, not_right, W, M)
    idn = jnp.dot(x, wda[...], preferred_element_type=jnp.float32) + bda[...]
    x = jnp.maximum(y + idn, 0.0).astype(jnp.bfloat16)       # (M, 256)

    # Block 1 (identity residual).
    y = _bottleneck_core(x, w1b, b1b, w2b, b2b, w3b, b3b, not_left, not_right, W, M)
    x = jnp.maximum(y + x.astype(jnp.float32), 0.0).astype(jnp.bfloat16)

    # Block 2 (identity residual); write final result in f32 (lane-dense, 256 ch).
    y = _bottleneck_core(x, w1c, b1c, w2c, b2c, w3c, b3c, not_left, not_right, W, M)
    o_ref[0] = jnp.maximum(y + x.astype(jnp.float32), 0.0).astype(o_ref.dtype)


# ----------------------------------------------------------------------------
# Kernel wrappers
# ----------------------------------------------------------------------------
def conv1_pool_fused(cols, w, b, H2, W2):
    """cols: (B, 4*H2*W2, K) bf16 phase-major im2col patches -> (B, H2*W2, 64) bf16."""
    B, M4, K = cols.shape
    Mp = H2 * W2
    N = w.shape[1]
    kernel = functools.partial(_conv1_pool_kernel, W2=W2, Mp=Mp)
    return pl.pallas_call(
        kernel,
        out_shape=jax.ShapeDtypeStruct((B, Mp, N), jnp.bfloat16),
        grid=(B,),
        in_specs=[
            pl.BlockSpec((1, M4, K), lambda i: (i, 0, 0)),
            pl.BlockSpec((K, N), lambda i: (0, 0)),
            pl.BlockSpec((1, N), lambda i: (0, 0)),
        ],
        out_specs=pl.BlockSpec((1, Mp, N), lambda i: (i, 0, 0)),
        compiler_params=_CPARAMS,
    )(cols, w, b)


def layer1_fused(x, blocks, W):
    """x: (B, H*W, 64) bf16 -> (B, H*W, 256) f32.  One pallas_call for all 3 blocks."""
    B, M, Cin = x.shape
    b0, b1, b2 = blocks
    Cout = b2["w3"].shape[1]
    wargs = [b0["w1"], b0["b1"], b0["w2"], b0["b2"], b0["w3"], b0["b3"],
             b0["wd"], b0["bd"],
             b1["w1"], b1["b1"], b1["w2"], b1["b2"], b1["w3"], b1["b3"],
             b2["w1"], b2["b1"], b2["w2"], b2["b2"], b2["w3"], b2["b3"]]

    in_specs = [pl.BlockSpec((1, M, Cin), lambda i: (i, 0, 0))]
    in_specs += [pl.BlockSpec(a.shape, lambda i: (0, 0)) for a in wargs]

    kernel = functools.partial(_layer1_kernel, W=W)
    return pl.pallas_call(
        kernel,
        out_shape=jax.ShapeDtypeStruct((B, M, Cout), jnp.float32),
        grid=(B,),
        in_specs=in_specs,
        out_specs=pl.BlockSpec((1, M, Cout), lambda i: (i, 0, 0)),
        compiler_params=_CPARAMS,
    )(x, *wargs)


# ----------------------------------------------------------------------------
# Host-side glue (im2col with phase-major ordering) + weight folding + forward
# ----------------------------------------------------------------------------
def _im2col_phase_major(x, kh, kw, stride, pad):
    """x: NHWC -> ((B, 4*H2*W2, kh*kw*C), H2, W2) with rows in 2x2 phase-major order."""
    B, H, W, C = x.shape
    xp = jnp.pad(x, ((0, 0), (pad, pad), (pad, pad), (0, 0)))
    Ho = (H + 2 * pad - kh) // stride + 1
    Wo = (W + 2 * pad - kw) // stride + 1
    assert Ho % 2 == 0 and Wo % 2 == 0, (Ho, Wo)
    cols = []
    for dh in range(kh):
        for dw in range(kw):
            cols.append(xp[:, dh:dh + stride * (Ho - 1) + 1:stride,
                              dw:dw + stride * (Wo - 1) + 1:stride, :])
    patches = jnp.stack(cols, axis=3)                        # (B, Ho, Wo, kh*kw, C)
    K = kh * kw * C
    patches = patches.reshape(B, Ho, Wo, K)
    H2, W2 = Ho // 2, Wo // 2
    patches = patches.reshape(B, H2, 2, W2, 2, K)
    patches = jnp.transpose(patches, (0, 2, 4, 1, 3, 5))     # (B, ph, pw, H2, W2, K)
    return patches.reshape(B, 4 * H2 * W2, K), H2, W2


def _fold_1x1(w_pt, s, b):
    wm = jnp.transpose(w_pt[:, :, 0, 0], (1, 0)) * s[None, :]          # (Cin, Cout)
    return wm.astype(jnp.bfloat16), b.reshape(1, -1).astype(jnp.float32)


def _fold_3x3_slab(w_pt, s, b):
    cout, cin = w_pt.shape[0], w_pt.shape[1]
    w = jnp.transpose(w_pt, (2, 3, 1, 0)).reshape(9 * cin, cout)       # tap-major rows
    w = w * s[None, :]
    return w.astype(jnp.bfloat16), b.reshape(1, -1).astype(jnp.float32)


def _fold_conv1(w_pt, s, b, k_pad):
    cout = w_pt.shape[0]
    K = w_pt.shape[1] * w_pt.shape[2] * w_pt.shape[3]
    wm = jnp.transpose(w_pt, (2, 3, 1, 0)).reshape(K, cout) * s[None, :]
    wm = jnp.pad(wm, ((0, k_pad - K), (0, 0)))
    return wm.astype(jnp.bfloat16), b.reshape(1, -1).astype(jnp.float32)


def prepare_fused_params(params, k_pad=_K1PAD):
    """Fold BN into weights, reshape 3x3 to a (576, C2) slab weight.  Call ONCE,
    outside the jitted forward (hoisted per perf review)."""
    fp = {}
    fp["w1"], fp["b1"] = _fold_conv1(params["conv1_w"], params["bn1_s"],
                                     params["bn1_b"], k_pad)
    blocks = []
    for p in params["layer1"]:
        bp = {}
        bp["w1"], bp["b1"] = _fold_1x1(p["conv1_w"], p["bn1_s"], p["bn1_b"])
        bp["w2"], bp["b2"] = _fold_3x3_slab(p["conv2_w"], p["bn2_s"], p["bn2_b"])
        bp["w3"], bp["b3"] = _fold_1x1(p["conv3_w"], p["bn3_s"], p["bn3_b"])
        if "down_w" in p:
            bp["wd"], bp["bd"] = _fold_1x1(p["down_w"], p["dbn_s"], p["dbn_b"])
        blocks.append(bp)
    fp["layer1"] = blocks
    return fp


def head_forward(x_nchw, fp):
    """Equivalent of Head.forward: conv1 -> bn1 -> relu -> maxpool -> layer1."""
    x = jnp.transpose(x_nchw, (0, 2, 3, 1))                  # NCHW -> NHWC
    B = x.shape[0]

    # conv1 7x7/s2 im2col, phase-major rows, K padded to 160, bf16 for the MXU.
    cols, H2, W2 = _im2col_phase_major(x, 7, 7, 2, 3)
    cols = jnp.pad(cols, ((0, 0), (0, 0), (0, _K1PAD - cols.shape[2])))
    cols = cols.astype(jnp.bfloat16)

    # conv1 + BN + ReLU + 3x3/s2 maxpool, fully fused in one Pallas kernel.
    y = conv1_pool_fused(cols, fp["w1"], fp["b1"], H2, W2)   # (B, H2*W2, 64) bf16

    # layer1: all three bottlenecks in one fused Pallas kernel.
    y = layer1_fused(y, fp["layer1"], W2)                    # (B, H2*W2, 256) f32

    y = y.reshape(B, H2, W2, 256)
    return jnp.transpose(y, (0, 3, 1, 2))                    # NHWC -> NCHW


# ----------------------------------------------------------------------------
# Deterministic parameter construction (synthetic, PyTorch layouts/shapes)
# ----------------------------------------------------------------------------
def _bn_fold(gamma, beta, mean, var, eps=1e-5):
    scale = gamma / jnp.sqrt(var + eps)
    return scale, beta - mean * scale


def make_params(key):
    keys = iter(jax.random.split(key, 128))

    def conv(cout, cin, kh, kw):
        fan_in = cin * kh * kw
        return (jax.random.normal(next(keys), (cout, cin, kh, kw), jnp.float32)
                / jnp.sqrt(float(fan_in)))

    def bn(c):
        gamma = 1.0 + 0.05 * jax.random.normal(next(keys), (c,), jnp.float32)
        beta = 0.05 * jax.random.normal(next(keys), (c,), jnp.float32)
        mean = 0.05 * jax.random.normal(next(keys), (c,), jnp.float32)
        var = 1.0 + 0.05 * jnp.abs(jax.random.normal(next(keys), (c,), jnp.float32))
        return _bn_fold(gamma, beta, mean, var)

    params = {"conv1_w": conv(64, 3, 7, 7)}
    params["bn1_s"], params["bn1_b"] = bn(64)

    layer1, in_c = [], 64
    for blk in range(3):                                     # resnet101.layer1 = 3 bottlenecks
        p = {}
        p["conv1_w"] = conv(64, in_c, 1, 1); p["bn1_s"], p["bn1_b"] = bn(64)
        p["conv2_w"] = conv(64, 64, 3, 3);   p["bn2_s"], p["bn2_b"] = bn(64)
        p["conv3_w"] = conv(256, 64, 1, 1);  p["bn3_s"], p["bn3_b"] = bn(256)
        if blk == 0:
            p["down_w"] = conv(256, in_c, 1, 1)
            p["dbn_s"], p["dbn_b"] = bn(256)
        layer1.append(p)
        in_c = 256
    params["layer1"] = layer1
    return params


# ----------------------------------------------------------------------------
# Pure-JAX (f32) reference for a numerical sanity check
# ----------------------------------------------------------------------------
def _ref_head(x_nchw, params):
    x = jnp.transpose(x_nchw, (0, 2, 3, 1))

    def conv(x, w_pt, stride, pad):
        return jax.lax.conv_general_dilated(
            x, jnp.transpose(w_pt, (2, 3, 1, 0)),
            window_strides=(stride, stride),
            padding=[(pad, pad), (pad, pad)],
            dimension_numbers=("NHWC", "HWIO", "NHWC"))

    def bn(x, s, b):
        return x * s + b

    y = jax.nn.relu(bn(conv(x, params["conv1_w"], 2, 3),
                       params["bn1_s"], params["bn1_b"]))
    y = jax.lax.reduce_window(y, -jnp.inf, jax.lax.max,
                              (1, 3, 3, 1), (1, 2, 2, 1),
                              [(0, 0), (1, 1), (1, 1), (0, 0)])
    for p in params["layer1"]:
        t = jax.nn.relu(bn(conv(y, p["conv1_w"], 1, 0), p["bn1_s"], p["bn1_b"]))
        t = jax.nn.relu(bn(conv(t, p["conv2_w"], 1, 1), p["bn2_s"], p["bn2_b"]))
        t = bn(conv(t, p["conv3_w"], 1, 0), p["bn3_s"], p["bn3_b"])
        if "down_w" in p:
            idn = bn(conv(y, p["down_w"], 1, 0), p["dbn_s"], p["dbn_b"])
        else:
            idn = y
        y = jax.nn.relu(t + idn)
    return jnp.transpose(y, (0, 3, 1, 2))


# ----------------------------------------------------------------------------
if __name__ == "__main__":
    key = jax.random.PRNGKey(0)
    kp, kx = jax.random.split(key)
    params = make_params(kp)

    # Weight folding hoisted out of the jitted hot path (perf review item).
    fp = prepare_fused_params(params)

    # NCHW input, same convention as the PyTorch module (3-channel RGB stem).
    x = jax.random.normal(kx, (2, 3, 32, 32), jnp.float32)

    fwd = jax.jit(head_forward)
    out = jax.block_until_ready(fwd(x, fp))

    # 32x32 -> conv1 s2 -> 16x16 -> maxpool s2 -> 8x8 -> layer1 -> [B, 256, 8, 8]
    assert out.shape == (2, 256, 8, 8), out.shape
    assert bool(jnp.all(jnp.isfinite(out)))

    # bf16-tolerant numerical check against a pure-JAX f32 reference.
    ref = _ref_head(x, params)
    max_err = float(jnp.max(jnp.abs(out - ref)))
    scale = float(jnp.max(jnp.abs(ref))) + 1.0
    assert max_err <= 0.1 * scale, (max_err, scale)

    print("KERNEL_OK")
</pallas_src>

<mosaic_0001>
module attributes {stable_mosaic.version = 11 : i64} {
  func.func @_conv1_pool_kernel(%arg0: i32, %arg1: memref<1x256x160xbf16, #tpu.memory_space<vmem>>, %arg2: memref<160x64xbf16, #tpu.memory_space<vmem>>, %arg3: memref<1x64xf32, #tpu.memory_space<vmem>>, %arg4: memref<1x64x64xbf16, #tpu.memory_space<vmem>>) attributes {dimension_semantics = [#tpu.dimension_semantics<parallel>], iteration_bounds = array<i64: 2>, scalar_prefetch = 0 : i64, scratch_operands = 0 : i64, tpu.core_type = #tpu.core_type<tc>, window_params = [{transform_indices = @transform_0, window_bounds = array<i64: 1, 256, 160>}, {pipeline_mode = #tpu.pipeline_mode<synchronous>, transform_indices = @transform_1, window_bounds = array<i64: 160, 64>}, {pipeline_mode = #tpu.pipeline_mode<synchronous>, transform_indices = @transform_2, window_bounds = array<i64: 1, 64>}, {transform_indices = @transform_3, window_bounds = array<i64: 1, 64, 64>}]} {
    %c0 = arith.constant 0 : index
    %c0_0 = arith.constant 0 : index
    %c0_1 = arith.constant 0 : index
    %0 = vector.load %arg1[%c0, %c0_0, %c0_1] : memref<1x256x160xbf16, #tpu.memory_space<vmem>>, vector<1x256x160xbf16>
    %1 = vector.shape_cast %0 : vector<1x256x160xbf16> to vector<256x160xbf16>
    %c0_2 = arith.constant 0 : index
    %c0_3 = arith.constant 0 : index
    %2 = vector.load %arg2[%c0_2, %c0_3] : memref<160x64xbf16, #tpu.memory_space<vmem>>, vector<160x64xbf16>
    %cst = arith.constant dense<0.000000e+00> : vector<256x64xf32>
    %3 = tpu.matmul %1, %2, %cst {dimension_numbers = #tpu.dot_dimension_numbers<[1], [0], [0], [1], [0, 0, 1, 1], [], []>} : vector<256x160xbf16>, vector<160x64xbf16>, vector<256x64xf32> -> vector<256x64xf32>
    %c0_4 = arith.constant 0 : index
    %c0_5 = arith.constant 0 : index
    %4 = vector.load %arg3[%c0_4, %c0_5] : memref<1x64xf32, #tpu.memory_space<vmem>>, vector<1x64xf32>
    %5 = vector.broadcast %4 : vector<1x64xf32> to vector<256x64xf32>
    %6 = arith.addf %3, %5 : vector<256x64xf32>
    %cst_6 = arith.constant 0.000000e+00 : f32
    %7 = vector.broadcast %cst_6 : f32 to vector<256x64xf32>
    %8 = arith.maximumf %6, %7 : vector<256x64xf32>
    %9 = vector.extract_strided_slice %8 {offsets = [0, 0], sizes = [64, 64], strides = [1, 1]} : vector<256x64xf32> to vector<64x64xf32>
    %10 = vector.extract_strided_slice %8 {offsets = [64, 0], sizes = [64, 64], strides = [1, 1]} : vector<256x64xf32> to vector<64x64xf32>
    %11 = vector.extract_strided_slice %8 {offsets = [128, 0], sizes = [64, 64], strides = [1, 1]} : vector<256x64xf32> to vector<64x64xf32>
    %12 = vector.extract_strided_slice %8 {offsets = [192, 0], sizes = [64, 64], strides = [1, 1]} : vector<256x64xf32> to vector<64x64xf32>
    %13 = arith.maximumf %9, %10 : vector<64x64xf32>
    %14 = arith.maximumf %11, %12 : vector<64x64xf32>
    %15 = arith.maximumf %13, %14 : vector<64x64xf32>
    %16 = tpu.iota {dimensions = array<i32: 0>} : vector<64x1xi32>
    %c8_i32 = arith.constant 8 : i32
    %c0_i32 = arith.constant 0 : i32
    %17 = arith.cmpi eq, %c8_i32, %c0_i32 : i32
    %c1_i32 = arith.constant 1 : i32
    %18 = arith.select %17, %c1_i32, %c8_i32 : i32
    %19 = vector.broadcast %18 : i32 to vector<64x1xi32>
    %20 = arith.remsi %16, %19 : vector<64x1xi32>
    %c0_i32_7 = arith.constant 0 : i32
    %21 = vector.broadcast %c0_i32_7 : i32 to vector<64x1xi32>
    %22 = arith.cmpi ne, %20, %21 : vector<64x1xi32>
    %c0_i32_8 = arith.constant 0 : i32
    %23 = vector.broadcast %c0_i32_8 : i32 to vector<64x1xi32>
    %24 = arith.cmpi slt, %20, %23 : vector<64x1xi32>
    %c0_i32_9 = arith.constant 0 : i32
    %25 = arith.cmpi slt, %18, %c0_i32_9 : i32
    %26 = vector.broadcast %25 : i1 to vector<64x1xi1>
    %27 = vector.broadcast %26 : vector<64x1xi1> to vector<64x1xi1>
    %28 = arith.xori %24, %27 : vector<64x1xi1>
    %29 = arith.andi %28, %22 : vector<64x1xi1>
    %30 = vector.broadcast %18 : i32 to vector<64x1xi32>
    %31 = arith.addi %20, %30 : vector<64x1xi32>
    %32 = arith.select %29, %31, %20 : vector<64x1xi1>, vector<64x1xi32>
    %c0_i32_10 = arith.constant 0 : i32
    %33 = vector.broadcast %c0_i32_10 : i32 to vector<64x1xi32>
    %34 = arith.cmpi sgt, %32, %33 : vector<64x1xi32>
    %cst_11 = arith.constant 0.000000e+00 : f32
    %35 = vector.broadcast %cst_11 : f32 to vector<9x64xf32>
    %36 = arith.maximumf %10, %12 : vector<64x64xf32>
    %37 = tpu.concatenate %35, %36 in 0 : vector<9x64xf32>, vector<64x64xf32> -> vector<73x64xf32>
    %38 = vector.extract_strided_slice %37 {offsets = [8, 0], sizes = [64, 64], strides = [1, 1]} : vector<73x64xf32> to vector<64x64xf32>
    %cst_12 = arith.constant 0.000000e+00 : f32
    %39 = vector.shape_cast %34 : vector<64x1xi1> to vector<64x1xi1>
    %40 = vector.broadcast %39 : vector<64x1xi1> to vector<64x64xi1>
    %41 = vector.broadcast %cst_12 : f32 to vector<64x64xf32>
    %42 = arith.select %40, %38, %41 : vector<64x64xi1>, vector<64x64xf32>
    %43 = arith.maximumf %15, %42 : vector<64x64xf32>
    %44 = arith.maximumf %11, %12 : vector<64x64xf32>
    %45 = tpu.concatenate %35, %44 in 0 : vector<9x64xf32>, vector<64x64xf32> -> vector<73x64xf32>
    %46 = vector.extract_strided_slice %45 {offsets = [1, 0], sizes = [64, 64], strides = [1, 1]} : vector<73x64xf32> to vector<64x64xf32>
    %47 = arith.maximumf %43, %46 : vector<64x64xf32>
    %48 = tpu.concatenate %35, %12 in 0 : vector<9x64xf32>, vector<64x64xf32> -> vector<73x64xf32>
    %49 = vector.extract_strided_slice %48 {offsets = [0, 0], sizes = [64, 64], strides = [1, 1]} : vector<73x64xf32> to vector<64x64xf32>
    %cst_13 = arith.constant 0.000000e+00 : f32
    %50 = vector.shape_cast %34 : vector<64x1xi1> to vector<64x1xi1>
    %51 = vector.broadcast %50 : vector<64x1xi1> to vector<64x64xi1>
    %52 = vector.broadcast %cst_13 : f32 to vector<64x64xf32>
    %53 = arith.select %51, %49, %52 : vector<64x64xi1>, vector<64x64xf32>
    %54 = arith.maximumf %47, %53 : vector<64x64xf32>
    %55 = arith.truncf %54 : vector<64x64xf32> to vector<64x64xbf16>
    %c0_14 = arith.constant 0 : index
    %c0_15 = arith.constant 0 : index
    %c0_16 = arith.constant 0 : index
    %56 = vector.load %arg4[%c0_14, %c0_15, %c0_16] : memref<1x64x64xbf16, #tpu.memory_space<vmem>>, vector<1x64x64xbf16>
    %57 = vector.shape_cast %56 : vector<1x64x64xbf16> to vector<64x64xbf16>
    %58 = vector.shape_cast %55 : vector<64x64xbf16> to vector<1x64x64xbf16>
    tpu.vector_store %arg4[%c0_14, %c0_15, %c0_16], %58 {strides = array<i32>} : memref<1x64x64xbf16, #tpu.memory_space<vmem>>, vector<1x64x64xbf16>,
    return
  }
  func.func @transform_0(%arg0: i32) -> (i32, i32, i32) {
    %c0_i32 = arith.constant 0 : i32
    %c0_i32_0 = arith.constant 0 : i32
    %c0_i32_1 = arith.constant 0 : i32
    return %arg0, %c0_i32, %c0_i32_0 : i32, i32, i32
  }
  func.func @transform_1(%arg0: i32) -> (i32, i32) {
    %c0_i32 = arith.constant 0 : i32
    %c0_i32_0 = arith.constant 0 : i32
    %c0_i32_1 = arith.constant 0 : i32
    return %c0_i32, %c0_i32_0 : i32, i32
  }
  func.func @transform_2(%arg0: i32) -> (i32, i32) {
    %c0_i32 = arith.constant 0 : i32
    %c0_i32_0 = arith.constant 0 : i32
    %c0_i32_1 = arith.constant 0 : i32
    return %c0_i32, %c0_i32_0 : i32, i32
  }
  func.func @transform_3(%arg0: i32) -> (i32, i32, i32) {
    %c0_i32 = arith.constant 0 : i32
    %c0_i32_0 = arith.constant 0 : i32
    %c0_i32_1 = arith.constant 0 : i32
    return %arg0, %c0_i32, %c0_i32_0 : i32, i32, i32
  }
}

module attributes {stable_mosaic.version = 11 : i64} {
  func.func @_layer1_kernel(%arg0: i32, %arg1: memref<1x64x64xbf16, #tpu.memory_space<vmem>>, %arg2: memref<64x64xbf16, #tpu.memory_space<vmem>>, %arg3: memref<1x64xf32, #tpu.memory_space<vmem>>, %arg4: memref<576x64xbf16, #tpu.memory_space<vmem>>, %arg5: memref<1x64xf32, #tpu.memory_space<vmem>>, %arg6: memref<64x256xbf16, #tpu.memory_space<vmem>>, %arg7: memref<1x256xf32, #tpu.memory_space<vmem>>, %arg8: memref<64x256xbf16, #tpu.memory_space<vmem>>, %arg9: memref<1x256xf32, #tpu.memory_space<vmem>>, %arg10: memref<256x64xbf16, #tpu.memory_space<vmem>>, %arg11: memref<1x64xf32, #tpu.memory_space<vmem>>, %arg12: memref<576x64xbf16, #tpu.memory_space<vmem>>, %arg13: memref<1x64xf32, #tpu.memory_space<vmem>>, %arg14: memref<64x256xbf16, #tpu.memory_space<vmem>>, %arg15: memref<1x256xf32, #tpu.memory_space<vmem>>, %arg16: memref<256x64xbf16, #tpu.memory_space<vmem>>, %arg17: memref<1x64xf32, #tpu.memory_space<vmem>>, %arg18: memref<576x64xbf16, #tpu.memory_space<vmem>>, %arg19: memref<1x64xf32, #tpu.memory_space<vmem>>, %arg20: memref<64x256xbf16, #tpu.memory_space<vmem>>, %arg21: memref<1x256xf32, #tpu.memory_space<vmem>>, %arg22: memref<1x64x256xf32, #tpu.memory_space<vmem>>) attributes {dimension_semantics = [#tpu.dimension_semantics<parallel>], iteration_bounds = array<i64: 2>, scalar_prefetch = 0 : i64, scratch_operands = 0 : i64, tpu.core_type = #tpu.core_type<tc>, window_params = [{transform_indices = @transform_0, window_bounds = array<i64: 1, 64, 64>}, {pipeline_mode = #tpu.pipeline_mode<synchronous>, transform_indices = @transform_1, window_bounds = array<i64: 64, 64>}, {pipeline_mode = #tpu.pipeline_mode<synchronous>, transform_indices = @transform_2, window_bounds = array<i64: 1, 64>}, {pipeline_mode = #tpu.pipeline_mode<synchronous>, transform_indices = @transform_3, window_bounds = array<i64: 576, 64>}, {pipeline_mode = #tpu.pipeline_mode<synchronous>, transform_indices = @transform_4, window_bounds = array<i64: 1, 64>}, {pipeline_mode = #tpu.pipeline_mode<synchronous>, transform_indices = @transform_5, window_bounds = array<i64: 64, 256>}, {pipeline_mode = #tpu.pipeline_mode<synchronous>, transform_indices = @transform_6, window_bounds = array<i64: 1, 256>}, {pipeline_mode = #tpu.pipeline_mode<synchronous>, transform_indices = @transform_7, window_bounds = array<i64: 64, 256>}, {pipeline_mode = #tpu.pipeline_mode<synchronous>, transform_indices = @transform_8, window_bounds = array<i64: 1, 256>}, {pipeline_mode = #tpu.pipeline_mode<synchronous>, transform_indices = @transform_9, window_bounds = array<i64: 256, 64>}, {pipeline_mode = #tpu.pipeline_mode<synchronous>, transform_indices = @transform_10, window_bounds = array<i64: 1, 64>}, {pipeline_mode = #tpu.pipeline_mode<synchronous>, transform_indices = @transform_11, window_bounds = array<i64: 576, 64>}, {pipeline_mode = #tpu.pipeline_mode<synchronous>, transform_indices = @transform_12, window_bounds = array<i64: 1, 64>}, {pipeline_mode = #tpu.pipeline_mode<synchronous>, transform_indices = @transform_13, window_bounds = array<i64: 64, 256>}, {pipeline_mode = #tpu.pipeline_mode<synchronous>, transform_indices = @transform_14, window_bounds = array<i64: 1, 256>}, {pipeline_mode = #tpu.pipeline_mode<synchronous>, transform_indices = @transform_15, window_bounds = array<i64: 256, 64>}, {pipeline_mode = #tpu.pipeline_mode<synchronous>, transform_indices = @transform_16, window_bounds = array<i64: 1, 64>}, {pipeline_mode = #tpu.pipeline_mode<synchronous>, transform_indices = @transform_17, window_bounds = array<i64: 576, 64>}, {pipeline_mode = #tpu.pipeline_mode<synchronous>, transform_indices = @transform_18, window_bounds = array<i64: 1, 64>}, {pipeline_mode = #tpu.pipeline_mode<synchronous>, transform_indices = @transform_19, window_bounds = array<i64: 64, 256>}, {pipeline_mode = #tpu.pipeline_mode<synchronous>, transform_indices = @transform_20, window_bounds = array<i64: 1, 256>}, {transform_indices = @transform_21, window_bounds = array<i64: 1, 64, 256>}]} {
    %0 = tpu.iota {dimensions = array<i32: 0>} : vector<64x1xi32>
    %c8_i32 = arith.constant 8 : i32
    %c0_i32 = arith.constant 0 : i32
    %1 = arith.cmpi eq, %c8_i32, %c0_i32 : i32
    %c1_i32 = arith.constant 1 : i32
    %2 = arith.select %1, %c1_i32, %c8_i32 : i32
    %3 = vector.broadcast %2 : i32 to vector<64x1xi32>
    %4 = arith.remsi %0, %3 : vector<64x1xi32>
    %c0_i32_0 = arith.constant 0 : i32
    %5 = vector.broadcast %c0_i32_0 : i32 to vector<64x1xi32>
    %6 = arith.cmpi ne, %4, %5 : vector<64x1xi32>
    %c0_i32_1 = arith.constant 0 : i32
    %7 = vector.broadcast %c0_i32_1 : i32 to vector<64x1xi32>
    %8 = arith.cmpi slt, %4, %7 : vector<64x1xi32>
    %c0_i32_2 = arith.constant 0 : i32
    %9 = arith.cmpi slt, %2, %c0_i32_2 : i32
    %10 = vector.broadcast %9 : i1 to vector<64x1xi1>
    %11 = vector.broadcast %10 : vector<64x1xi1> to vector<64x1xi1>
    %12 = arith.xori %8, %11 : vector<64x1xi1>
    %13 = arith.andi %12, %6 : vector<64x1xi1>
    %14 = vector.broadcast %2 : i32 to vector<64x1xi32>
    %15 = arith.addi %4, %14 : vector<64x1xi32>
    %16 = arith.select %13, %15, %4 : vector<64x1xi1>, vector<64x1xi32>
    %c0_i32_3 = arith.constant 0 : i32
    %17 = vector.broadcast %c0_i32_3 : i32 to vector<64x1xi32>
    %18 = arith.cmpi sgt, %16, %17 : vector<64x1xi32>
    %19 = tpu.iota {dimensions = array<i32: 0>} : vector<64x1xi32>
    %c8_i32_4 = arith.constant 8 : i32
    %c0_i32_5 = arith.constant 0 : i32
    %20 = arith.cmpi eq, %c8_i32_4, %c0_i32_5 : i32
    %c1_i32_6 = arith.constant 1 : i32
    %21 = arith.select %20, %c1_i32_6, %c8_i32_4 : i32
    %22 = vector.broadcast %21 : i32 to vector<64x1xi32>
    %23 = arith.remsi %19, %22 : vector<64x1xi32>
    %c0_i32_7 = arith.constant 0 : i32
    %24 = vector.broadcast %c0_i32_7 : i32 to vector<64x1xi32>
    %25 = arith.cmpi ne, %23, %24 : vector<64x1xi32>
    %c0_i32_8 = arith.constant 0 : i32
    %26 = vector.broadcast %c0_i32_8 : i32 to vector<64x1xi32>
    %27 = arith.cmpi slt, %23, %26 : vector<64x1xi32>
    %c0_i32_9 = arith.constant 0 : i32
    %28 = arith.cmpi slt, %21, %c0_i32_9 : i32
    %29 = vector.broadcast %28 : i1 to vector<64x1xi1>
    %30 = vector.broadcast %29 : vector<64x1xi1> to vector<64x1xi1>
    %31 = arith.xori %27, %30 : vector<64x1xi1>
    %32 = arith.andi %31, %25 : vector<64x1xi1>
    %33 = vector.broadcast %21 : i32 to vector<64x1xi32>
    %34 = arith.addi %23, %33 : vector<64x1xi32>
    %35 = arith.select %32, %34, %23 : vector<64x1xi1>, vector<64x1xi32>
    %c7_i32 = arith.constant 7 : i32
    %36 = vector.broadcast %c7_i32 : i32 to vector<64x1xi32>
    %37 = arith.cmpi slt, %35, %36 : vector<64x1xi32>
    %c0 = arith.constant 0 : index
    %c0_10 = arith.constant 0 : index
    %c0_11 = arith.constant 0 : index
    %38 = vector.load %arg1[%c0, %c0_10, %c0_11] : memref<1x64x64xbf16, #tpu.memory_space<vmem>>, vector<1x64x64xbf16>
    %39 = vector.shape_cast %38 : vector<1x64x64xbf16> to vector<64x64xbf16>
    %c0_12 = arith.constant 0 : index
    %c0_13 = arith.constant 0 : index
    %40 = vector.load %arg2[%c0_12, %c0_13] : memref<64x64xbf16, #tpu.memory_space<vmem>>, vector<64x64xbf16>
    %cst = arith.constant dense<0.000000e+00> : vector<64x64xf32>
    %41 = tpu.matmul %39, %40, %cst {dimension_numbers = #tpu.dot_dimension_numbers<[1], [0], [0], [1], [0, 0, 1, 1], [], []>} : vector<64x64xbf16>, vector<64x64xbf16>, vector<64x64xf32> -> vector<64x64xf32>
    %c0_14 = arith.constant 0 : index
    %c0_15 = arith.constant 0 : index
    %42 = vector.load %arg3[%c0_14, %c0_15] : memref<1x64xf32, #tpu.memory_space<vmem>>, vector<1x64xf32>
    %43 = vector.broadcast %42 : vector<1x64xf32> to vector<64x64xf32>
    %44 = arith.addf %41, %43 : vector<64x64xf32>
    %cst_16 = arith.constant 0.000000e+00 : f32
    %45 = vector.broadcast %cst_16 : f32 to vector<64x64xf32>
    %46 = arith.maximumf %44, %45 : vector<64x64xf32>
    %47 = arith.truncf %46 : vector<64x64xf32> to vector<64x64xbf16>
    %cst_17 = arith.constant 0.000000e+00 : bf16
    %48 = vector.broadcast %cst_17 : bf16 to vector<9x64xbf16>
    %49 = tpu.concatenate %48, %47, %48 in 0 : vector<9x64xbf16>, vector<64x64xbf16>, vector<9x64xbf16> -> vector<82x64xbf16>
    %50 = vector.extract_strided_slice %49 {offsets = [0, 0], sizes = [64, 64], strides = [1, 1]} : vector<82x64xbf16> to vector<64x64xbf16>
    %cst_18 = arith.constant 0.000000e+00 : bf16
    %51 = vector.shape_cast %18 : vector<64x1xi1> to vector<64x1xi1>
    %52 = vector.broadcast %51 : vector<64x1xi1> to vector<64x64xi1>
    %53 = vector.broadcast %cst_18 : bf16 to vector<64x64xbf16>
    %54 = arith.select %52, %50, %53 : vector<64x64xi1>, vector<64x64xbf16>
    %55 = vector.extract_strided_slice %49 {offsets = [1, 0], sizes = [64, 64], strides = [1, 1]} : vector<82x64xbf16> to vector<64x64xbf16>
    %56 = vector.extract_strided_slice %49 {offsets = [2, 0], sizes = [64, 64], strides = [1, 1]} : vector<82x64xbf16> to vector<64x64xbf16>
    %cst_19 = arith.constant 0.000000e+00 : bf16
    %57 = vector.shape_cast %37 : vector<64x1xi1> to vector<64x1xi1>
    %58 = vector.broadcast %57 : vector<64x1xi1> to vector<64x64xi1>
    %59 = vector.broadcast %cst_19 : bf16 to vector<64x64xbf16>
    %60 = arith.select %58, %56, %59 : vector<64x64xi1>, vector<64x64xbf16>
    %61 = vector.extract_strided_slice %49 {offsets = [8, 0], sizes = [64, 64], strides = [1, 1]} : vector<82x64xbf16> to vector<64x64xbf16>
    %cst_20 = arith.constant 0.000000e+00 : bf16
    %62 = vector.shape_cast %18 : vector<64x1xi1> to vector<64x1xi1>
    %63 = vector.broadcast %62 : vector<64x1xi1> to vector<64x64xi1>
    %64 = vector.broadcast %cst_20 : bf16 to vector<64x64xbf16>
    %65 = arith.select %63, %61, %64 : vector<64x64xi1>, vector<64x64xbf16>
    %66 = vector.extract_strided_slice %49 {offsets = [9, 0], sizes = [64, 64], strides = [1, 1]} : vector<82x64xbf16> to vector<64x64xbf16>
    %67 = vector.extract_strided_slice %49 {offsets = [10, 0], sizes = [64, 64], strides = [1, 1]} : vector<82x64xbf16> to vector<64x64xbf16>
    %cst_21 = arith.constant 0.000000e+00 : bf16
    %68 = vector.shape_cast %37 : vector<64x1xi1> to vector<64x1xi1>
    %69 = vector.broadcast %68 : vector<64x1xi1> to vector<64x64xi1>
    %70 = vector.broadcast %cst_21 : bf16 to vector<64x64xbf16>
    %71 = arith.select %69, %67, %70 : vector<64x64xi1>, vector<64x64xbf16>
    %72 = vector.extract_strided_slice %49 {offsets = [16, 0], sizes = [64, 64], strides = [1, 1]} : vector<82x64xbf16> to vector<64x64xbf16>
    %cst_22 = arith.constant 0.000000e+00 : bf16
    %73 = vector.shape_cast %18 : vector<64x1xi1> to vector<64x1xi1>
    %74 = vector.broadcast %73 : vector<64x1xi1> to vector<64x64xi1>
    %75 = vector.broadcast %cst_22 : bf16 to vector<64x64xbf16>
    %76 = arith.select %74, %72, %75 : vector<64x64xi1>, vector<64x64xbf16>
    %77 = vector.extract_strided_slice %49 {offsets = [17, 0], sizes = [64, 64], strides = [1, 1]} : vector<82x64xbf16> to vector<64x64xbf16>
    %78 = vector.extract_strided_slice %49 {offsets = [18, 0], sizes = [64, 64], strides = [1, 1]} : vector<82x64xbf16> to vector<64x64xbf16>
    %cst_23 = arith.constant 0.000000e+00 : bf16
    %79 = vector.shape_cast %37 : vector<64x1xi1> to vector<64x1xi1>
    %80 = vector.broadcast %79 : vector<64x1xi1> to vector<64x64xi1>
    %81 = vector.broadcast %cst_23 : bf16 to vector<64x64xbf16>
    %82 = arith.select %80, %78, %81 : vector<64x64xi1>, vector<64x64xbf16>
    %83 = tpu.concatenate %54, %55, %60, %65, %66, %71, %76, %77, %82 in 1 : vector<64x64xbf16>, vector<64x64xbf16>, vector<64x64xbf16>, vector<64x64xbf16>, vector<64x64xbf16>, vector<64x64xbf16>, vector<64x64xbf16>, vector<64x64xbf16>, vector<64x64xbf16> -> vector<64x576xbf16>
    %c0_24 = arith.constant 0 : index
    %c0_25 = arith.constant 0 : index
    %84 = vector.load %arg4[%c0_24, %c0_25] : memref<576x64xbf16, #tpu.memory_space<vmem>>, vector<576x64xbf16>
    %cst_26 = arith.constant dense<0.000000e+00> : vector<64x64xf32>
    %85 = tpu.matmul %83, %84, %cst_26 {dimension_numbers = #tpu.dot_dimension_numbers<[1], [0], [0], [1], [0, 0, 1, 1], [], []>} : vector<64x576xbf16>, vector<576x64xbf16>, vector<64x64xf32> -> vector<64x64xf32>
    %c0_27 = arith.constant 0 : index
    %c0_28 = arith.constant 0 : index
    %86 = vector.load %arg5[%c0_27, %c0_28] : memref<1x64xf32, #tpu.memory_space<vmem>>, vector<1x64xf32>
    %87 = vector.broadcast %86 : vector<1x64xf32> to vector<64x64xf32>
    %88 = arith.addf %85, %87 : vector<64x64xf32>
    %cst_29 = arith.constant 0.000000e+00 : f32
    %89 = vector.broadcast %cst_29 : f32 to vector<64x64xf32>
    %90 = arith.maximumf %88, %89 : vector<64x64xf32>
    %91 = arith.truncf %90 : vector<64x64xf32> to vector<64x64xbf16>
    %c0_30 = arith.constant 0 : index
    %c0_31 = arith.constant 0 : index
    %92 = vector.load %arg6[%c0_30, %c0_31] : memref<64x256xbf16, #tpu.memory_space<vmem>>, vector<64x256xbf16>
    %cst_32 = arith.constant dense<0.000000e+00> : vector<64x256xf32>
    %93 = tpu.matmul %91, %92, %cst_32 {dimension_numbers = #tpu.dot_dimension_numbers<[1], [0], [0], [1], [0, 0, 1, 1], [], []>} : vector<64x64xbf16>, vector<64x256xbf16>, vector<64x256xf32> -> vector<64x256xf32>
    %c0_33 = arith.constant 0 : index
    %c0_34 = arith.constant 0 : index
    %94 = vector.load %arg7[%c0_33, %c0_34] : memref<1x256xf32, #tpu.memory_space<vmem>>, vector<1x256xf32>
    %95 = vector.broadcast %94 : vector<1x256xf32> to vector<64x256xf32>
    %96 = arith.addf %93, %95 : vector<64x256xf32>
    %c0_35 = arith.constant 0 : index
    %c0_36 = arith.constant 0 : index
    %97 = vector.load %arg8[%c0_35, %c0_36] : memref<64x256xbf16, #tpu.memory_space<vmem>>, vector<64x256xbf16>
    %cst_37 = arith.constant dense<0.000000e+00> : vector<64x256xf32>
    %98 = tpu.matmul %39, %97, %cst_37 {dimension_numbers = #tpu.dot_dimension_numbers<[1], [0], [0], [1], [0, 0, 1, 1], [], []>} : vector<64x64xbf16>, vector<64x256xbf16>, vector<64x256xf32> -> vector<64x256xf32>
    %c0_38 = arith.constant 0 : index
    %c0_39 = arith.constant 0 : index
    %99 = vector.load %arg9[%c0_38, %c0_39] : memref<1x256xf32, #tpu.memory_space<vmem>>, vector<1x256xf32>
    %100 = vector.broadcast %99 : vector<1x256xf32> to vector<64x256xf32>
    %101 = arith.addf %98, %100 : vector<64x256xf32>
    %102 = arith.addf %96, %101 : vector<64x256xf32>
    %cst_40 = arith.constant 0.000000e+00 : f32
    %103 = vector.broadcast %cst_40 : f32 to vector<64x256xf32>
    %104 = arith.maximumf %102, %103 : vector<64x256xf32>
    %105 = arith.truncf %104 : vector<64x256xf32> to vector<64x256xbf16>
    %c0_41 = arith.constant 0 : index
    %c0_42 = arith.constant 0 : index
    %106 = vector.load %arg10[%c0_41, %c0_42] : memref<256x64xbf16, #tpu.memory_space<vmem>>, vector<256x64xbf16>
    %cst_43 = arith.constant dense<0.000000e+00> : vector<64x64xf32>
    %107 = tpu.matmul %105, %106, %cst_43 {dimension_numbers = #tpu.dot_dimension_numbers<[1], [0], [0], [1], [0, 0, 1, 1], [], []>} : vector<64x256xbf16>, vector<256x64xbf16>, vector<64x64xf32> -> vector<64x64xf32>
    %c0_44 = arith.constant 0 : index
    %c0_45 = arith.constant 0 : index
    %108 = vector.load %arg11[%c0_44, %c0_45] : memref<1x64xf32, #tpu.memory_space<vmem>>, vector<1x64xf32>
    %109 = vector.broadcast %108 : vector<1x64xf32> to vector<64x64xf32>
    %110 = arith.addf %107, %109 : vector<64x64xf32>
    %cst_46 = arith.constant 0.000000e+00 : f32
    %111 = vector.broadcast %cst_46 : f32 to vector<64x64xf32>
    %112 = arith.maximumf %110, %111 : vector<64x64xf32>
    %113 = arith.truncf %112 : vector<64x64xf32> to vector<64x64xbf16>
    %cst_47 = arith.constant 0.000000e+00 : bf16
    %114 = vector.broadcast %cst_47 : bf16 to vector<9x64xbf16>
    %115 = tpu.concatenate %114, %113, %114 in 0 : vector<9x64xbf16>, vector<64x64xbf16>, vector<9x64xbf16> -> vector<82x64xbf16>
    %116 = vector.extract_strided_slice %115 {offsets = [0, 0], sizes = [64, 64], strides = [1, 1]} : vector<82x64xbf16> to vector<64x64xbf16>
    %cst_48 = arith.constant 0.000000e+00 : bf16
    %117 = vector.shape_cast %18 : vector<64x1xi1> to vector<64x1xi1>
    %118 = vector.broadcast %117 : vector<64x1xi1> to vector<64x64xi1>
    %119 = vector.broadcast %cst_48 : bf16 to vector<64x64xbf16>
    %120 = arith.select %118, %116, %119 : vector<64x64xi1>, vector<64x64xbf16>
    %121 = vector.extract_strided_slice %115 {offsets = [1, 0], sizes = [64, 64], strides = [1, 1]} : vector<82x64xbf16> to vector<64x64xbf16>
    %122 = vector.extract_strided_slice %115 {offsets = [2, 0], sizes = [64, 64], strides = [1, 1]} : vector<82x64xbf16> to vector<64x64xbf16>
    %cst_49 = arith.constant 0.000000e+00 : bf16
    %123 = vector.shape_cast %37 : vector<64x1xi1> to vector<64x1xi1>
    %124 = vector.broadcast %123 : vector<64x1xi1> to vector<64x64xi1>
    %125 = vector.broadcast %cst_49 : bf16 to vector<64x64xbf16>
    %126 = arith.select %124, %122, %125 : vector<64x64xi1>, vector<64x64xbf16>
    %127 = vector.extract_strided_slice %115 {offsets = [8, 0], sizes = [64, 64], strides = [1, 1]} : vector<82x64xbf16> to vector<64x64xbf16>
    %cst_50 = arith.constant 0.000000e+00 : bf16
    %128 = vector.shape_cast %18 : vector<64x1xi1> to vector<64x1xi1>
    %129 = vector.broadcast %128 : vector<64x1xi1> to vector<64x64xi1>
    %130 = vector.broadcast %cst_50 : bf16 to vector<64x64xbf16>
    %131 = arith.select %129, %127, %130 : vector<64x64xi1>, vector<64x64xbf16>
    %132 = vector.extract_strided_slice %115 {offsets = [9, 0], sizes = [64, 64], strides = [1, 1]} : vector<82x64xbf16> to vector<64x64xbf16>
    %133 = vector.extract_strided_slice %115 {offsets = [10, 0], sizes = [64, 64], strides = [1, 1]} : vector<82x64xbf16> to vector<64x64xbf16>
    %cst_51 = arith.constant 0.000000e+00 : bf16
    %134 = vector.shape_cast %37 : vector<64x1xi1> to vector<64x1xi1>
    %135 = vector.broadcast %134 : vector<64x1xi1> to vector<64x64xi1>
    %136 = vector.broadcast %cst_51 : bf16 to vector<64x64xbf16>
    %137 = arith.select %135, %133, %136 : vector<64x64xi1>, vector<64x64xbf16>
    %138 = vector.extract_strided_slice %115 {offsets = [16, 0], sizes = [64, 64], strides = [1, 1]} : vector<82x64xbf16> to vector<64x64xbf16>
    %cst_52 = arith.constant 0.000000e+00 : bf16
    %139 = vector.shape_cast %18 : vector<64x1xi1> to vector<64x1xi1>
    %140 = vector.broadcast %139 : vector<64x1xi1> to vector<64x64xi1>
    %141 = vector.broadcast %cst_52 : bf16 to vector<64x64xbf16>
    %142 = arith.select %140, %138, %141 : vector<64x64xi1>, vector<64x64xbf16>
    %143 = vector.extract_strided_slice %115 {offsets = [17, 0], sizes = [64, 64], strides = [1, 1]} : vector<82x64xbf16> to vector<64x64xbf16>
    %144 = vector.extract_strided_slice %115 {offsets = [18, 0], sizes = [64, 64], strides = [1, 1]} : vector<82x64xbf16> to vector<64x64xbf16>
    %cst_53 = arith.constant 0.000000e+00 : bf16
    %145 = vector.shape_cast %37 : vector<64x1xi1> to vector<64x1xi1>
    %146 = vector.broadcast %145 : vector<64x1xi1> to vector<64x64xi1>
    %147 = vector.broadcast %cst_53 : bf16 to vector<64x64xbf16>
    %148 = arith.select %146, %144, %147 : vector<64x64xi1>, vector<64x64xbf16>
    %149 = tpu.concatenate %120, %121, %126, %131, %132, %137, %142, %143, %148 in 1 : vector<64x64xbf16>, vector<64x64xbf16>, vector<64x64xbf16>, vector<64x64xbf16>, vector<64x64xbf16>, vector<64x64xbf16>, vector<64x64xbf16>, vector<64x64xbf16>, vector<64x64xbf16> -> vector<64x576xbf16>
    %c0_54 = arith.constant 0 : index
    %c0_55 = arith.constant 0 : index
    %150 = vector.load %arg12[%c0_54, %c0_55] : memref<576x64xbf16, #tpu.memory_space<vmem>>, vector<576x64xbf16>
    %cst_56 = arith.constant dense<0.000000e+00> : vector<64x64xf32>
    %151 = tpu.matmul %149, %150, %cst_56 {dimension_numbers = #tpu.dot_dimension_numbers<[1], [0], [0], [1], [0, 0, 1, 1], [], []>} : vector<64x576xbf16>, vector<576x64xbf16>, vector<64x64xf32> -> vector<64x64xf32>
    %c0_57 = arith.constant 0 : index
    %c0_58 = arith.constant 0 : index
    %152 = vector.load %arg13[%c0_57, %c0_58] : memref<1x64xf32, #tpu.memory_space<vmem>>, vector<1x64xf32>
    %153 = vector.broadcast %152 : vector<1x64xf32> to vector<64x64xf32>
    %154 = arith.addf %151, %153 : vector<64x64xf32>
    %cst_59 = arith.constant 0.000000e+00 : f32
    %155 = vector.broadcast %cst_59 : f32 to vector<64x64xf32>
    %156 = arith.maximumf %154, %155 : vector<64x64xf32>
    %157 = arith.truncf %156 : vector<64x64xf32> to vector<64x64xbf16>
    %c0_60 = arith.constant 0 : index
    %c0_61 = arith.constant 0 : index
    %158 = vector.load %arg14[%c0_60, %c0_61] : memref<64x256xbf16, #tpu.memory_space<vmem>>, vector<64x256xbf16>
    %cst_62 = arith.constant dense<0.000000e+00> : vector<64x256xf32>
    %159 = tpu.matmul %157, %158, %cst_62 {dimension_numbers = #tpu.dot_dimension_numbers<[1], [0], [0], [1], [0, 0, 1, 1], [], []>} : vector<64x64xbf16>, vector<64x256xbf16>, vector<64x256xf32> -> vector<64x256xf32>
    %c0_63 = arith.constant 0 : index
    %c0_64 = arith.constant 0 : index
    %160 = vector.load %arg15[%c0_63, %c0_64] : memref<1x256xf32, #tpu.memory_space<vmem>>, vector<1x256xf32>
    %161 = vector.broadcast %160 : vector<1x256xf32> to vector<64x256xf32>
    %162 = arith.addf %159, %161 : vector<64x256xf32>
    %163 = arith.extf %105 : vector<64x256xbf16> to vector<64x256xf32>
    %164 = arith.addf %162, %163 : vector<64x256xf32>
    %cst_65 = arith.constant 0.000000e+00 : f32
    %165 = vector.broadcast %cst_65 : f32 to vector<64x256xf32>
    %166 = arith.maximumf %164, %165 : vector<64x256xf32>
    %167 = arith.truncf %166 : vector<64x256xf32> to vector<64x256xbf16>
    %c0_66 = arith.constant 0 : index
    %c0_67 = arith.constant 0 : index
    %168 = vector.load %arg16[%c0_66, %c0_67] : memref<256x64xbf16, #tpu.memory_space<vmem>>, vector<256x64xbf16>
    %cst_68 = arith.constant dense<0.000000e+00> : vector<64x64xf32>
    %169 = tpu.matmul %167, %168, %cst_68 {dimension_numbers = #tpu.dot_dimension_numbers<[1], [0], [0], [1], [0, 0, 1, 1], [], []>} : vector<64x256xbf16>, vector<256x64xbf16>, vector<64x64xf32> -> vector<64x64xf32>
    %c0_69 = arith.constant 0 : index
    %c0_70 = arith.constant 0 : index
    %170 = vector.load %arg17[%c0_69, %c0_70] : memref<1x64xf32, #tpu.memory_space<vmem>>, vector<1x64xf32>
    %171 = vector.broadcast %170 : vector<1x64xf32> to vector<64x64xf32>
    %172 = arith.addf %169, %171 : vector<64x64xf32>
    %cst_71 = arith.constant 0.000000e+00 : f32
    %173 = vector.broadcast %cst_71 : f32 to vector<64x64xf32>
    %174 = arith.maximumf %172, %173 : vector<64x64xf32>
    %175 = arith.truncf %174 : vector<64x64xf32> to vector<64x64xbf16>
    %cst_72 = arith.constant 0.000000e+00 : bf16
    %176 = vector.broadcast %cst_72 : bf16 to vector<9x64xbf16>
    %177 = tpu.concatenate %176, %175, %176 in 0 : vector<9x64xbf16>, vector<64x64xbf16>, vector<9x64xbf16> -> vector<82x64xbf16>
    %178 = vector.extract_strided_slice %177 {offsets = [0, 0], sizes = [64, 64], strides = [1, 1]} : vector<82x64xbf16> to vector<64x64xbf16>
    %cst_73 = arith.constant 0.000000e+00 : bf16
    %179 = vector.shape_cast %18 : vector<64x1xi1> to vector<64x1xi1>
    %180 = vector.broadcast %179 : vector<64x1xi1> to vector<64x64xi1>
    %181 = vector.broadcast %cst_73 : bf16 to vector<64x64xbf16>
    %182 = arith.select %180, %178, %181 : vector<64x64xi1>, vector<64x64xbf16>
    %183 = vector.extract_strided_slice %177 {offsets = [1, 0], sizes = [64, 64], strides = [1, 1]} : vector<82x64xbf16> to vector<64x64xbf16>
    %184 = vector.extract_strided_slice %177 {offsets = [2, 0], sizes = [64, 64], strides = [1, 1]} : vector<82x64xbf16> to vector<64x64xbf16>
    %cst_74 = arith.constant 0.000000e+00 : bf16
    %185 = vector.shape_cast %37 : vector<64x1xi1> to vector<64x1xi1>
    %186 = vector.broadcast %185 : vector<64x1xi1> to vector<64x64xi1>
    %187 = vector.broadcast %cst_74 : bf16 to vector<64x64xbf16>
    %188 = arith.select %186, %184, %187 : vector<64x64xi1>, vector<64x64xbf16>
    %189 = vector.extract_strided_slice %177 {offsets = [8, 0], sizes = [64, 64], strides = [1, 1]} : vector<82x64xbf16> to vector<64x64xbf16>
    %cst_75 = arith.constant 0.000000e+00 : bf16
    %190 = vector.shape_cast %18 : vector<64x1xi1> to vector<64x1xi1>
    %191 = vector.broadcast %190 : vector<64x1xi1> to vector<64x64xi1>
    %192 = vector.broadcast %cst_75 : bf16 to vector<64x64xbf16>
    %193 = arith.select %191, %189, %192 : vector<64x64xi1>, vector<64x64xbf16>
    %194 = vector.extract_strided_slice %177 {offsets = [9, 0], sizes = [64, 64], strides = [1, 1]} : vector<82x64xbf16> to vector<64x64xbf16>
    %195 = vector.extract_strided_slice %177 {offsets = [10, 0], sizes = [64, 64], strides = [1, 1]} : vector<82x64xbf16> to vector<64x64xbf16>
    %cst_76 = arith.constant 0.000000e+00 : bf16
    %196 = vector.shape_cast %37 : vector<64x1xi1> to vector<64x1xi1>
    %197 = vector.broadcast %196 : vector<64x1xi1> to vector<64x64xi1>
    %198 = vector.broadcast %cst_76 : bf16 to vector<64x64xbf16>
    %199 = arith.select %197, %195, %198 : vector<64x64xi1>, vector<64x64xbf16>
    %200 = vector.extract_strided_slice %177 {offsets = [16, 0], sizes = [64, 64], strides = [1, 1]} : vector<82x64xbf16> to vector<64x64xbf16>
    %cst_77 = arith.constant 0.000000e+00 : bf16
    %201 = vector.shape_cast %18 : vector<64x1xi1> to vector<64x1xi1>
    %202 = vector.broadcast %201 : vector<64x1xi1> to vector<64x64xi1>
    %203 = vector.broadcast %cst_77 : bf16 to vector<64x64xbf16>
    %204 = arith.select %202, %200, %203 : vector<64x64xi1>, vector<64x64xbf16>
    %205 = vector.extract_strided_slice %177 {offsets = [17, 0], sizes = [64, 64], strides = [1, 1]} : vector<82x64xbf16> to vector<64x64xbf16>
    %206 = vector.extract_strided_slice %177 {offsets = [18, 0], sizes = [64, 64], strides = [1, 1]} : vector<82x64xbf16> to vector<64x64xbf16>
    %cst_78 = arith.constant 0.000000e+00 : bf16
    %207 = vector.shape_cast %37 : vector<64x1xi1> to vector<64x1xi1>
    %208 = vector.broadcast %207 : vector<64x1xi1> to vector<64x64xi1>
    %209 = vector.broadcast %cst_78 : bf16 to vector<64x64xbf16>
    %210 = arith.select %208, %206, %209 : vector<64x64xi1>, vector<64x64xbf16>
    %211 = tpu.concatenate %182, %183, %188, %193, %194, %199, %204, %205, %210 in 1 : vector<64x64xbf16>, vector<64x64xbf16>, vector<64x64xbf16>, vector<64x64xbf16>, vector<64x64xbf16>, vector<64x64xbf16>, vector<64x64xbf16>, vector<64x64xbf16>, vector<64x64xbf16> -> vector<64x576xbf16>
    %c0_79 = arith.constant 0 : index
    %c0_80 = arith.constant 0 : index
    %212 = vector.load %arg18[%c0_79, %c0_80] : memref<576x64xbf16, #tpu.memory_space<vmem>>, vector<576x64xbf16>
    %cst_81 = arith.constant dense<0.000000e+00> : vector<64x64xf32>
    %213 = tpu.matmul %211, %212, %cst_81 {dimension_numbers = #tpu.dot_dimension_numbers<[1], [0], [0], [1], [0, 0, 1, 1], [], []>} : vector<64x576xbf16>, vector<576x64xbf16>, vector<64x64xf32> -> vector<64x64xf32>
    %c0_82 = arith.constant 0 : index
    %c0_83 = arith.constant 0 : index
    %214 = vector.load %arg19[%c0_82, %c0_83] : memref<1x64xf32, #tpu.memory_space<vmem>>, vector<1x64xf32>
    %215 = vector.broadcast %214 : vector<1x64xf32> to vector<64x64xf32>
    %216 = arith.addf %213, %215 : vector<64x64xf32>
    %cst_84 = arith.constant 0.000000e+00 : f32
    %217 = vector.broadcast %cst_84 : f32 to vector<64x64xf32>
    %218 = arith.maximumf %216, %217 : vector<64x64xf32>
    %219 = arith.truncf %218 : vector<64x64xf32> to vector<64x64xbf16>
    %c0_85 = arith.constant 0 : index
    %c0_86 = arith.constant 0 : index
    %220 = vector.load %arg20[%c0_85, %c0_86] : memref<64x256xbf16, #tpu.memory_space<vmem>>, vector<64x256xbf16>
    %cst_87 = arith.constant dense<0.000000e+00> : vector<64x256xf32>
    %221 = tpu.matmul %219, %220, %cst_87 {dimension_numbers = #tpu.dot_dimension_numbers<[1], [0], [0], [1], [0, 0, 1, 1], [], []>} : vector<64x64xbf16>, vector<64x256xbf16>, vector<64x256xf32> -> vector<64x256xf32>
    %c0_88 = arith.constant 0 : index
    %c0_89 = arith.constant 0 : index
    %222 = vector.load %arg21[%c0_88, %c0_89] : memref<1x256xf32, #tpu.memory_space<vmem>>, vector<1x256xf32>
    %223 = vector.broadcast %222 : vector<1x256xf32> to vector<64x256xf32>
    %224 = arith.addf %221, %223 : vector<64x256xf32>
    %225 = arith.extf %167 : vector<64x256xbf16> to vector<64x256xf32>
    %226 = arith.addf %224, %225 : vector<64x256xf32>
    %cst_90 = arith.constant 0.000000e+00 : f32
    %227 = vector.broadcast %cst_90 : f32 to vector<64x256xf32>
    %228 = arith.maximumf %226, %227 : vector<64x256xf32>
    %c0_91 = arith.constant 0 : index
    %c0_92 = arith.constant 0 : index
    %c0_93 = arith.constant 0 : index
    %229 = vector.load %arg22[%c0_91, %c0_92, %c0_93] : memref<1x64x256xf32, #tpu.memory_space<vmem>>, vector<1x64x256xf32>
    %230 = vector.shape_cast %229 : vector<1x64x256xf32> to vector<64x256xf32>
    %231 = vector.shape_cast %228 : vector<64x256xf32> to vector<1x64x256xf32>
    tpu.vector_store %arg22[%c0_91, %c0_92, %c0_93], %231 {strides = array<i32>} : memref<1x64x256xf32, #tpu.memory_space<vmem>>, vector<1x64x256xf32>,
    return
  }
  func.func @transform_0(%arg0: i32) -> (i32, i32, i32) {
    %c0_i32 = arith.constant 0 : i32
    %c0_i32_0 = arith.constant 0 : i32
    %c0_i32_1 = arith.constant 0 : i32
    return %arg0, %c0_i32, %c0_i32_0 : i32, i32, i32
  }
  func.func @transform_1(%arg0: i32) -> (i32, i32) {
    %c0_i32 = arith.constant 0 : i32
    %c0_i32_0 = arith.constant 0 : i32
    %c0_i32_1 = arith.constant 0 : i32
    return %c0_i32, %c0_i32_0 : i32, i32
  }
  func.func @transform_2(%arg0: i32) -> (i32, i32) {
    %c0_i32 = arith.constant 0 : i32
    %c0_i32_0 = arith.constant 0 : i32
    %c0_i32_1 = arith.constant 0 : i32
    return %c0_i32, %c0_i32_0 : i32, i32
  }
  func.func @transform_3(%arg0: i32) -> (i32, i32) {
    %c0_i32 = arith.constant 0 : i32
    %c0_i32_0 = arith.constant 0 : i32
    %c0_i32_1 = arith.constant 0 : i32
    return %c0_i32, %c0_i32_0 : i32, i32
  }
  func.func @transform_4(%arg0: i32) -> (i32, i32) {
    %c0_i32 = arith.constant 0 : i32
    %c0_i32_0 = arith.constant 0 : i32
    %c0_i32_1 = arith.constant 0 : i32
    return %c0_i32, %c0_i32_0 : i32, i32
  }
  func.func @transform_5(%arg0: i32) -> (i32, i32) {
    %c0_i32 = arith.constant 0 : i32
    %c0_i32_0 = arith.constant 0 : i32
    %c0_i32_1 = arith.constant 0 : i32
    return %c0_i32, %c0_i32_0 : i32, i32
  }
  func.func @transform_6(%arg0: i32) -> (i32, i32) {
    %c0_i32 = arith.constant 0 : i32
    %c0_i32_0 = arith.constant 0 : i32
    %c0_i32_1 = arith.constant 0 : i32
    return %c0_i32, %c0_i32_0 : i32, i32
  }
  func.func @transform_7(%arg0: i32) -> (i32, i32) {
    %c0_i32 = arith.constant 0 : i32
    %c0_i32_0 = arith.constant 0 : i32
    %c0_i32_1 = arith.constant 0 : i32
    return %c0_i32, %c0_i32_0 : i32, i32
  }
  func.func @transform_8(%arg0: i32) -> (i32, i32) {
    %c0_i32 = arith.constant 0 : i32
    %c0_i32_0 = arith.constant 0 : i32
    %c0_i32_1 = arith.constant 0 : i32
    return %c0_i32, %c0_i32_0 : i32, i32
  }
  func.func @transform_9(%arg0: i32) -> (i32, i32) {
    %c0_i32 = arith.constant 0 : i32
    %c0_i32_0 = arith.constant 0 : i32
    %c0_i32_1 = arith.constant 0 : i32
    return %c0_i32, %c0_i32_0 : i32, i32
  }
  func.func @transform_10(%arg0: i32) -> (i32, i32) {
    %c0_i32 = arith.constant 0 : i32
    %c0_i32_0 = arith.constant 0 : i32
    %c0_i32_1 = arith.constant 0 : i32
    return %c0_i32, %c0_i32_0 : i32, i32
  }
  func.func @transform_11(%arg0: i32) -> (i32, i32) {
    %c0_i32 = arith.constant 0 : i32
    %c0_i32_0 = arith.constant 0 : i32
    %c0_i32_1 = arith.constant 0 : i32
    return %c0_i32, %c0_i32_0 : i32, i32
  }
  func.func @transform_12(%arg0: i32) -> (i32, i32) {
    %c0_i32 = arith.constant 0 : i32
    %c0_i32_0 = arith.constant 0 : i32
    %c0_i32_1 = arith.constant 0 : i32
    return %c0_i32, %c0_i32_0 : i32, i32
  }
  func.func @transform_13(%arg0: i32) -> (i32, i32) {
    %c0_i32 = arith.constant 0 : i32
    %c0_i32_0 = arith.constant 0 : i32
    %c0_i32_1 = arith.constant 0 : i32
    return %c0_i32, %c0_i32_0 : i32, i32
  }
  func.func @transform_14(%arg0: i32) -> (i32, i32) {
    %c0_i32 = arith.constant 0 : i32
    %c0_i32_0 = arith.constant 0 : i32
    %c0_i32_1 = arith.constant 0 : i32
    return %c0_i32, %c0_i32_0 : i32, i32
  }
  func.func @transform_15(%arg0: i32) -> (i32, i32) {
    %c0_i32 = arith.constant 0 : i32
    %c0_i32_0 = arith.constant 0 : i32
    %c0_i32_1 = arith.constant 0 : i32
    return %c0_i32, %c0_i32_0 : i32, i32
  }
  func.func @transform_16(%arg0: i32) -> (i32, i32) {
    %c0_i32 = arith.constant 0 : i32
    %c0_i32_0 = arith.constant 0 : i32
    %c0_i32_1 = arith.constant 0 : i32
    return %c0_i32, %c0_i32_0 : i32, i32
  }
  func.func @transform_17(%arg0: i32) -> (i32, i32) {
    %c0_i32 = arith.constant 0 : i32
    %c0_i32_0 = arith.constant 0 : i32
    %c0_i32_1 = arith.constant 0 : i32
    return %c0_i32, %c0_i32_0 : i32, i32
  }
  func.func @transform_18(%arg0: i32) -> (i32, i32) {
    %c0_i32 = arith.constant 0 : i32
    %c0_i32_0 = arith.constant 0 : i32
    %c0_i32_1 = arith.constant 0 : i32
    return %c0_i32, %c0_i32_0 : i32, i32
  }
  func.func @transform_19(%arg0: i32) -> (i32, i32) {
    %c0_i32 = arith.constant 0 : i32
    %c0_i32_0 = arith.constant 0 : i32
    %c0_i32_1 = arith.constant 0 : i32
    return %c0_i32, %c0_i32_0 : i32, i32
  }
  func.func @transform_20(%arg0: i32) -> (i32, i32) {
    %c0_i32 = arith.constant 0 : i32
    %c0_i32_0 = arith.constant 0 : i32
    %c0_i32_1 = arith.constant 0 : i32
    return %c0_i32, %c0_i32_0 : i32, i32
  }
  func.func @transform_21(%arg0: i32) -> (i32, i32, i32) {
    %c0_i32 = arith.constant 0 : i32
    %c0_i32_0 = arith.constant 0 : i32
    %c0_i32_1 = arith.constant 0 : i32
    return %arg0, %c0_i32, %c0_i32_0 : i32, i32, i32
  }
}

</mosaic_0001>

<llo_original>
// kernel: head_forward.2
$region0: #{head_forward.2}
  #allocation0 [shape = 'u32[]', space=smem, size = 0x4, offset = 0x4, fixed_abs, tag = 'smem constant byte address 0x4 - core index']
  #allocation1 [shape = 'u32[144,128]{1,0:T(1,128)}', space=vmem, size = 0x12000, scoped, tag = 'internal scratch']
  %s0 = inlined_call_operand.vmem [shape: bf16[2,256,160], index: 0, kind: input, shape index: {}]
  %s1 = inlined_call_operand.vmem [shape: bf16[160,64], index: 1, kind: input, shape index: {}]
  %s2 = inlined_call_operand.vmem [shape: f32[1,64], index: 2, kind: input, shape index: {}]
  %s3 = inlined_call_operand.vmem [shape: bf16[2,64,64], index: 3, kind: output, shape index: {}]
  %s4 = sld [smem:[#allocation0]]
  $region45: #{head_forward.2} parent=0
    _
  %s6 = ssub.s32 1, %s4
  %s7 = scalar_select 0, %s6, %s4
  loop: start=0, step=1, limit=4
  $region2: #{head_forward.2} parent=0 // loop_pre_header
    _
  $region3: #{head_forward.2} parent=0 // loop_header
    %s9 = sphi 0, %s13
    %p10 = scmp.ge.s32.totalorder %s9, 4
    %s19 = sphi 0, %s21
    %s22 = sphi 0, %s19
    %s23 = sphi 0, %s22
    %s39 = sphi 0, %s23
    %s43 = sphi 0, %s43
    %s45 = sphi 0, %s43
    %s46 = sphi 0, %s45
    %s60 = sphi 0, %s46
    %s64 = sphi 0, %s64
    %s66 = sphi 0, %s64
    %s67 = sphi 0, %s66
    %s81 = sphi 0, %s67
    %s87 = sphi 0, %s89
    %s90 = sphi 0, %s87
    %s91 = sphi 0, %s90
    %s107 = sphi 0, %s91
  $region4: #{head_forward.2} parent=0 // loop_header_branch
    %12 = sbr.rel (%p10) target = $region8
  $region5: #{head_forward.2} parent=0 // loop_body
    %s14 = ssub.s32 %s9, 1
    %s15 = ssub.s32 %s9, 2
    %s16 = sadd.s32 %s9, 1
    %s17 = ssub.s32 %s9, %s16
    %p18 = scmp.eq.s32.totalorder %s17, 0
    %s20 = sadd.s32 %s19, 1
    %s21 = scalar_select %p18, %s19, %s20
    %p24 = pneg %p18
    %p25 = scmp.eq.s32.totalorder %s9, 1
    %p26 = por %p24, %p25
    %p27 = scmp.ne.s32.totalorder %s19, %s22
    %p28 = scmp.eq.s32.totalorder %s9, 0
    %p29 = por %p27, %p28
    %p30 = scmp.ne.s32.totalorder %s19, %s22
    %p31 = scmp.eq.s32.totalorder %s14, 1
    %p32 = por %p30, %p31
    %p33 = scmp.ne.s32.totalorder %s22, %s23
    %p34 = scmp.eq.s32.totalorder %s14, 0
    %p35 = por %p33, %p34
    %p36 = scmp.ne.s32.totalorder %s22, %s23
    %p37 = scmp.eq.s32.totalorder %s15, 1
    %p38 = por %p36, %p37
    %p40 = scmp.ne.s32.totalorder %s23, %s39
    %p41 = scmp.eq.s32.totalorder %s15, 0
    %p42 = por %p40, %p41
    %s44 = sadd.s32 %s43, 1
    %p47 = scmp.eq.s32.totalorder %s9, 1
    %p48 = scmp.ne.s32.totalorder %s43, %s45
    %p49 = scmp.eq.s32.totalorder %s9, 0
    %p50 = por %p48, %p49
    %p51 = scmp.ne.s32.totalorder %s43, %s45
    %p52 = scmp.eq.s32.totalorder %s14, 1
    %p53 = por %p51, %p52
    %p54 = scmp.ne.s32.totalorder %s45, %s46
    %p55 = scmp.eq.s32.totalorder %s14, 0
    %p56 = por %p54, %p55
    %p57 = scmp.ne.s32.totalorder %s45, %s46
    %p58 = scmp.eq.s32.totalorder %s15, 1
    %p59 = por %p57, %p58
    %p61 = scmp.ne.s32.totalorder %s46, %s60
    %p62 = scmp.eq.s32.totalorder %s15, 0
    %p63 = por %p61, %p62
    %s65 = sadd.s32 %s64, 1
    %p68 = scmp.eq.s32.totalorder %s9, 1
    %p69 = scmp.ne.s32.totalorder %s64, %s66
    %p70 = scmp.eq.s32.totalorder %s9, 0
    %p71 = por %p69, %p70
    %p72 = scmp.ne.s32.totalorder %s64, %s66
    %p73 = scmp.eq.s32.totalorder %s14, 1
    %p74 = por %p72, %p73
    %p75 = scmp.ne.s32.totalorder %s66, %s67
    %p76 = scmp.eq.s32.totalorder %s14, 0
    %p77 = por %p75, %p76
    %p78 = scmp.ne.s32.totalorder %s66, %s67
    %p79 = scmp.eq.s32.totalorder %s15, 1
    %p80 = por %p78, %p79
    %p82 = scmp.ne.s32.totalorder %s67, %s81
    %p83 = scmp.eq.s32.totalorder %s15, 0
    %p84 = por %p82, %p83
    %s85 = ssub.s32 %s9, %s16
    %p86 = scmp.eq.s32.totalorder %s85, 0
    %s88 = sadd.s32 %s87, 1
    %s89 = scalar_select %p86, %s87, %s88
    %p92 = pneg %p86
    %p93 = scmp.eq.s32.totalorder %s9, 1
    %p94 = por %p92, %p93
    %p95 = scmp.ne.s32.totalorder %s87, %s90
    %p96 = scmp.eq.s32.totalorder %s9, 0
    %p97 = por %p95, %p96
    %p98 = scmp.ne.s32.totalorder %s87, %s90
    %p99 = scmp.eq.s32.totalorder %s14, 1
    %p100 = por %p98, %p99
    %p101 = scmp.ne.s32.totalorder %s90, %s91
    %p102 = scmp.eq.s32.totalorder %s14, 0
    %p103 = por %p101, %p102
    %p104 = scmp.ne.s32.totalorder %s90, %s91
    %p105 = scmp.eq.s32.totalorder %s15, 1
    %p106 = por %p104, %p105
    %p108 = scmp.ne.s32.totalorder %s91, %s107
    %p109 = scmp.eq.s32.totalorder %s15, 0
    %p110 = por %p108, %p109
    %p111 = scmp.le.s32.totalorder 1, %s9
    %p112 = scmp.lt.s32.totalorder %s9, 3
    %p113 = pnand %p111, %p112
    %p114 = pneg %p113
    // Predicated region
    $region9: #{head_forward.2} parent=5 // pred_check
      _
    $region10: #{head_forward.2} parent=5 // pred_check_branch
      %116 = sbr.rel (%p113) target = $region12
    $region11: #{head_forward.2} parent=5 // pred_region
      %s117 = ssub.s32 %s9, 1
      // Predicated region
      $region13: #{head_forward.2} parent=11 // pred_check
        %p118 = pneg %p56
      $region14: #{head_forward.2} parent=11 // pred_check_branch
        %120 = sbr.rel (%p118) target = $region16
      $region15: #{head_forward.2} parent=11 // pred_region
        _
      $region16: #{head_forward.2} parent=11 // pred_fallthru
        _
      // Predicated region
      $region17: #{head_forward.2} parent=11 // pred_check
        %p121 = pneg %p77
      $region18: #{head_forward.2} parent=11 // pred_check_branch
        %123 = sbr.rel (%p121) target = $region20
      $region19: #{head_forward.2} parent=11 // pred_region
        _
      $region20: #{head_forward.2} parent=11 // pred_fallthru
        _
    $region12: #{head_forward.2} parent=5 // pred_fallthru
      _
    %p124 = scmp.lt.s32.totalorder %s9, 2
    // Predicated region
    $region21: #{head_forward.2} parent=5 // pred_check
      %p125 = pneg %p124
    $region22: #{head_forward.2} parent=5 // pred_check_branch
      %127 = sbr.rel (%p125) target = $region24
    $region23: #{head_forward.2} parent=5 // pred_region
      // Predicated region
      $region25: #{head_forward.2} parent=23 // pred_check
        %p128 = pneg %p29
      $region26: #{head_forward.2} parent=23 // pred_check_branch
        %130 = sbr.rel (%p128) target = $region28
      $region27: #{head_forward.2} parent=23 // pred_region
        %p131 = scmp.lt.s32.totalorder %s9, 1
        %s132 = scalar_select %p131, %s9, 1
        %s133 = smul.addr %s132, 64
        %s134 = smul.addr %s133, 4
        %s135 = scalar_lea.vmem %s0, %s134
      $region28: #{head_forward.2} parent=23 // pred_fallthru
        _
    $region24: #{head_forward.2} parent=5 // pred_fallthru
      _
    %p136 = scmp.le.s32.totalorder 1, %s9
    %p137 = scmp.lt.s32.totalorder %s9, 3
    %p138 = pnand %p136, %p137
    %p139 = pneg %p138
    // Predicated region
    $region29: #{head_forward.2} parent=5 // pred_check
      _
    $region30: #{head_forward.2} parent=5 // pred_check_branch
      %141 = sbr.rel (%p138) target = $region32
    $region31: #{head_forward.2} parent=5 // pred_region
      %s142 = ssub.s32 %s9, 1
      %p143 = scmp.lt.s32.totalorder %s14, 1
      %s144 = scalar_select %p143, %s14, 1
      %s145 = smul.addr %s144, 64
      %s146 = smul.addr %s145, 4
      %s147 = scalar_lea.vmem %s0, %s146
      %p148 = pneg %p35
      %p149 = pneg %p32
      %p150 = pneg %p56
      %p151 = pneg %p53
      %p152 = pneg %p77
      %p153 = pneg %p74
      %p154 = pneg %p103
      %p155 = pneg %p100
      %p156 = scmp.lt.s32.totalorder %s14, 1
      %s157 = scalar_select %p156, %s14, 1
      %s158 = smul.addr %s157, 8
      %s159 = smul.addr %s158, 4
      %s160 = scalar_lea.vmem %s3, %s159
      %p161 = scmp.lt.s32.totalorder %s14, 1
      %s162 = scalar_select %p161, %s14, 1
      %s163 = smul.addr %s162, 64
      %s164 = smul.addr %s163, 4
      %s165 = scalar_lea.vmem %s0, %s164
      %p166 = scmp.lt.s32.totalorder %s14, 1
      %s167 = scalar_select %p166, %s14, 1
      %s168 = smul.addr %s167, 8
      %s169 = smul.addr %s168, 4
      %s170 = scalar_lea.vmem %s3, %s169
      %v172 = vld [vmem:[%s165] sm:$0xff]
      %v173 = vld [vmem:[%s165 + $0x8] sm:$0xff]
      %v174 = vld [vmem:[%s165 + $0x10] sm:$0xff]
      %v175 = vld [vmem:[%s165 + $0x18] sm:$0xff]
      %v176 = vld [vmem:[%s165 + $0x20] sm:$0xff]
      %v177 = vld [vmem:[%s165 + $0x28] sm:$0xff]
      %v178 = vld [vmem:[%s165 + $0x30] sm:$0xff]
      %v179 = vld [vmem:[%s165 + $0x38] sm:$0xff]
      %v180 = vld [vmem:[%s165 + $0x40] sm:$0xff]
      %v181 = vld [vmem:[%s165 + $0x48] sm:$0xff]
      %v182 = vld [vmem:[%s165 + $0x50] sm:$0xff]
      %v183 = vld [vmem:[%s165 + $0x58] sm:$0xff]
      %v184 = vld [vmem:[%s165 + $0x60] sm:$0xff]
      %v185 = vld [vmem:[%s165 + $0x68] sm:$0xff]
      %v186 = vld [vmem:[%s165 + $0x70] sm:$0xff]
      %v187 = vld [vmem:[%s165 + $0x78] sm:$0xff]
      %v188 = vld [vmem:[%s165 + $0x80] sm:$0xff]
      %v189 = vld [vmem:[%s165 + $0x88] sm:$0xff]
      %v190 = vld [vmem:[%s165 + $0x90] sm:$0xff]
      %v191 = vld [vmem:[%s165 + $0x98] sm:$0xff]
      %v192 = vld [vmem:[%s165 + $0xa0] sm:$0xff]
      %v193 = vld [vmem:[%s165 + $0xa8] sm:$0xff]
      %v194 = vld [vmem:[%s165 + $0xb0] sm:$0xff]
      %v195 = vld [vmem:[%s165 + $0xb8] sm:$0xff]
      %v196 = vld [vmem:[%s165 + $0xc0] sm:$0xff]
      %v197 = vld [vmem:[%s165 + $0xc8] sm:$0xff]
      %v198 = vld [vmem:[%s165 + $0xd0] sm:$0xff]
      %v199 = vld [vmem:[%s165 + $0xd8] sm:$0xff]
      %v200 = vld [vmem:[%s165 + $0xe0] sm:$0xff]
      %v201 = vld [vmem:[%s165 + $0xe8] sm:$0xff]
      %v202 = vld [vmem:[%s165 + $0xf0] sm:$0xff]
      %v203 = vld [vmem:[%s165 + $0xf8] sm:$0xff]
      %v204 = vld [vmem:[%s1] sm:$0xf]
      %v205 = vld [vmem:[%s1 + $0x4] sm:$0xf]
      %v206 = vld [vmem:[%s1 + $0x8] sm:$0xf]
      %v207 = vld [vmem:[%s1 + $0xc] sm:$0xf]
      %v208 = vld [vmem:[%s1 + $0x10] sm:$0xf]
      %v209 = vld [vmem:[%s1 + $0x14] sm:$0xf]
      %v210 = vld [vmem:[%s1 + $0x18] sm:$0xf]
      %v211 = vld [vmem:[%s1 + $0x1c] sm:$0xf]
      %v212 = vld [vmem:[%s1 + $0x20] sm:$0xf]
      %v213 = vld [vmem:[%s1 + $0x24] sm:$0xf]
      %v214 = vld [vmem:[%s1 + $0x28] sm:$0xf]
      %v215 = vld [vmem:[%s1 + $0x2c] sm:$0xf]
      %v216 = vld [vmem:[%s1 + $0x30] sm:$0xf]
      %v217 = vld [vmem:[%s1 + $0x34] sm:$0xf]
      %v218 = vld [vmem:[%s1 + $0x38] sm:$0xf]
      %v219 = vld [vmem:[%s1 + $0x3c] sm:$0xf]
      %v220 = vld [vmem:[%s1 + $0x40] sm:$0xf]
      %v221 = vld [vmem:[%s1 + $0x44] sm:$0xf]
      %v222 = vld [vmem:[%s1 + $0x48] sm:$0xf]
      %v223 = vld [vmem:[%s1 + $0x4c] sm:$0xf]
      %v224 = vld [vmem:[%s2] sm:$0x1]
      %v226 = vlaneseq
      %v227 = vshrl.u32 %v226, 7
      %v228 = vsub.s32 0, %v227
      %v229 = vrot.slane %v224, %v228
      %v263 = vunpack.c.l.b16 %v172
      %v264 = vunpack.c.h.b16 %v172
      %v265 = vunpack.c.l.b16 %v173
      %v266 = vunpack.c.h.b16 %v173
      %v267 = vunpack.c.l.b16 %v174
      %v268 = vunpack.c.h.b16 %v174
      %v269 = vunpack.c.l.b16 %v175
      %v270 = vunpack.c.h.b16 %v175
      %v271 = vunpack.c.l.b16 %v176
      %v272 = vunpack.c.h.b16 %v176
      %v273 = vunpack.c.l.b16 %v177
      %v274 = vunpack.c.h.b16 %v177
      %v275 = vunpack.c.l.b16 %v178
      %v276 = vunpack.c.h.b16 %v178
      %v277 = vunpack.c.l.b16 %v179
      %v278 = vunpack.c.h.b16 %v179
      %v279 = vunpack.c.l.b16 %v180
      %v280 = vunpack.c.h.b16 %v180
      %v281 = vunpack.c.l.b16 %v181
      %v282 = vunpack.c.h.b16 %v181
      %v283 = vunpack.c.l.b16 %v182
      %v284 = vunpack.c.h.b16 %v182
      %v285 = vunpack.c.l.b16 %v183
      %v286 = vunpack.c.h.b16 %v183
      %v287 = vunpack.c.l.b16 %v184
      %v288 = vunpack.c.h.b16 %v184
      %v289 = vunpack.c.l.b16 %v185
      %v290 = vunpack.c.h.b16 %v185
      %v291 = vunpack.c.l.b16 %v186
      %v292 = vunpack.c.h.b16 %v186
      %v293 = vunpack.c.l.b16 %v187
      %v294 = vunpack.c.h.b16 %v187
      %v295 = vunpack.c.l.b16 %v188
      %v296 = vunpack.c.h.b16 %v188
      %v297 = vunpack.c.l.b16 %v189
      %v298 = vunpack.c.h.b16 %v189
      %v299 = vunpack.c.l.b16 %v190
      %v300 = vunpack.c.h.b16 %v190
      %v301 = vunpack.c.l.b16 %v191
      %v302 = vunpack.c.h.b16 %v191
      %v303 = vunpack.c.l.b16 %v192
      %v304 = vunpack.c.h.b16 %v192
      %v305 = vunpack.c.l.b16 %v193
      %v306 = vunpack.c.h.b16 %v193
      %v307 = vunpack.c.l.b16 %v194
      %v308 = vunpack.c.h.b16 %v194
      %v309 = vunpack.c.l.b16 %v195
      %v310 = vunpack.c.h.b16 %v195
      %v311 = vunpack.c.l.b16 %v196
      %v312 = vunpack.c.h.b16 %v196
      %v313 = vunpack.c.l.b16 %v197
      %v314 = vunpack.c.h.b16 %v197
      %v315 = vunpack.c.l.b16 %v198
      %v316 = vunpack.c.h.b16 %v198
      %v317 = vunpack.c.l.b16 %v199
      %v318 = vunpack.c.h.b16 %v199
      %v319 = vunpack.c.l.b16 %v200
      %v320 = vunpack.c.h.b16 %v200
      %v321 = vunpack.c.l.b16 %v201
      %v322 = vunpack.c.h.b16 %v201
      %v323 = vunpack.c.l.b16 %v202
      %v324 = vunpack.c.h.b16 %v202
      %v325 = vunpack.c.l.b16 %v203
      %v326 = vunpack.c.h.b16 %v203
      %v327 = vpack.c.b16 %v265, %v263
      %v328 = vpack.c.b16 %v266, %v264
      %v329 = vpack.c.b16 %v269, %v267
      %v330 = vpack.c.b16 %v270, %v268
      %v331 = vpack.c.b16 %v273, %v271
      %v332 = vpack.c.b16 %v274, %v272
      %v333 = vpack.c.b16 %v277, %v275
      %v334 = vpack.c.b16 %v278, %v276
      %v335 = vpack.c.b16 %v281, %v279
      %v336 = vpack.c.b16 %v282, %v280
      %v337 = vpack.c.b16 %v285, %v283
      %v338 = vpack.c.b16 %v286, %v284
      %v339 = vpack.c.b16 %v289, %v287
      %v340 = vpack.c.b16 %v290, %v288
      %v341 = vpack.c.b16 %v293, %v291
      %v342 = vpack.c.b16 %v294, %v292
      %v343 = vpack.c.b16 %v297, %v295
      %v344 = vpack.c.b16 %v298, %v296
      %v345 = vpack.c.b16 %v301, %v299
      %v346 = vpack.c.b16 %v302, %v300
      %v347 = vpack.c.b16 %v305, %v303
      %v348 = vpack.c.b16 %v306, %v304
      %v349 = vpack.c.b16 %v309, %v307
      %v350 = vpack.c.b16 %v310, %v308
      %v351 = vpack.c.b16 %v313, %v311
      %v352 = vpack.c.b16 %v314, %v312
      %v353 = vpack.c.b16 %v317, %v315
      %v354 = vpack.c.b16 %v318, %v316
      %v355 = vpack.c.b16 %v321, %v319
      %v356 = vpack.c.b16 %v322, %v320
      %v357 = vpack.c.b16 %v325, %v323
      %v358 = vpack.c.b16 %v326, %v324
      %v395 = vunpack.c.l.b16 %v204
      %v396 = vunpack.c.l.b16 %v205
      %v397 = vunpack.c.l.b16 %v206
      %v398 = vunpack.c.l.b16 %v207
      %v399 = vunpack.c.l.b16 %v208
      %v400 = vunpack.c.l.b16 %v209
      %v401 = vunpack.c.l.b16 %v210
      %v402 = vunpack.c.l.b16 %v211
      %v403 = vunpack.c.l.b16 %v212
      %v404 = vunpack.c.l.b16 %v213
      %v405 = vunpack.c.l.b16 %v214
      %v406 = vunpack.c.l.b16 %v215
      %v407 = vunpack.c.l.b16 %v216
      %v408 = vunpack.c.l.b16 %v217
      %v409 = vunpack.c.l.b16 %v218
      %v410 = vunpack.c.l.b16 %v219
      %v411 = vunpack.c.l.b16 %v220
      %v412 = vunpack.c.l.b16 %v221
      %v413 = vunpack.c.l.b16 %v222
      %v414 = vunpack.c.l.b16 %v223
      %v415 = vpack.c.b16 %v396, %v395
      %v416 = vpack.c.b16 %v398, %v397
      %v417 = vpack.c.b16 %v400, %v399
      %v418 = vpack.c.b16 %v402, %v401
      %v419 = vpack.c.b16 %v404, %v403
      %v420 = vpack.c.b16 %v406, %v405
      %v421 = vpack.c.b16 %v408, %v407
      %v422 = vpack.c.b16 %v410, %v409
      %v423 = vpack.c.b16 %v412, %v411
      %v424 = vpack.c.b16 %v414, %v413
      %vm435 = vcmask 261120
      %v437 = vsel %vm435, %v328, 0
      %v440 = vsel %vm435, %v330, 0
      %v443 = vsel %vm435, %v332, 0
      %v446 = vsel %vm435, %v334, 0
      %v449 = vsel %vm435, %v336, 0
      %v452 = vsel %vm435, %v338, 0
      %v455 = vsel %vm435, %v340, 0
      %v458 = vsel %vm435, %v342, 0
      %v461 = vsel %vm435, %v344, 0
      %v464 = vsel %vm435, %v346, 0
      %v467 = vsel %vm435, %v348, 0
      %v470 = vsel %vm435, %v350, 0
      %v473 = vsel %vm435, %v352, 0
      %v476 = vsel %vm435, %v354, 0
      %v479 = vsel %vm435, %v356, 0
      %v482 = vsel %vm435, %v358, 0
      %484 = vmatprep.subr.bf16.mxu0 0
      %485 = vmatpush1.bf16.msra.mxu0 %v415
      %486 = vmatprep.subr.bf16.mxu0 0
      %487 = vmatpush1.bf16.msra.mxu0 %v416
      %488 = vmatprep.subr.bf16.mxu0 0
      %489 = vmatpush1.bf16.msra.mxu0 %v417
      %490 = vmatprep.subr.bf16.mxu0 0
      %491 = vmatpush1.bf16.msra.mxu0 %v418
      %492 = vmatprep.subr.bf16.mxu0 0
      %493 = vmatpush1.bf16.msra.mxu0 %v419
      %494 = vmatprep.subr.bf16.mxu0 0
      %495 = vmatpush1.bf16.msra.mxu0 %v420
      %496 = vmatprep.subr.bf16.mxu0 0
      %497 = vmatpush1.bf16.msra.mxu0 %v421
      %498 = vmatprep.subr.bf16.mxu0 0
      %499 = vmatpush1.bf16.msra.mxu0 %v422
      %500 = vmatprep.subr.bf16.mxu0 0
      %501 = vmatpush1.bf16.msra.mxu0 %v423
      %502 = vmatprep.subr.bf16.mxu0 0
      %503 = vmatpush1.bf16.msra.mxu0 %v424
      %504 = vmatprep.subr.bf16.mxu0 0
      %505 = vmatpush1.bf16.msra.mxu0 0
      %506 = vmatprep.subr.bf16.mxu0 0
      %507 = vmatpush1.bf16.msra.mxu0 0
      %508 = vmatprep.subr.bf16.mxu0 0
      %509 = vmatpush1.bf16.msra.mxu0 0
      %510 = vmatprep.subr.bf16.mxu0 0
      %511 = vmatpush1.bf16.msra.mxu0 0
      %512 = vmatprep.subr.bf16.mxu0 0
      %513 = vmatpush1.bf16.msra.mxu0 0
      %514 = vmatprep.subr.bf16.mxu0 0
      %515 = vmatpush1.bf16.msra.mxu0 0
      %516 = vmatprep.mubr.bf16.mxu0 %v437
      %517 = vmatmul.mubr.bf16.gmra.mrb[0].mxu0 %v327
      %v518 = vpop.f32.mrb[0].mxu0
      %v519 = vadd.f32 %v229, %v518
      %v520 = vpop.f32.mrb[0].mxu0
      %v521 = vpop.f32.mrb[0].mxu0
      %v522 = vadd.f32 %v229, %v521
      %v523 = vpop.f32.mrb[0].mxu0
      %524 = vmatprep.mubr.bf16.mxu0 %v440
      %525 = vmatmul.mubr.bf16.gmra.mrb[0].mxu0 %v329
      %v526 = vpop.f32.mrb[0].mxu0
      %v527 = vadd.f32 %v229, %v526
      %v528 = vpop.f32.mrb[0].mxu0
      %v529 = vpop.f32.mrb[0].mxu0
      %v530 = vadd.f32 %v229, %v529
      %v531 = vpop.f32.mrb[0].mxu0
      %532 = vmatprep.mubr.bf16.mxu0 %v443
      %533 = vmatmul.mubr.bf16.gmra.mrb[0].mxu0 %v331
      %v534 = vpop.f32.mrb[0].mxu0
      %v535 = vadd.f32 %v229, %v534
      %v536 = vpop.f32.mrb[0].mxu0
      %v537 = vpop.f32.mrb[0].mxu0
      %v538 = vadd.f32 %v229, %v537
      %v539 = vpop.f32.mrb[0].mxu0
      %540 = vmatprep.mubr.bf16.mxu0 %v446
      %541 = vmatmul.mubr.bf16.gmra.mrb[0].mxu0 %v333
      %v542 = vpop.f32.mrb[0].mxu0
      %v543 = vadd.f32 %v229, %v542
      %v544 = vpop.f32.mrb[0].mxu0
      %v545 = vpop.f32.mrb[0].mxu0
      %v546 = vadd.f32 %v229, %v545
      %v547 = vpop.f32.mrb[0].mxu0
      %548 = vmatprep.mubr.bf16.mxu0 %v449
      %549 = vmatmul.mubr.bf16.gmra.mrb[0].mxu0 %v335
      %v550 = vpop.f32.mrb[0].mxu0
      %v551 = vadd.f32 %v229, %v550
      %v552 = vpop.f32.mrb[0].mxu0
      %v553 = vpop.f32.mrb[0].mxu0
      %v554 = vadd.f32 %v229, %v553
      %v555 = vpop.f32.mrb[0].mxu0
      %556 = vmatprep.mubr.bf16.mxu0 %v452
      %557 = vmatmul.mubr.bf16.gmra.mrb[0].mxu0 %v337
      %v558 = vpop.f32.mrb[0].mxu0
      %v559 = vadd.f32 %v229, %v558
      %v560 = vpop.f32.mrb[0].mxu0
      %v561 = vpop.f32.mrb[0].mxu0
      %v562 = vadd.f32 %v229, %v561
      %v563 = vpop.f32.mrb[0].mxu0
      %564 = vmatprep.mubr.bf16.mxu0 %v455
      %565 = vmatmul.mubr.bf16.gmra.mrb[0].mxu0 %v339
      %v566 = vpop.f32.mrb[0].mxu0
      %v567 = vadd.f32 %v229, %v566
      %v568 = vpop.f32.mrb[0].mxu0
      %v569 = vpop.f32.mrb[0].mxu0
      %v570 = vadd.f32 %v229, %v569
      %v571 = vpop.f32.mrb[0].mxu0
      %572 = vmatprep.mubr.bf16.mxu0 %v458
      %573 = vmatmul.mubr.bf16.gmra.mrb[0].mxu0 %v341
      %v574 = vpop.f32.mrb[0].mxu0
      %v575 = vadd.f32 %v229, %v574
      %v576 = vpop.f32.mrb[0].mxu0
      %v577 = vpop.f32.mrb[0].mxu0
      %v578 = vadd.f32 %v229, %v577
      %v579 = vpop.f32.mrb[0].mxu0
      %580 = vmatprep.mubr.bf16.mxu0 %v461
      %581 = vmatmul.mubr.bf16.gmra.mrb[0].mxu0 %v343
      %v582 = vpop.f32.mrb[0].mxu0
      %v583 = vadd.f32 %v229, %v582
      %v584 = vpop.f32.mrb[0].mxu0
      %v585 = vpop.f32.mrb[0].mxu0
      %v586 = vadd.f32 %v229, %v585
      %v587 = vpop.f32.mrb[0].mxu0
      %588 = vmatprep.mubr.bf16.mxu0 %v464
      %589 = vmatmul.mubr.bf16.gmra.mrb[0].mxu0 %v345
      %v590 = vpop.f32.mrb[0].mxu0
      %v591 = vadd.f32 %v229, %v590
      %v592 = vpop.f32.mrb[0].mxu0
      %v593 = vpop.f32.mrb[0].mxu0
      %v594 = vadd.f32 %v229, %v593
      %v595 = vpop.f32.mrb[0].mxu0
      %596 = vmatprep.mubr.bf16.mxu0 %v467
      %597 = vmatmul.mubr.bf16.gmra.mrb[0].mxu0 %v347
      %v598 = vpop.f32.mrb[0].mxu0
      %v599 = vadd.f32 %v229, %v598
      %v600 = vpop.f32.mrb[0].mxu0
      %v601 = vpop.f32.mrb[0].mxu0
      %v602 = vadd.f32 %v229, %v601
      %v603 = vpop.f32.mrb[0].mxu0
      %604 = vmatprep.mubr.bf16.mxu0 %v470
      %605 = vmatmul.mubr.bf16.gmra.mrb[0].mxu0 %v349
      %v606 = vpop.f32.mrb[0].mxu0
      %v607 = vadd.f32 %v229, %v606
      %v608 = vpop.f32.mrb[0].mxu0
      %v609 = vpop.f32.mrb[0].mxu0
      %v610 = vadd.f32 %v229, %v609
      %v611 = vpop.f32.mrb[0].mxu0
      %612 = vmatprep.mubr.bf16.mxu0 %v473
      %613 = vmatmul.mubr.bf16.gmra.mrb[0].mxu0 %v351
      %v614 = vpop.f32.mrb[0].mxu0
      %v615 = vadd.f32 %v229, %v614
      %v616 = vpop.f32.mrb[0].mxu0
      %v617 = vpop.f32.mrb[0].mxu0
      %v618 = vadd.f32 %v229, %v617
      %v619 = vpop.f32.mrb[0].mxu0
      %620 = vmatprep.mubr.bf16.mxu0 %v476
      %621 = vmatmul.mubr.bf16.gmra.mrb[0].mxu0 %v353
      %v622 = vpop.f32.mrb[0].mxu0
      %v623 = vadd.f32 %v229, %v622
      %v624 = vpop.f32.mrb[0].mxu0
      %v625 = vpop.f32.mrb[0].mxu0
      %v626 = vadd.f32 %v229, %v625
      %v627 = vpop.f32.mrb[0].mxu0
      %628 = vmatprep.mubr.bf16.mxu0 %v479
      %629 = vmatmul.mubr.bf16.gmra.mrb[0].mxu0 %v355
      %v630 = vpop.f32.mrb[0].mxu0
      %v631 = vadd.f32 %v229, %v630
      %v632 = vpop.f32.mrb[0].mxu0
      %v633 = vpop.f32.mrb[0].mxu0
      %v634 = vadd.f32 %v229, %v633
      %v635 = vpop.f32.mrb[0].mxu0
      %636 = vmatprep.mubr.bf16.mxu0 %v482
      %637 = vmatmul.mubr.bf16.gmra.mrb[0].mxu0 %v357
      %v638 = vpop.f32.mrb[0].mxu0
      %v639 = vadd.f32 %v229, %v638
      %v640 = vpop.f32.mrb[0].mxu0
      %v641 = vpop.f32.mrb[0].mxu0
      %v642 = vadd.f32 %v229, %v641
      %v643 = vpop.f32.mrb[0].mxu0
      %644 = vdwg.mxu0
      %v645 = vmax.f32 %v519, 0.0
      %v646 = vmax.f32 %v522, 0.0
      %v647 = vmax.f32 %v527, 0.0
      %v648 = vmax.f32 %v530, 0.0
      %v649 = vmax.f32 %v535, 0.0
      %v650 = vmax.f32 %v538, 0.0
      %v651 = vmax.f32 %v543, 0.0
      %v652 = vmax.f32 %v546, 0.0
      %v653 = vmax.f32 %v551, 0.0
      %v654 = vmax.f32 %v554, 0.0
      %v655 = vmax.f32 %v559, 0.0
      %v656 = vmax.f32 %v562, 0.0
      %v657 = vmax.f32 %v567, 0.0
      %v658 = vmax.f32 %v570, 0.0
      %v659 = vmax.f32 %v575, 0.0
      %v660 = vmax.f32 %v578, 0.0
      %v661 = vmax.f32 %v583, 0.0
      %v662 = vmax.f32 %v586, 0.0
      %v663 = vmax.f32 %v591, 0.0
      %v664 = vmax.f32 %v594, 0.0
      %v665 = vmax.f32 %v599, 0.0
      %v666 = vmax.f32 %v602, 0.0
      %v667 = vmax.f32 %v607, 0.0
      %v668 = vmax.f32 %v610, 0.0
      %v669 = vmax.f32 %v615, 0.0
      %v670 = vmax.f32 %v618, 0.0
      %v671 = vmax.f32 %v623, 0.0
      %v672 = vmax.f32 %v626, 0.0
      %v673 = vmax.f32 %v631, 0.0
      %v674 = vmax.f32 %v634, 0.0
      %v675 = vmax.f32 %v639, 0.0
      %v676 = vmax.f32 %v642, 0.0
      %v677 = vmax.f32 %v645, %v653
      %v678 = vmax.f32 %v646, %v654
      %v679 = vmax.f32 %v647, %v655
      %v680 = vmax.f32 %v648, %v656
      %v681 = vmax.f32 %v649, %v657
      %v682 = vmax.f32 %v650, %v658
      %v683 = vmax.f32 %v651, %v659
      %v684 = vmax.f32 %v652, %v660
      %v685 = vmax.f32 %v661, %v669
      %v686 = vmax.f32 %v662, %v670
      %v687 = vmax.f32 %v663, %v671
      %v688 = vmax.f32 %v664, %v672
      %v689 = vmax.f32 %v665, %v673
      %v690 = vmax.f32 %v666, %v674
      %v691 = vmax.f32 %v667, %v675
      %v692 = vmax.f32 %v668, %v676
      %v693 = vmax.f32 %v677, %v685
      %v694 = vmax.f32 %v678, %v686
      %v695 = vmax.f32 %v679, %v687
      %v696 = vmax.f32 %v680, %v688
      %v697 = vmax.f32 %v681, %v689
      %v698 = vmax.f32 %v682, %v690
      %v699 = vmax.f32 %v683, %v691
      %v700 = vmax.f32 %v684, %v692
      %v701 = vlaneseq
      %v702 = vshrl.u32 %v701, 7
      %v703 = vadd.s32 %v702, 8
      %v704 = vadd.s32 %v702, 16
      %v705 = vadd.s32 %v702, 24
      %v706 = vadd.s32 %v702, 32
      %v707 = vadd.s32 %v702, 40
      %v708 = vadd.s32 %v702, 48
      %v709 = vadd.s32 %v702, 56
      %vm710 = vcmp.lt.s32.totalorder %v702, 0
      %v711 = vsub.s32 0, %v702
      %v712 = vsel %vm710, %v711, %v702
      %v713 = vshrl.u32 %v712, 3
      %v714 = vand.u32 %v712, 7
      %v715 = vsub.s32 0, %v714
      %v716 = vsel %vm710, %v715, %v714
      %vm717 = vcmp.lt.s32.totalorder %v703, 0
      %v718 = vsub.s32 0, %v703
      %v719 = vsel %vm717, %v718, %v703
      %v720 = vshrl.u32 %v719, 3
      %v721 = vand.u32 %v719, 7
      %v722 = vsub.s32 0, %v721
      %v723 = vsel %vm717, %v722, %v721
      %vm724 = vcmp.lt.s32.totalorder %v704, 0
      %v725 = vsub.s32 0, %v704
      %v726 = vsel %vm724, %v725, %v704
      %v727 = vshrl.u32 %v726, 3
      %v728 = vand.u32 %v726, 7
      %v729 = vsub.s32 0, %v728
      %v730 = vsel %vm724, %v729, %v728
      %vm731 = vcmp.lt.s32.totalorder %v705, 0
      %v732 = vsub.s32 0, %v705
      %v733 = vsel %vm731, %v732, %v705
      %v734 = vshrl.u32 %v733, 3
      %v735 = vand.u32 %v733, 7
      %v736 = vsub.s32 0, %v735
      %v737 = vsel %vm731, %v736, %v735
      %vm738 = vcmp.lt.s32.totalorder %v706, 0
      %v739 = vsub.s32 0, %v706
      %v740 = vsel %vm738, %v739, %v706
      %v741 = vshrl.u32 %v740, 3
      %v742 = vand.u32 %v740, 7
      %v743 = vsub.s32 0, %v742
      %v744 = vsel %vm738, %v743, %v742
      %vm745 = vcmp.lt.s32.totalorder %v707, 0
      %v746 = vsub.s32 0, %v707
      %v747 = vsel %vm745, %v746, %v707
      %v748 = vshrl.u32 %v747, 3
      %v749 = vand.u32 %v747, 7
      %v750 = vsub.s32 0, %v749
      %v751 = vsel %vm745, %v750, %v749
      %vm752 = vcmp.lt.s32.totalorder %v708, 0
      %v753 = vsub.s32 0, %v708
      %v754 = vsel %vm752, %v753, %v708
      %v755 = vshrl.u32 %v754, 3
      %v756 = vand.u32 %v754, 7
      %v757 = vsub.s32 0, %v756
      %v758 = vsel %vm752, %v757, %v756
      %vm759 = vcmp.lt.s32.totalorder %v709, 0
      %v760 = vsub.s32 0, %v709
      %v761 = vsel %vm759, %v760, %v709
      %v762 = vshrl.u32 %v761, 3
      %v763 = vand.u32 %v761, 7
      %v764 = vsub.s32 0, %v763
      %v765 = vsel %vm759, %v764, %v763
      %vm766 = vcmp.ne.s32.totalorder %v716, 0
      %vm767 = vcmp.ne.s32.totalorder %v723, 0
      %vm768 = vcmp.ne.s32.totalorder %v730, 0
      %vm769 = vcmp.ne.s32.totalorder %v737, 0
      %vm770 = vcmp.ne.s32.totalorder %v744, 0
      %vm771 = vcmp.ne.s32.totalorder %v751, 0
      %vm772 = vcmp.ne.s32.totalorder %v758, 0
      %vm773 = vcmp.ne.s32.totalorder %v765, 0
      %vm774 = vcmp.lt.s32.totalorder %v716, 0
      %vm775 = vcmp.lt.s32.totalorder %v723, 0
      %vm776 = vcmp.lt.s32.totalorder %v730, 0
      %vm777 = vcmp.lt.s32.totalorder %v737, 0
      %vm778 = vcmp.lt.s32.totalorder %v744, 0
      %vm779 = vcmp.lt.s32.totalorder %v751, 0
      %vm780 = vcmp.lt.s32.totalorder %v758, 0
      %vm781 = vcmp.lt.s32.totalorder %v765, 0
      %vm782 = vmand %vm774, %vm766
      %vm783 = vmand %vm775, %vm767
      %vm784 = vmand %vm776, %vm768
      %vm785 = vmand %vm777, %vm769
      %vm786 = vmand %vm778, %vm770
      %vm787 = vmand %vm779, %vm771
      %vm788 = vmand %vm780, %vm772
      %vm789 = vmand %vm781, %vm773
      %v790 = vadd.s32 %v716, 8
      %v791 = vadd.s32 %v723, 8
      %v792 = vadd.s32 %v730, 8
      %v793 = vadd.s32 %v737, 8
      %v794 = vadd.s32 %v744, 8
      %v795 = vadd.s32 %v751, 8
      %v796 = vadd.s32 %v758, 8
      %v797 = vadd.s32 %v765, 8
      %v798 = vsel %vm782, %v790, %v716
      %v799 = vsel %vm783, %v791, %v723
      %v800 = vsel %vm784, %v792, %v730
      %v801 = vsel %vm785, %v793, %v737
      %v802 = vsel %vm786, %v794, %v744
      %v803 = vsel %vm787, %v795, %v751
      %v804 = vsel %vm788, %v796, %v758
      %v805 = vsel %vm789, %v797, %v765
      %vm806 = vcmp.gt.s32.totalorder %v798, 0
      %vm807 = vcmp.gt.s32.totalorder %v799, 0
      %vm808 = vcmp.gt.s32.totalorder %v800, 0
      %vm809 = vcmp.gt.s32.totalorder %v801, 0
      %vm810 = vcmp.gt.s32.totalorder %v802, 0
      %vm811 = vcmp.gt.s32.totalorder %v803, 0
      %vm812 = vcmp.gt.s32.totalorder %v804, 0
      %vm813 = vcmp.gt.s32.totalorder %v805, 0
      %v814 = vmax.f32 %v653, %v669
      %v815 = vmax.f32 %v654, %v670
      %v816 = vmax.f32 %v655, %v671
      %v817 = vmax.f32 %v656, %v672
      %v818 = vmax.f32 %v657, %v673
      %v819 = vmax.f32 %v658, %v674
      %v820 = vmax.f32 %v659, %v675
      %v821 = vmax.f32 %v660, %v676
      %vm830 = vcmask 1040384
      %v831 = vrot.slane %v814, 7
      %v832 = vrot.slane %v815, 7
      %v833 = vsel %vm830, %v831, %v832
      %v834 = vrot.slane %v816, 7
      %v835 = vsel %vm830, %v832, %v834
      %v836 = vrot.slane %v817, 7
      %v837 = vsel %vm830, %v834, %v836
      %v838 = vrot.slane %v818, 7
      %v839 = vsel %vm830, %v836, %v838
      %v840 = vrot.slane %v819, 7
      %v841 = vsel %vm830, %v838, %v840
      %v842 = vrot.slane %v820, 7
      %v843 = vsel %vm830, %v840, %v842
      %v844 = vrot.slane %v821, 7
      %v845 = vsel %vm830, %v842, %v844
      %v854 = vsel %vm830, 0.0, %v831
      %v855 = vsel %vm806, 1, 0
      %v856 = vsel %vm807, 1, 0
      %v857 = vsel %vm808, 1, 0
      %v858 = vsel %vm809, 1, 0
      %v859 = vsel %vm810, 1, 0
      %v860 = vsel %vm811, 1, 0
      %v861 = vsel %vm812, 1, 0
      %v862 = vsel %vm813, 1, 0
      %vm863 = vcmp.eq.s32.totalorder %v855, 1
      %vm864 = vcmp.eq.s32.totalorder %v856, 1
      %vm865 = vcmp.eq.s32.totalorder %v857, 1
      %vm866 = vcmp.eq.s32.totalorder %v858, 1
      %vm867 = vcmp.eq.s32.totalorder %v859, 1
      %vm868 = vcmp.eq.s32.totalorder %v860, 1
      %vm869 = vcmp.eq.s32.totalorder %v861, 1
      %vm870 = vcmp.eq.s32.totalorder %v862, 1
      %v871 = vsel %vm863, %v854, 0.0
      %v872 = vsel %vm864, %v833, 0.0
      %v873 = vsel %vm865, %v835, 0.0
      %v874 = vsel %vm866, %v837, 0.0
      %v875 = vsel %vm867, %v839, 0.0
      %v876 = vsel %vm868, %v841, 0.0
      %v877 = vsel %vm869, %v843, 0.0
      %v878 = vsel %vm870, %v845, 0.0
      %v879 = vmax.f32 %v693, %v871
      %v880 = vmax.f32 %v694, %v872
      %v881 = vmax.f32 %v695, %v873
      %v882 = vmax.f32 %v696, %v874
      %v883 = vmax.f32 %v697, %v875
      %v884 = vmax.f32 %v698, %v876
      %v885 = vmax.f32 %v699, %v877
      %v886 = vmax.f32 %v700, %v878
      %v895 = vrot.slane %v685, 7
      %v896 = vrot.slane %v686, 7
      %v897 = vsel %vm830, %v895, %v896
      %v898 = vrot.slane %v687, 7
      %v899 = vsel %vm830, %v896, %v898
      %v900 = vrot.slane %v688, 7
      %v901 = vsel %vm830, %v898, %v900
      %v902 = vrot.slane %v689, 7
      %v903 = vsel %vm830, %v900, %v902
      %v904 = vrot.slane %v690, 7
      %v905 = vsel %vm830, %v902, %v904
      %v906 = vrot.slane %v691, 7
      %v907 = vsel %vm830, %v904, %v906
      %v908 = vrot.slane %v692, 7
      %v909 = vsel %vm830, %v906, %v908
      %v911 = vsel %vm830, 0.0, %v895
      %vm914 = vcmask 1046528
      %v915 = vrot.slane 0.0, 1
      %v916 = vrot.slane %v911, 1
      %v917 = vsel %vm914, %v915, %v916
      %v918 = vrot.slane %v897, 1
      %v919 = vsel %vm914, %v916, %v918
      %v920 = vrot.slane %v899, 1
      %v921 = vsel %vm914, %v918, %v920
      %v922 = vrot.slane %v901, 1
      %v923 = vsel %vm914, %v920, %v922
      %v924 = vrot.slane %v903, 1
      %v925 = vsel %vm914, %v922, %v924
      %v926 = vrot.slane %v905, 1
      %v927 = vsel %vm914, %v924, %v926
      %v928 = vrot.slane %v907, 1
      %v929 = vsel %vm914, %v926, %v928
      %v930 = vrot.slane %v909, 1
      %v931 = vsel %vm914, %v928, %v930
      %v940 = vmax.f32 %v879, %v917
      %v941 = vmax.f32 %v880, %v919
      %v942 = vmax.f32 %v881, %v921
      %v943 = vmax.f32 %v882, %v923
      %v944 = vmax.f32 %v883, %v925
      %v945 = vmax.f32 %v884, %v927
      %v946 = vmax.f32 %v885, %v929
      %v947 = vmax.f32 %v886, %v931
      %v955 = vrot.slane %v669, 7
      %v956 = vrot.slane %v670, 7
      %v957 = vsel %vm830, %v955, %v956
      %v958 = vrot.slane %v671, 7
      %v959 = vsel %vm830, %v956, %v958
      %v960 = vrot.slane %v672, 7
      %v961 = vsel %vm830, %v958, %v960
      %v962 = vrot.slane %v673, 7
      %v963 = vsel %vm830, %v960, %v962
      %v964 = vrot.slane %v674, 7
      %v965 = vsel %vm830, %v962, %v964
      %v966 = vrot.slane %v675, 7
      %v967 = vsel %vm830, %v964, %v966
      %v975 = vsel %vm830, 0.0, %v955
      %v976 = vsel %vm864, %v975, 0.0
      %v977 = vsel %vm865, %v957, 0.0
      %v978 = vsel %vm866, %v959, 0.0
      %v979 = vsel %vm867, %v961, 0.0
      %v980 = vsel %vm868, %v963, 0.0
      %v981 = vsel %vm869, %v965, 0.0
      %v982 = vsel %vm870, %v967, 0.0
      %v983 = vmax.f32 %v940, 0.0
      %v984 = vmax.f32 %v941, %v976
      %v985 = vmax.f32 %v942, %v977
      %v986 = vmax.f32 %v943, %v978
      %v987 = vmax.f32 %v944, %v979
      %v988 = vmax.f32 %v945, %v980
      %v989 = vmax.f32 %v946, %v981
      %v990 = vmax.f32 %v947, %v982
      %v991 = vpack.c.bf16 %v984, %v983
      %v992 = vpack.c.bf16 %v986, %v985
      %v993 = vpack.c.bf16 %v988, %v987
      %v994 = vpack.c.bf16 %v990, %v989
      %v999 = vunpack.c.l.b16 %v991
      %v1000 = vunpack.c.h.b16 %v991
      %v1001 = vunpack.c.l.b16 %v992
      %v1002 = vunpack.c.h.b16 %v992
      %v1003 = vunpack.c.l.b16 %v993
      %v1004 = vunpack.c.h.b16 %v993
      %v1005 = vunpack.c.l.b16 %v994
      %v1006 = vunpack.c.h.b16 %v994
      %v1007 = vpack.c.b16 %v999, %v999
      %v1008 = vpack.c.b16 %v1000, %v1000
      %v1009 = vpack.c.b16 %v1001, %v1001
      %v1010 = vpack.c.b16 %v1002, %v1002
      %v1011 = vpack.c.b16 %v1003, %v1003
      %v1012 = vpack.c.b16 %v1004, %v1004
      %v1013 = vpack.c.b16 %v1005, %v1005
      %v1014 = vpack.c.b16 %v1006, %v1006
      %vm1023 = vcmask 519168
      %1024 = vst.msk [vmem:[%s170] sm:$0xf] %vm1023, %v1007
      %1025 = vst.msk [vmem:[%s170 + $0x4] sm:$0xf] %vm1023, %v1008
      %1026 = vst.msk [vmem:[%s170 + $0x8] sm:$0xf] %vm1023, %v1009
      %1027 = vst.msk [vmem:[%s170 + $0xc] sm:$0xf] %vm1023, %v1010
      %1028 = vst.msk [vmem:[%s170 + $0x10] sm:$0xf] %vm1023, %v1011
      %1029 = vst.msk [vmem:[%s170 + $0x14] sm:$0xf] %vm1023, %v1012
      %1030 = vst.msk [vmem:[%s170 + $0x18] sm:$0xf] %vm1023, %v1013
      %1031 = vst.msk [vmem:[%s170 + $0x1c] sm:$0xf] %vm1023, %v1014
      %p1032 = scmp.lt.s32.totalorder %s14, 1
      %s1033 = scalar_select %p1032, %s14, 1
      %s1034 = smul.addr %s1033, 8
      %s1035 = smul.addr %s1034, 4
      %s1036 = scalar_lea.vmem %s3, %s1035
      // Predicated region
      $region33: #{head_forward.2} parent=31 // pred_check
        %p1037 = pneg %p100
      $region34: #{head_forward.2} parent=31 // pred_check_branch
        %1039 = sbr.rel (%p1037) target = $region36
      $region35: #{head_forward.2} parent=31 // pred_region
        _
      $region36: #{head_forward.2} parent=31 // pred_fallthru
        _
    $region32: #{head_forward.2} parent=5 // pred_fallthru
      _
    %p1040 = scmp.le.s32.totalorder 2, %s9
    // Predicated region
    $region37: #{head_forward.2} parent=5 // pred_check
      %p1041 = pneg %p1040
    $region38: #{head_forward.2} parent=5 // pred_check_branch
      %1043 = sbr.rel (%p1041) target = $region40
    $region39: #{head_forward.2} parent=5 // pred_region
      %s1044 = ssub.s32 %s9, 2
      // Predicated region
      $region41: #{head_forward.2} parent=39 // pred_check
        %p1045 = pneg %p106
      $region42: #{head_forward.2} parent=39 // pred_check_branch
        %1047 = sbr.rel (%p1045) target = $region44
      $region43: #{head_forward.2} parent=39 // pred_region
        %p1048 = scmp.lt.s32.totalorder %s15, 1
        %s1049 = scalar_select %p1048, %s15, 1
        %s1050 = smul.addr %s1049, 8
        %s1051 = smul.addr %s1050, 4
        %s1052 = scalar_lea.vmem %s3, %s1051
      $region44: #{head_forward.2} parent=39 // pred_fallthru
        _
    $region40: #{head_forward.2} parent=5 // pred_fallthru
      _
  $region6: #{head_forward.2} parent=0 // loop_footer
    %s13 = sadd.s32 1, %s9
  $region7: #{head_forward.2} parent=0 // loop_footer_branch
    %8 = sbr.rel target = $region3
  $region8: #{head_forward.2} parent=0 // loop_exit
    _

// kernel: head_forward.3
$region0: #{head_forward.3}
  #allocation0 [shape = 'u32[]', space=smem, size = 0x4, offset = 0x4, fixed_abs, tag = 'smem constant byte address 0x4 - core index']
  #allocation1 [shape = 'u32[144,128]{1,0:T(1,128)}', space=vmem, size = 0x12000, scoped, tag = 'internal scratch']
  %s0 = inlined_call_operand.vmem [shape: bf16[2,64,64], index: 0, kind: input, shape index: {}]
  %s1 = inlined_call_operand.vmem [shape: bf16[64,64], index: 1, kind: input, shape index: {}]
  %s2 = inlined_call_operand.vmem [shape: f32[1,64], index: 2, kind: input, shape index: {}]
  %s3 = inlined_call_operand.vmem [shape: bf16[576,64], index: 3, kind: input, shape index: {}]
  %s4 = inlined_call_operand.vmem [shape: f32[1,64], index: 4, kind: input, shape index: {}]
  %s5 = inlined_call_operand.vmem [shape: bf16[64,256], index: 5, kind: input, shape index: {}]
  %s6 = inlined_call_operand.vmem [shape: f32[1,256], index: 6, kind: input, shape index: {}]
  %s7 = inlined_call_operand.vmem [shape: bf16[64,256], index: 7, kind: input, shape index: {}]
  %s8 = inlined_call_operand.vmem [shape: f32[1,256], index: 8, kind: input, shape index: {}]
  %s9 = inlined_call_operand.vmem [shape: bf16[256,64], index: 9, kind: input, shape index: {}]
  %s10 = inlined_call_operand.vmem [shape: f32[1,64], index: 10, kind: input, shape index: {}]
  %s11 = inlined_call_operand.vmem [shape: bf16[576,64], index: 11, kind: input, shape index: {}]
  %s12 = inlined_call_operand.vmem [shape: f32[1,64], index: 12, kind: input, shape index: {}]
  %s13 = inlined_call_operand.vmem [shape: bf16[64,256], index: 13, kind: input, shape index: {}]
  %s14 = inlined_call_operand.vmem [shape: f32[1,256], index: 14, kind: input, shape index: {}]
  %s15 = inlined_call_operand.vmem [shape: bf16[256,64], index: 15, kind: input, shape index: {}]
  %s16 = inlined_call_operand.vmem [shape: f32[1,64], index: 16, kind: input, shape index: {}]
  %s17 = inlined_call_operand.vmem [shape: bf16[576,64], index: 17, kind: input, shape index: {}]
  %s18 = inlined_call_operand.vmem [shape: f32[1,64], index: 18, kind: input, shape index: {}]
  %s19 = inlined_call_operand.vmem [shape: bf16[64,256], index: 19, kind: input, shape index: {}]
  %s20 = inlined_call_operand.vmem [shape: f32[1,256], index: 20, kind: input, shape index: {}]
  %s21 = inlined_call_operand.hbm [shape: f32[2,64,256], index: 21, kind: output, shape index: {}]
  %s22 = sld [smem:[#allocation0]]
  $region117: #{head_forward.3} parent=0
    _
  %s24 = ssub.s32 1, %s22
  %s25 = scalar_select 0, %s24, %s22
  $region1: #{head_forward.3} parent=0
    #allocation2 [shape = 'u8[131072]{0}', space=vmem, size = 0x20000, scoped, tag = 'output window, operand 0']
    #allocation3 [shape = 's32[2]{0}', space=sflag, size = 0x8, scoped, tag = 'scoped memory for head_forward.3']
    %26 = vsyncpa [#allocation3], 0
    %s27 = scalar_lea.sflag [#allocation3], 1
    %28 = vsyncpa %s27, 0
    loop: start=0, step=1, limit=4
    $region2: #{head_forward.3} parent=1 // loop_pre_header
      _
    $region3: #{head_forward.3} parent=1 // loop_header
      %s30 = sphi 0, %s34
      %p31 = scmp.ge.s32.totalorder %s30, 4
      %s40 = sphi 0, %s42
      %s43 = sphi 0, %s40
      %s44 = sphi 0, %s43
      %s60 = sphi 0, %s44
      %s64 = sphi 0, %s64
      %s66 = sphi 0, %s64
      %s67 = sphi 0, %s66
      %s81 = sphi 0, %s67
      %s85 = sphi 0, %s85
      %s87 = sphi 0, %s85
      %s88 = sphi 0, %s87
      %s102 = sphi 0, %s88
      %s106 = sphi 0, %s106
      %s108 = sphi 0, %s106
      %s109 = sphi 0, %s108
      %s123 = sphi 0, %s109
      %s127 = sphi 0, %s127
      %s129 = sphi 0, %s127
      %s130 = sphi 0, %s129
      %s144 = sphi 0, %s130
      %s148 = sphi 0, %s148
      %s150 = sphi 0, %s148
      %s151 = sphi 0, %s150
      %s165 = sphi 0, %s151
      %s169 = sphi 0, %s169
      %s171 = sphi 0, %s169
      %s172 = sphi 0, %s171
      %s186 = sphi 0, %s172
      %s190 = sphi 0, %s190
      %s192 = sphi 0, %s190
      %s193 = sphi 0, %s192
      %s207 = sphi 0, %s193
      %s211 = sphi 0, %s211
      %s213 = sphi 0, %s211
      %s214 = sphi 0, %s213
      %s228 = sphi 0, %s214
      %s232 = sphi 0, %s232
      %s234 = sphi 0, %s232
      %s235 = sphi 0, %s234
      %s249 = sphi 0, %s235
      %s253 = sphi 0, %s253
      %s255 = sphi 0, %s253
      %s256 = sphi 0, %s255
      %s270 = sphi 0, %s256
      %s274 = sphi 0, %s274
      %s276 = sphi 0, %s274
      %s277 = sphi 0, %s276
      %s291 = sphi 0, %s277
      %s295 = sphi 0, %s295
      %s297 = sphi 0, %s295
      %s298 = sphi 0, %s297
      %s312 = sphi 0, %s298
      %s316 = sphi 0, %s316
      %s318 = sphi 0, %s316
      %s319 = sphi 0, %s318
      %s333 = sphi 0, %s319
      %s337 = sphi 0, %s337
      %s339 = sphi 0, %s337
      %s340 = sphi 0, %s339
      %s354 = sphi 0, %s340
      %s358 = sphi 0, %s358
      %s360 = sphi 0, %s358
      %s361 = sphi 0, %s360
      %s375 = sphi 0, %s361
      %s379 = sphi 0, %s379
      %s381 = sphi 0, %s379
      %s382 = sphi 0, %s381
      %s396 = sphi 0, %s382
      %s400 = sphi 0, %s400
      %s402 = sphi 0, %s400
      %s403 = sphi 0, %s402
      %s417 = sphi 0, %s403
      %s421 = sphi 0, %s421
      %s423 = sphi 0, %s421
      %s424 = sphi 0, %s423
      %s438 = sphi 0, %s424
      %s442 = sphi 0, %s442
      %s444 = sphi 0, %s442
      %s445 = sphi 0, %s444
      %s459 = sphi 0, %s445
      %s463 = sphi 0, %s463
      %s465 = sphi 0, %s463
      %s466 = sphi 0, %s465
      %s480 = sphi 0, %s466
      %s486 = sphi 0, %s488
      %s489 = sphi 0, %s486
      %s490 = sphi 0, %s489
      %s506 = sphi 0, %s490
    $region4: #{head_forward.3} parent=1 // loop_header_branch
      %33 = sbr.rel (%p31) target = $region8
    $region5: #{head_forward.3} parent=1 // loop_body
      %s35 = ssub.s32 %s30, 1
      %s36 = ssub.s32 %s30, 2
      %s37 = sadd.s32 %s30, 1
      %s38 = ssub.s32 %s30, %s37
      %p39 = scmp.eq.s32.totalorder %s38, 0
      %s41 = sadd.s32 %s40, 1
      %s42 = scalar_select %p39, %s40, %s41
      %p45 = pneg %p39
      %p46 = scmp.eq.s32.totalorder %s30, 1
      %p47 = por %p45, %p46
      %p48 = scmp.ne.s32.totalorder %s40, %s43
      %p49 = scmp.eq.s32.totalorder %s30, 0
      %p50 = por %p48, %p49
      %p51 = scmp.ne.s32.totalorder %s40, %s43
      %p52 = scmp.eq.s32.totalorder %s35, 1
      %p53 = por %p51, %p52
      %p54 = scmp.ne.s32.totalorder %s43, %s44
      %p55 = scmp.eq.s32.totalorder %s35, 0
      %p56 = por %p54, %p55
      %p57 = scmp.ne.s32.totalorder %s43, %s44
      %p58 = scmp.eq.s32.totalorder %s36, 1
      %p59 = por %p57, %p58
      %p61 = scmp.ne.s32.totalorder %s44, %s60
      %p62 = scmp.eq.s32.totalorder %s36, 0
      %p63 = por %p61, %p62
      %s65 = sadd.s32 %s64, 1
      %p68 = scmp.eq.s32.totalorder %s30, 1
      %p69 = scmp.ne.s32.totalorder %s64, %s66
      %p70 = scmp.eq.s32.totalorder %s30, 0
      %p71 = por %p69, %p70
      %p72 = scmp.ne.s32.totalorder %s64, %s66
      %p73 = scmp.eq.s32.totalorder %s35, 1
      %p74 = por %p72, %p73
      %p75 = scmp.ne.s32.totalorder %s66, %s67
      %p76 = scmp.eq.s32.totalorder %s35, 0
      %p77 = por %p75, %p76
      %p78 = scmp.ne.s32.totalorder %s66, %s67
      %p79 = scmp.eq.s32.totalorder %s36, 1
      %p80 = por %p78, %p79
      %p82 = scmp.ne.s32.totalorder %s67, %s81
      %p83 = scmp.eq.s32.totalorder %s36, 0
      %p84 = por %p82, %p83
      %s86 = sadd.s32 %s85, 1
      %p89 = scmp.eq.s32.totalorder %s30, 1
      %p90 = scmp.ne.s32.totalorder %s85, %s87
      %p91 = scmp.eq.s32.totalorder %s30, 0
      %p92 = por %p90, %p91
      %p93 = scmp.ne.s32.totalorder %s85, %s87
      %p94 = scmp.eq.s32.totalorder %s35, 1
      %p95 = por %p93, %p94
      %p96 = scmp.ne.s32.totalorder %s87, %s88
      %p97 = scmp.eq.s32.totalorder %s35, 0
      %p98 = por %p96, %p97
      %p99 = scmp.ne.s32.totalorder %s87, %s88
      %p100 = scmp.eq.s32.totalorder %s36, 1
      %p101 = por %p99, %p100
      %p103 = scmp.ne.s32.totalorder %s88, %s102
      %p104 = scmp.eq.s32.totalorder %s36, 0
      %p105 = por %p103, %p104
      %s107 = sadd.s32 %s106, 1
      %p110 = scmp.eq.s32.totalorder %s30, 1
      %p111 = scmp.ne.s32.totalorder %s106, %s108
      %p112 = scmp.eq.s32.totalorder %s30, 0
      %p113 = por %p111, %p112
      %p114 = scmp.ne.s32.totalorder %s106, %s108
      %p115 = scmp.eq.s32.totalorder %s35, 1
      %p116 = por %p114, %p115
      %p117 = scmp.ne.s32.totalorder %s108, %s109
      %p118 = scmp.eq.s32.totalorder %s35, 0
      %p119 = por %p117, %p118
      %p120 = scmp.ne.s32.totalorder %s108, %s109
      %p121 = scmp.eq.s32.totalorder %s36, 1
      %p122 = por %p120, %p121
      %p124 = scmp.ne.s32.totalorder %s109, %s123
      %p125 = scmp.eq.s32.totalorder %s36, 0
      %p126 = por %p124, %p125
      %s128 = sadd.s32 %s127, 1
      %p131 = scmp.eq.s32.totalorder %s30, 1
      %p132 = scmp.ne.s32.totalorder %s127, %s129
      %p133 = scmp.eq.s32.totalorder %s30, 0
      %p134 = por %p132, %p133
      %p135 = scmp.ne.s32.totalorder %s127, %s129
      %p136 = scmp.eq.s32.totalorder %s35, 1
      %p137 = por %p135, %p136
      %p138 = scmp.ne.s32.totalorder %s129, %s130
      %p139 = scmp.eq.s32.totalorder %s35, 0
      %p140 = por %p138, %p139
      %p141 = scmp.ne.s32.totalorder %s129, %s130
      %p142 = scmp.eq.s32.totalorder %s36, 1
      %p143 = por %p141, %p142
      %p145 = scmp.ne.s32.totalorder %s130, %s144
      %p146 = scmp.eq.s32.totalorder %s36, 0
      %p147 = por %p145, %p146
      %s149 = sadd.s32 %s148, 1
      %p152 = scmp.eq.s32.totalorder %s30, 1
      %p153 = scmp.ne.s32.totalorder %s148, %s150
      %p154 = scmp.eq.s32.totalorder %s30, 0
      %p155 = por %p153, %p154
      %p156 = scmp.ne.s32.totalorder %s148, %s150
      %p157 = scmp.eq.s32.totalorder %s35, 1
      %p158 = por %p156, %p157
      %p159 = scmp.ne.s32.totalorder %s150, %s151
      %p160 = scmp.eq.s32.totalorder %s35, 0
      %p161 = por %p159, %p160
      %p162 = scmp.ne.s32.totalorder %s150, %s151
      %p163 = scmp.eq.s32.totalorder %s36, 1
      %p164 = por %p162, %p163
      %p166 = scmp.ne.s32.totalorder %s151, %s165
      %p167 = scmp.eq.s32.totalorder %s36, 0
      %p168 = por %p166, %p167
      %s170 = sadd.s32 %s169, 1
      %p173 = scmp.eq.s32.totalorder %s30, 1
      %p174 = scmp.ne.s32.totalorder %s169, %s171
      %p175 = scmp.eq.s32.totalorder %s30, 0
      %p176 = por %p174, %p175
      %p177 = scmp.ne.s32.totalorder %s169, %s171
      %p178 = scmp.eq.s32.totalorder %s35, 1
      %p179 = por %p177, %p178
      %p180 = scmp.ne.s32.totalorder %s171, %s172
      %p181 = scmp.eq.s32.totalorder %s35, 0
      %p182 = por %p180, %p181
      %p183 = scmp.ne.s32.totalorder %s171, %s172
      %p184 = scmp.eq.s32.totalorder %s36, 1
      %p185 = por %p183, %p184
      %p187 = scmp.ne.s32.totalorder %s172, %s186
      %p188 = scmp.eq.s32.totalorder %s36, 0
      %p189 = por %p187, %p188
      %s191 = sadd.s32 %s190, 1
      %p194 = scmp.eq.s32.totalorder %s30, 1
      %p195 = scmp.ne.s32.totalorder %s190, %s192
      %p196 = scmp.eq.s32.totalorder %s30, 0
      %p197 = por %p195, %p196
      %p198 = scmp.ne.s32.totalorder %s190, %s192
      %p199 = scmp.eq.s32.totalorder %s35, 1
      %p200 = por %p198, %p199
      %p201 = scmp.ne.s32.totalorder %s192, %s193
      %p202 = scmp.eq.s32.totalorder %s35, 0
      %p203 = por %p201, %p202
      %p204 = scmp.ne.s32.totalorder %s192, %s193
      %p205 = scmp.eq.s32.totalorder %s36, 1
      %p206 = por %p204, %p205
      %p208 = scmp.ne.s32.totalorder %s193, %s207
      %p209 = scmp.eq.s32.totalorder %s36, 0
      %p210 = por %p208, %p209
      %s212 = sadd.s32 %s211, 1
      %p215 = scmp.eq.s32.totalorder %s30, 1
      %p216 = scmp.ne.s32.totalorder %s211, %s213
      %p217 = scmp.eq.s32.totalorder %s30, 0
      %p218 = por %p216, %p217
      %p219 = scmp.ne.s32.totalorder %s211, %s213
      %p220 = scmp.eq.s32.totalorder %s35, 1
      %p221 = por %p219, %p220
      %p222 = scmp.ne.s32.totalorder %s213, %s214
      %p223 = scmp.eq.s32.totalorder %s35, 0
      %p224 = por %p222, %p223
      %p225 = scmp.ne.s32.totalorder %s213, %s214
      %p226 = scmp.eq.s32.totalorder %s36, 1
      %p227 = por %p225, %p226
      %p229 = scmp.ne.s32.totalorder %s214, %s228
      %p230 = scmp.eq.s32.totalorder %s36, 0
      %p231 = por %p229, %p230
      %s233 = sadd.s32 %s232, 1
      %p236 = scmp.eq.s32.totalorder %s30, 1
      %p237 = scmp.ne.s32.totalorder %s232, %s234
      %p238 = scmp.eq.s32.totalorder %s30, 0
      %p239 = por %p237, %p238
      %p240 = scmp.ne.s32.totalorder %s232, %s234
      %p241 = scmp.eq.s32.totalorder %s35, 1
      %p242 = por %p240, %p241
      %p243 = scmp.ne.s32.totalorder %s234, %s235
      %p244 = scmp.eq.s32.totalorder %s35, 0
      %p245 = por %p243, %p244
      %p246 = scmp.ne.s32.totalorder %s234, %s235
      %p247 = scmp.eq.s32.totalorder %s36, 1
      %p248 = por %p246, %p247
      %p250 = scmp.ne.s32.totalorder %s235, %s249
      %p251 = scmp.eq.s32.totalorder %s36, 0
      %p252 = por %p250, %p251
      %s254 = sadd.s32 %s253, 1
      %p257 = scmp.eq.s32.totalorder %s30, 1
      %p258 = scmp.ne.s32.totalorder %s253, %s255
      %p259 = scmp.eq.s32.totalorder %s30, 0
      %p260 = por %p258, %p259
      %p261 = scmp.ne.s32.totalorder %s253, %s255
      %p262 = scmp.eq.s32.totalorder %s35, 1
      %p263 = por %p261, %p262
      %p264 = scmp.ne.s32.totalorder %s255, %s256
      %p265 = scmp.eq.s32.totalorder %s35, 0
      %p266 = por %p264, %p265
      %p267 = scmp.ne.s32.totalorder %s255, %s256
      %p268 = scmp.eq.s32.totalorder %s36, 1
      %p269 = por %p267, %p268
      %p271 = scmp.ne.s32.totalorder %s256, %s270
      %p272 = scmp.eq.s32.totalorder %s36, 0
      %p273 = por %p271, %p272
      %s275 = sadd.s32 %s274, 1
      %p278 = scmp.eq.s32.totalorder %s30, 1
      %p279 = scmp.ne.s32.totalorder %s274, %s276
      %p280 = scmp.eq.s32.totalorder %s30, 0
      %p281 = por %p279, %p280
      %p282 = scmp.ne.s32.totalorder %s274, %s276
      %p283 = scmp.eq.s32.totalorder %s35, 1
      %p284 = por %p282, %p283
      %p285 = scmp.ne.s32.totalorder %s276, %s277
      %p286 = scmp.eq.s32.totalorder %s35, 0
      %p287 = por %p285, %p286
      %p288 = scmp.ne.s32.totalorder %s276, %s277
      %p289 = scmp.eq.s32.totalorder %s36, 1
      %p290 = por %p288, %p289
      %p292 = scmp.ne.s32.totalorder %s277, %s291
      %p293 = scmp.eq.s32.totalorder %s36, 0
      %p294 = por %p292, %p293
      %s296 = sadd.s32 %s295, 1
      %p299 = scmp.eq.s32.totalorder %s30, 1
      %p300 = scmp.ne.s32.totalorder %s295, %s297
      %p301 = scmp.eq.s32.totalorder %s30, 0
      %p302 = por %p300, %p301
      %p303 = scmp.ne.s32.totalorder %s295, %s297
      %p304 = scmp.eq.s32.totalorder %s35, 1
      %p305 = por %p303, %p304
      %p306 = scmp.ne.s32.totalorder %s297, %s298
      %p307 = scmp.eq.s32.totalorder %s35, 0
      %p308 = por %p306, %p307
      %p309 = scmp.ne.s32.totalorder %s297, %s298
      %p310 = scmp.eq.s32.totalorder %s36, 1
      %p311 = por %p309, %p310
      %p313 = scmp.ne.s32.totalorder %s298, %s312
      %p314 = scmp.eq.s32.totalorder %s36, 0
      %p315 = por %p313, %p314
      %s317 = sadd.s32 %s316, 1
      %p320 = scmp.eq.s32.totalorder %s30, 1
      %p321 = scmp.ne.s32.totalorder %s316, %s318
      %p322 = scmp.eq.s32.totalorder %s30, 0
      %p323 = por %p321, %p322
      %p324 = scmp.ne.s32.totalorder %s316, %s318
      %p325 = scmp.eq.s32.totalorder %s35, 1
      %p326 = por %p324, %p325
      %p327 = scmp.ne.s32.totalorder %s318, %s319
      %p328 = scmp.eq.s32.totalorder %s35, 0
      %p329 = por %p327, %p328
      %p330 = scmp.ne.s32.totalorder %s318, %s319
      %p331 = scmp.eq.s32.totalorder %s36, 1
      %p332 = por %p330, %p331
      %p334 = scmp.ne.s32.totalorder %s319, %s333
      %p335 = scmp.eq.s32.totalorder %s36, 0
      %p336 = por %p334, %p335
      %s338 = sadd.s32 %s337, 1
      %p341 = scmp.eq.s32.totalorder %s30, 1
      %p342 = scmp.ne.s32.totalorder %s337, %s339
      %p343 = scmp.eq.s32.totalorder %s30, 0
      %p344 = por %p342, %p343
      %p345 = scmp.ne.s32.totalorder %s337, %s339
      %p346 = scmp.eq.s32.totalorder %s35, 1
      %p347 = por %p345, %p346
      %p348 = scmp.ne.s32.totalorder %s339, %s340
      %p349 = scmp.eq.s32.totalorder %s35, 0
      %p350 = por %p348, %p349
      %p351 = scmp.ne.s32.totalorder %s339, %s340
      %p352 = scmp.eq.s32.totalorder %s36, 1
      %p353 = por %p351, %p352
      %p355 = scmp.ne.s32.totalorder %s340, %s354
      %p356 = scmp.eq.s32.totalorder %s36, 0
      %p357 = por %p355, %p356
      %s359 = sadd.s32 %s358, 1
      %p362 = scmp.eq.s32.totalorder %s30, 1
      %p363 = scmp.ne.s32.totalorder %s358, %s360
      %p364 = scmp.eq.s32.totalorder %s30, 0
      %p365 = por %p363, %p364
      %p366 = scmp.ne.s32.totalorder %s358, %s360
      %p367 = scmp.eq.s32.totalorder %s35, 1
      %p368 = por %p366, %p367
      %p369 = scmp.ne.s32.totalorder %s360, %s361
      %p370 = scmp.eq.s32.totalorder %s35, 0
      %p371 = por %p369, %p370
      %p372 = scmp.ne.s32.totalorder %s360, %s361
      %p373 = scmp.eq.s32.totalorder %s36, 1
      %p374 = por %p372, %p373
      %p376 = scmp.ne.s32.totalorder %s361, %s375
      %p377 = scmp.eq.s32.totalorder %s36, 0
      %p378 = por %p376, %p377
      %s380 = sadd.s32 %s379, 1
      %p383 = scmp.eq.s32.totalorder %s30, 1
      %p384 = scmp.ne.s32.totalorder %s379, %s381
      %p385 = scmp.eq.s32.totalorder %s30, 0
      %p386 = por %p384, %p385
      %p387 = scmp.ne.s32.totalorder %s379, %s381
      %p388 = scmp.eq.s32.totalorder %s35, 1
      %p389 = por %p387, %p388
      %p390 = scmp.ne.s32.totalorder %s381, %s382
      %p391 = scmp.eq.s32.totalorder %s35, 0
      %p392 = por %p390, %p391
      %p393 = scmp.ne.s32.totalorder %s381, %s382
      %p394 = scmp.eq.s32.totalorder %s36, 1
      %p395 = por %p393, %p394
      %p397 = scmp.ne.s32.totalorder %s382, %s396
      %p398 = scmp.eq.s32.totalorder %s36, 0
      %p399 = por %p397, %p398
      %s401 = sadd.s32 %s400, 1
      %p404 = scmp.eq.s32.totalorder %s30, 1
      %p405 = scmp.ne.s32.totalorder %s400, %s402
      %p406 = scmp.eq.s32.totalorder %s30, 0
      %p407 = por %p405, %p406
      %p408 = scmp.ne.s32.totalorder %s400, %s402
      %p409 = scmp.eq.s32.totalorder %s35, 1
      %p410 = por %p408, %p409
      %p411 = scmp.ne.s32.totalorder %s402, %s403
      %p412 = scmp.eq.s32.totalorder %s35, 0
      %p413 = por %p411, %p412
      %p414 = scmp.ne.s32.totalorder %s402, %s403
      %p415 = scmp.eq.s32.totalorder %s36, 1
      %p416 = por %p414, %p415
      %p418 = scmp.ne.s32.totalorder %s403, %s417
      %p419 = scmp.eq.s32.totalorder %s36, 0
      %p420 = por %p418, %p419
      %s422 = sadd.s32 %s421, 1
      %p425 = scmp.eq.s32.totalorder %s30, 1
      %p426 = scmp.ne.s32.totalorder %s421, %s423
      %p427 = scmp.eq.s32.totalorder %s30, 0
      %p428 = por %p426, %p427
      %p429 = scmp.ne.s32.totalorder %s421, %s423
      %p430 = scmp.eq.s32.totalorder %s35, 1
      %p431 = por %p429, %p430
      %p432 = scmp.ne.s32.totalorder %s423, %s424
      %p433 = scmp.eq.s32.totalorder %s35, 0
      %p434 = por %p432, %p433
      %p435 = scmp.ne.s32.totalorder %s423, %s424
      %p436 = scmp.eq.s32.totalorder %s36, 1
      %p437 = por %p435, %p436
      %p439 = scmp.ne.s32.totalorder %s424, %s438
      %p440 = scmp.eq.s32.totalorder %s36, 0
      %p441 = por %p439, %p440
      %s443 = sadd.s32 %s442, 1
      %p446 = scmp.eq.s32.totalorder %s30, 1
      %p447 = scmp.ne.s32.totalorder %s442, %s444
      %p448 = scmp.eq.s32.totalorder %s30, 0
      %p449 = por %p447, %p448
      %p450 = scmp.ne.s32.totalorder %s442, %s444
      %p451 = scmp.eq.s32.totalorder %s35, 1
      %p452 = por %p450, %p451
      %p453 = scmp.ne.s32.totalorder %s444, %s445
      %p454 = scmp.eq.s32.totalorder %s35, 0
      %p455 = por %p453, %p454
      %p456 = scmp.ne.s32.totalorder %s444, %s445
      %p457 = scmp.eq.s32.totalorder %s36, 1
      %p458 = por %p456, %p457
      %p460 = scmp.ne.s32.totalorder %s445, %s459
      %p461 = scmp.eq.s32.totalorder %s36, 0
      %p462 = por %p460, %p461
      %s464 = sadd.s32 %s463, 1
      %p467 = scmp.eq.s32.totalorder %s30, 1
      %p468 = scmp.ne.s32.totalorder %s463, %s465
      %p469 = scmp.eq.s32.totalorder %s30, 0
      %p470 = por %p468, %p469
      %p471 = scmp.ne.s32.totalorder %s463, %s465
      %p472 = scmp.eq.s32.totalorder %s35, 1
      %p473 = por %p471, %p472
      %p474 = scmp.ne.s32.totalorder %s465, %s466
      %p475 = scmp.eq.s32.totalorder %s35, 0
      %p476 = por %p474, %p475
      %p477 = scmp.ne.s32.totalorder %s465, %s466
      %p478 = scmp.eq.s32.totalorder %s36, 1
      %p479 = por %p477, %p478
      %p481 = scmp.ne.s32.totalorder %s466, %s480
      %p482 = scmp.eq.s32.totalorder %s36, 0
      %p483 = por %p481, %p482
      %s484 = ssub.s32 %s30, %s37
      %p485 = scmp.eq.s32.totalorder %s484, 0
      %s487 = sadd.s32 %s486, 1
      %s488 = scalar_select %p485, %s486, %s487
      %p491 = pneg %p485
      %p492 = scmp.eq.s32.totalorder %s30, 1
      %p493 = por %p491, %p492
      %p494 = scmp.ne.s32.totalorder %s486, %s489
      %p495 = scmp.eq.s32.totalorder %s30, 0
      %p496 = por %p494, %p495
      %p497 = scmp.ne.s32.totalorder %s486, %s489
      %p498 = scmp.eq.s32.totalorder %s35, 1
      %p499 = por %p497, %p498
      %p500 = scmp.ne.s32.totalorder %s489, %s490
      %p501 = scmp.eq.s32.totalorder %s35, 0
      %p502 = por %p500, %p501
      %p503 = scmp.ne.s32.totalorder %s489, %s490
      %p504 = scmp.eq.s32.totalorder %s36, 1
      %p505 = por %p503, %p504
      %p507 = scmp.ne.s32.totalorder %s490, %s506
      %p508 = scmp.eq.s32.totalorder %s36, 0
      %p509 = por %p507, %p508
      %p510 = scmp.le.s32.totalorder 1, %s30
      %p511 = scmp.lt.s32.totalorder %s30, 3
      %p512 = pnand %p510, %p511
      %p513 = pneg %p512
      // Predicated region
      $region9: #{head_forward.3} parent=5 // pred_check
        _
      $region10: #{head_forward.3} parent=5 // pred_check_branch
        %515 = sbr.rel (%p512) target = $region12
      $region11: #{head_forward.3} parent=5 // pred_region
        %s516 = ssub.s32 %s30, 1
        // Predicated region
        $region13: #{head_forward.3} parent=11 // pred_check
          %p517 = pneg %p77
        $region14: #{head_forward.3} parent=11 // pred_check_branch
          %519 = sbr.rel (%p517) target = $region16
        $region15: #{head_forward.3} parent=11 // pred_region
          _
        $region16: #{head_forward.3} parent=11 // pred_fallthru
          _
        // Predicated region
        $region17: #{head_forward.3} parent=11 // pred_check
          %p520 = pneg %p98
        $region18: #{head_forward.3} parent=11 // pred_check_branch
          %522 = sbr.rel (%p520) target = $region20
        $region19: #{head_forward.3} parent=11 // pred_region
          _
        $region20: #{head_forward.3} parent=11 // pred_fallthru
          _
        // Predicated region
        $region21: #{head_forward.3} parent=11 // pred_check
          %p523 = pneg %p119
        $region22: #{head_forward.3} parent=11 // pred_check_branch
          %525 = sbr.rel (%p523) target = $region24
        $region23: #{head_forward.3} parent=11 // pred_region
          _
        $region24: #{head_forward.3} parent=11 // pred_fallthru
          _
        // Predicated region
        $region25: #{head_forward.3} parent=11 // pred_check
          %p526 = pneg %p140
        $region26: #{head_forward.3} parent=11 // pred_check_branch
          %528 = sbr.rel (%p526) target = $region28
        $region27: #{head_forward.3} parent=11 // pred_region
          _
        $region28: #{head_forward.3} parent=11 // pred_fallthru
          _
        // Predicated region
        $region29: #{head_forward.3} parent=11 // pred_check
          %p529 = pneg %p161
        $region30: #{head_forward.3} parent=11 // pred_check_branch
          %531 = sbr.rel (%p529) target = $region32
        $region31: #{head_forward.3} parent=11 // pred_region
          _
        $region32: #{head_forward.3} parent=11 // pred_fallthru
          _
        // Predicated region
        $region33: #{head_forward.3} parent=11 // pred_check
          %p532 = pneg %p182
        $region34: #{head_forward.3} parent=11 // pred_check_branch
          %534 = sbr.rel (%p532) target = $region36
        $region35: #{head_forward.3} parent=11 // pred_region
          _
        $region36: #{head_forward.3} parent=11 // pred_fallthru
          _
        // Predicated region
        $region37: #{head_forward.3} parent=11 // pred_check
          %p535 = pneg %p203
        $region38: #{head_forward.3} parent=11 // pred_check_branch
          %537 = sbr.rel (%p535) target = $region40
        $region39: #{head_forward.3} parent=11 // pred_region
          _
        $region40: #{head_forward.3} parent=11 // pred_fallthru
          _
        // Predicated region
        $region41: #{head_forward.3} parent=11 // pred_check
          %p538 = pneg %p224
        $region42: #{head_forward.3} parent=11 // pred_check_branch
          %540 = sbr.rel (%p538) target = $region44
        $region43: #{head_forward.3} parent=11 // pred_region
          _
        $region44: #{head_forward.3} parent=11 // pred_fallthru
          _
        // Predicated region
        $region45: #{head_forward.3} parent=11 // pred_check
          %p541 = pneg %p245
        $region46: #{head_forward.3} parent=11 // pred_check_branch
          %543 = sbr.rel (%p541) target = $region48
        $region47: #{head_forward.3} parent=11 // pred_region
          _
        $region48: #{head_forward.3} parent=11 // pred_fallthru
          _
        // Predicated region
        $region49: #{head_forward.3} parent=11 // pred_check
          %p544 = pneg %p266
        $region50: #{head_forward.3} parent=11 // pred_check_branch
          %546 = sbr.rel (%p544) target = $region52
        $region51: #{head_forward.3} parent=11 // pred_region
          _
        $region52: #{head_forward.3} parent=11 // pred_fallthru
          _
        // Predicated region
        $region53: #{head_forward.3} parent=11 // pred_check
          %p547 = pneg %p287
        $region54: #{head_forward.3} parent=11 // pred_check_branch
          %549 = sbr.rel (%p547) target = $region56
        $region55: #{head_forward.3} parent=11 // pred_region
          _
        $region56: #{head_forward.3} parent=11 // pred_fallthru
          _
        // Predicated region
        $region57: #{head_forward.3} parent=11 // pred_check
          %p550 = pneg %p308
        $region58: #{head_forward.3} parent=11 // pred_check_branch
          %552 = sbr.rel (%p550) target = $region60
        $region59: #{head_forward.3} parent=11 // pred_region
          _
        $region60: #{head_forward.3} parent=11 // pred_fallthru
          _
        // Predicated region
        $region61: #{head_forward.3} parent=11 // pred_check
          %p553 = pneg %p329
        $region62: #{head_forward.3} parent=11 // pred_check_branch
          %555 = sbr.rel (%p553) target = $region64
        $region63: #{head_forward.3} parent=11 // pred_region
          _
        $region64: #{head_forward.3} parent=11 // pred_fallthru
          _
        // Predicated region
        $region65: #{head_forward.3} parent=11 // pred_check
          %p556 = pneg %p350
        $region66: #{head_forward.3} parent=11 // pred_check_branch
          %558 = sbr.rel (%p556) target = $region68
        $region67: #{head_forward.3} parent=11 // pred_region
          _
        $region68: #{head_forward.3} parent=11 // pred_fallthru
          _
        // Predicated region
        $region69: #{head_forward.3} parent=11 // pred_check
          %p559 = pneg %p371
        $region70: #{head_forward.3} parent=11 // pred_check_branch
          %561 = sbr.rel (%p559) target = $region72
        $region71: #{head_forward.3} parent=11 // pred_region
          _
        $region72: #{head_forward.3} parent=11 // pred_fallthru
          _
        // Predicated region
        $region73: #{head_forward.3} parent=11 // pred_check
          %p562 = pneg %p392
        $region74: #{head_forward.3} parent=11 // pred_check_branch
          %564 = sbr.rel (%p562) target = $region76
        $region75: #{head_forward.3} parent=11 // pred_region
          _
        $region76: #{head_forward.3} parent=11 // pred_fallthru
          _
        // Predicated region
        $region77: #{head_forward.3} parent=11 // pred_check
          %p565 = pneg %p413
        $region78: #{head_forward.3} parent=11 // pred_check_branch
          %567 = sbr.rel (%p565) target = $region80
        $region79: #{head_forward.3} parent=11 // pred_region
          _
        $region80: #{head_forward.3} parent=11 // pred_fallthru
          _
        // Predicated region
        $region81: #{head_forward.3} parent=11 // pred_check
          %p568 = pneg %p434
        $region82: #{head_forward.3} parent=11 // pred_check_branch
          %570 = sbr.rel (%p568) target = $region84
        $region83: #{head_forward.3} parent=11 // pred_region
          _
        $region84: #{head_forward.3} parent=11 // pred_fallthru
          _
        // Predicated region
        $region85: #{head_forward.3} parent=11 // pred_check
          %p571 = pneg %p455
        $region86: #{head_forward.3} parent=11 // pred_check_branch
          %573 = sbr.rel (%p571) target = $region88
        $region87: #{head_forward.3} parent=11 // pred_region
          _
        $region88: #{head_forward.3} parent=11 // pred_fallthru
          _
        // Predicated region
        $region89: #{head_forward.3} parent=11 // pred_check
          %p574 = pneg %p476
        $region90: #{head_forward.3} parent=11 // pred_check_branch
          %576 = sbr.rel (%p574) target = $region92
        $region91: #{head_forward.3} parent=11 // pred_region
          _
        $region92: #{head_forward.3} parent=11 // pred_fallthru
          _
      $region12: #{head_forward.3} parent=5 // pred_fallthru
        _
      %p577 = scmp.lt.s32.totalorder %s30, 2
      // Predicated region
      $region93: #{head_forward.3} parent=5 // pred_check
        %p578 = pneg %p577
      $region94: #{head_forward.3} parent=5 // pred_check_branch
        %580 = sbr.rel (%p578) target = $region96
      $region95: #{head_forward.3} parent=5 // pred_region
        // Predicated region
        $region97: #{head_forward.3} parent=95 // pred_check
          %p581 = pneg %p50
        $region98: #{head_forward.3} parent=95 // pred_check_branch
          %583 = sbr.rel (%p581) target = $region100
        $region99: #{head_forward.3} parent=95 // pred_region
          %p584 = scmp.lt.s32.totalorder %s30, 1
          %s585 = scalar_select %p584, %s30, 1
          %s586 = smul.addr %s585, 8
          %s587 = smul.addr %s586, 4
          %s588 = scalar_lea.vmem %s0, %s587
        $region100: #{head_forward.3} parent=95 // pred_fallthru
          _
      $region96: #{head_forward.3} parent=5 // pred_fallthru
        _
      %p589 = scmp.le.s32.totalorder 1, %s30
      %p590 = scmp.lt.s32.totalorder %s30, 3
      %p591 = pnand %p589, %p590
      %p592 = pneg %p591
      // Predicated region
      $region101: #{head_forward.3} parent=5 // pred_check
        _
      $region102: #{head_forward.3} parent=5 // pred_check_branch
        %594 = sbr.rel (%p591) target = $region104
      $region103: #{head_forward.3} parent=5 // pred_region
        %s595 = ssub.s32 %s30, 1
        %p596 = scmp.lt.s32.totalorder %s35, 1
        %s597 = scalar_select %p596, %s35, 1
        %s598 = smul.addr %s597, 8
        %s599 = smul.addr %s598, 4
        %s600 = scalar_lea.vmem %s0, %s599
        %p601 = pneg %p56
        %p602 = pneg %p53
        %p603 = pneg %p77
        %p604 = pneg %p74
        %p605 = pneg %p98
        %p606 = pneg %p95
        %p607 = pneg %p119
        %p608 = pneg %p116
        %p609 = pneg %p140
        %p610 = pneg %p137
        %p611 = pneg %p161
        %p612 = pneg %p158
        %p613 = pneg %p182
        %p614 = pneg %p179
        %p615 = pneg %p203
        %p616 = pneg %p200
        %p617 = pneg %p224
        %p618 = pneg %p221
        %p619 = pneg %p245
        %p620 = pneg %p242
        %p621 = pneg %p266
        %p622 = pneg %p263
        %p623 = pneg %p287
        %p624 = pneg %p284
        %p625 = pneg %p308
        %p626 = pneg %p305
        %p627 = pneg %p329
        %p628 = pneg %p326
        %p629 = pneg %p350
        %p630 = pneg %p347
        %p631 = pneg %p371
        %p632 = pneg %p368
        %p633 = pneg %p392
        %p634 = pneg %p389
        %p635 = pneg %p413
        %p636 = pneg %p410
        %p637 = pneg %p434
        %p638 = pneg %p431
        %p639 = pneg %p455
        %p640 = pneg %p452
        %p641 = pneg %p476
        %p642 = pneg %p473
        %p643 = pneg %p502
        %p644 = pneg %p499
        %s645 = sand.u32 %s489, 1
        %s646 = scalar_lea.sflag [#allocation3], %s645
        %s647 = sand.u32 %s489, 1
        %s648 = smul.addr %s647, 128
        %s649 = scalar_lea.vmem [#allocation2], %s648
        %p650 = scmp.lt.s32.totalorder %s35, 1
        %s651 = scalar_select %p650, %s35, 1
        %s652 = smul.addr %s651, 8
        %s653 = smul.addr %s652, 4
        %s654 = scalar_lea.vmem %s0, %s653
        %v658 = vlaneseq
        %v659 = vshrl.u32 %v658, 7
        %v660 = vadd.s32 %v659, 8
        %v661 = vadd.s32 %v659, 16
        %v662 = vadd.s32 %v659, 24
        %v663 = vadd.s32 %v659, 32
        %v664 = vadd.s32 %v659, 40
        %v665 = vadd.s32 %v659, 48
        %v666 = vadd.s32 %v659, 56
        %vm667 = vcmp.lt.s32.totalorder %v659, 0
        %v668 = vsub.s32 0, %v659
        %v669 = vsel %vm667, %v668, %v659
        %v670 = vshrl.u32 %v669, 3
        %v671 = vand.u32 %v669, 7
        %v672 = vsub.s32 0, %v671
        %v673 = vsel %vm667, %v672, %v671
        %vm674 = vcmp.lt.s32.totalorder %v660, 0
        %v675 = vsub.s32 0, %v660
        %v676 = vsel %vm674, %v675, %v660
        %v677 = vshrl.u32 %v676, 3
        %v678 = vand.u32 %v676, 7
        %v679 = vsub.s32 0, %v678
        %v680 = vsel %vm674, %v679, %v678
        %vm681 = vcmp.lt.s32.totalorder %v661, 0
        %v682 = vsub.s32 0, %v661
        %v683 = vsel %vm681, %v682, %v661
        %v684 = vshrl.u32 %v683, 3
        %v685 = vand.u32 %v683, 7
        %v686 = vsub.s32 0, %v685
        %v687 = vsel %vm681, %v686, %v685
        %vm688 = vcmp.lt.s32.totalorder %v662, 0
        %v689 = vsub.s32 0, %v662
        %v690 = vsel %vm688, %v689, %v662
        %v691 = vshrl.u32 %v690, 3
        %v692 = vand.u32 %v690, 7
        %v693 = vsub.s32 0, %v692
        %v694 = vsel %vm688, %v693, %v692
        %vm695 = vcmp.lt.s32.totalorder %v663, 0
        %v696 = vsub.s32 0, %v663
        %v697 = vsel %vm695, %v696, %v663
        %v698 = vshrl.u32 %v697, 3
        %v699 = vand.u32 %v697, 7
        %v700 = vsub.s32 0, %v699
        %v701 = vsel %vm695, %v700, %v699
        %vm702 = vcmp.lt.s32.totalorder %v664, 0
        %v703 = vsub.s32 0, %v664
        %v704 = vsel %vm702, %v703, %v664
        %v705 = vshrl.u32 %v704, 3
        %v706 = vand.u32 %v704, 7
        %v707 = vsub.s32 0, %v706
        %v708 = vsel %vm702, %v707, %v706
        %vm709 = vcmp.lt.s32.totalorder %v665, 0
        %v710 = vsub.s32 0, %v665
        %v711 = vsel %vm709, %v710, %v665
        %v712 = vshrl.u32 %v711, 3
        %v713 = vand.u32 %v711, 7
        %v714 = vsub.s32 0, %v713
        %v715 = vsel %vm709, %v714, %v713
        %vm716 = vcmp.lt.s32.totalorder %v666, 0
        %v717 = vsub.s32 0, %v666
        %v718 = vsel %vm716, %v717, %v666
        %v719 = vshrl.u32 %v718, 3
        %v720 = vand.u32 %v718, 7
        %v721 = vsub.s32 0, %v720
        %v722 = vsel %vm716, %v721, %v720
        %vm723 = vcmp.ne.s32.totalorder %v673, 0
        %vm724 = vcmp.ne.s32.totalorder %v680, 0
        %vm725 = vcmp.ne.s32.totalorder %v687, 0
        %vm726 = vcmp.ne.s32.totalorder %v694, 0
        %vm727 = vcmp.ne.s32.totalorder %v701, 0
        %vm728 = vcmp.ne.s32.totalorder %v708, 0
        %vm729 = vcmp.ne.s32.totalorder %v715, 0
        %vm730 = vcmp.ne.s32.totalorder %v722, 0
        %vm731 = vcmp.lt.s32.totalorder %v673, 0
        %vm732 = vcmp.lt.s32.totalorder %v680, 0
        %vm733 = vcmp.lt.s32.totalorder %v687, 0
        %vm734 = vcmp.lt.s32.totalorder %v694, 0
        %vm735 = vcmp.lt.s32.totalorder %v701, 0
        %vm736 = vcmp.lt.s32.totalorder %v708, 0
        %vm737 = vcmp.lt.s32.totalorder %v715, 0
        %vm738 = vcmp.lt.s32.totalorder %v722, 0
        %vm739 = vmand %vm731, %vm723
        %vm740 = vmand %vm732, %vm724
        %vm741 = vmand %vm733, %vm725
        %vm742 = vmand %vm734, %vm726
        %vm743 = vmand %vm735, %vm727
        %vm744 = vmand %vm736, %vm728
        %vm745 = vmand %vm737, %vm729
        %vm746 = vmand %vm738, %vm730
        %v747 = vadd.s32 %v673, 8
        %v748 = vadd.s32 %v680, 8
        %v749 = vadd.s32 %v687, 8
        %v750 = vadd.s32 %v694, 8
        %v751 = vadd.s32 %v701, 8
        %v752 = vadd.s32 %v708, 8
        %v753 = vadd.s32 %v715, 8
        %v754 = vadd.s32 %v722, 8
        %v755 = vsel %vm739, %v747, %v673
        %v756 = vsel %vm740, %v748, %v680
        %v757 = vsel %vm741, %v749, %v687
        %v758 = vsel %vm742, %v750, %v694
        %v759 = vsel %vm743, %v751, %v701
        %v760 = vsel %vm744, %v752, %v708
        %v761 = vsel %vm745, %v753, %v715
        %v762 = vsel %vm746, %v754, %v722
        %vm763 = vcmp.gt.s32.totalorder %v755, 0
        %vm764 = vcmp.gt.s32.totalorder %v756, 0
        %vm765 = vcmp.gt.s32.totalorder %v757, 0
        %vm766 = vcmp.gt.s32.totalorder %v758, 0
        %vm767 = vcmp.gt.s32.totalorder %v759, 0
        %vm768 = vcmp.gt.s32.totalorder %v760, 0
        %vm769 = vcmp.gt.s32.totalorder %v761, 0
        %vm770 = vcmp.gt.s32.totalorder %v762, 0
        %vm771 = vcmp.lt.s32.totalorder %v755, 7
        %vm772 = vcmp.lt.s32.totalorder %v756, 7
        %vm773 = vcmp.lt.s32.totalorder %v757, 7
        %vm774 = vcmp.lt.s32.totalorder %v758, 7
        %vm775 = vcmp.lt.s32.totalorder %v759, 7
        %vm776 = vcmp.lt.s32.totalorder %v760, 7
        %vm777 = vcmp.lt.s32.totalorder %v761, 7
        %vm778 = vcmp.lt.s32.totalorder %v762, 7
        %v779 = vld [vmem:[%s654] sm:$0xf]
        %v780 = vld [vmem:[%s654 + $0x4] sm:$0xf]
        %v781 = vld [vmem:[%s654 + $0x8] sm:$0xf]
        %v782 = vld [vmem:[%s654 + $0xc] sm:$0xf]
        %v783 = vld [vmem:[%s654 + $0x10] sm:$0xf]
        %v784 = vld [vmem:[%s654 + $0x14] sm:$0xf]
        %v785 = vld [vmem:[%s654 + $0x18] sm:$0xf]
        %v786 = vld [vmem:[%s654 + $0x1c] sm:$0xf]
        %v787 = vld [vmem:[%s1] sm:$0xf]
        %v788 = vld [vmem:[%s1 + $0x4] sm:$0xf]
        %v789 = vld [vmem:[%s1 + $0x8] sm:$0xf]
        %v790 = vld [vmem:[%s1 + $0xc] sm:$0xf]
        %v791 = vld [vmem:[%s1 + $0x10] sm:$0xf]
        %v792 = vld [vmem:[%s1 + $0x14] sm:$0xf]
        %v793 = vld [vmem:[%s1 + $0x18] sm:$0xf]
        %v794 = vld [vmem:[%s1 + $0x1c] sm:$0xf]
        %v795 = vld [vmem:[%s2] sm:$0x1]
        %v797 = vlaneseq
        %v798 = vshrl.u32 %v797, 7
        %v799 = vsub.s32 0, %v798
        %v800 = vrot.slane %v795, %v799
        %v810 = vunpack.c.l.b16 %v779
        %v811 = vunpack.c.l.b16 %v780
        %v812 = vunpack.c.l.b16 %v781
        %v813 = vunpack.c.l.b16 %v782
        %v814 = vunpack.c.l.b16 %v783
        %v815 = vunpack.c.l.b16 %v784
        %v816 = vunpack.c.l.b16 %v785
        %v817 = vunpack.c.l.b16 %v786
        %v818 = vpack.c.b16 %v811, %v810
        %v819 = vpack.c.b16 %v813, %v812
        %v820 = vpack.c.b16 %v815, %v814
        %v821 = vpack.c.b16 %v817, %v816
        %v830 = vunpack.c.l.b16 %v787
        %v831 = vunpack.c.l.b16 %v788
        %v832 = vunpack.c.l.b16 %v789
        %v833 = vunpack.c.l.b16 %v790
        %v834 = vunpack.c.l.b16 %v791
        %v835 = vunpack.c.l.b16 %v792
        %v836 = vunpack.c.l.b16 %v793
        %v837 = vunpack.c.l.b16 %v794
        %v838 = vpack.c.b16 %v831, %v830
        %v839 = vpack.c.b16 %v833, %v832
        %v840 = vpack.c.b16 %v835, %v834
        %v841 = vpack.c.b16 %v837, %v836
        %vm846 = vcmask 523264
        %v848 = vsel %vm846, %v818, 0
        %v851 = vsel %vm846, %v819, 0
        %v854 = vsel %vm846, %v820, 0
        %v857 = vsel %vm846, %v821, 0
        %859 = vmatprep.subr.bf16.mxu0 0
        %860 = vmatpush1.bf16.msra.mxu0 %v838
        %861 = vmatprep.subr.bf16.mxu0 0
        %862 = vmatpush1.bf16.msra.mxu0 %v839
        %863 = vmatprep.subr.bf16.mxu0 0
        %864 = vmatpush1.bf16.msra.mxu0 %v840
        %865 = vmatprep.subr.bf16.mxu0 0
        %866 = vmatpush1.bf16.msra.mxu0 %v841
        %867 = vmatprep.subr.bf16.mxu0 0
        %868 = vmatpush1.bf16.msra.mxu0 0
        %869 = vmatprep.subr.bf16.mxu0 0
        %870 = vmatpush1.bf16.msra.mxu0 0
        %871 = vmatprep.subr.bf16.mxu0 0
        %872 = vmatpush1.bf16.msra.mxu0 0
        %873 = vmatprep.subr.bf16.mxu0 0
        %874 = vmatpush1.bf16.msra.mxu0 0
        %875 = vmatprep.subr.bf16.mxu0 0
        %876 = vmatpush1.bf16.msra.mxu0 0
        %877 = vmatprep.subr.bf16.mxu0 0
        %878 = vmatpush1.bf16.msra.mxu0 0
        %879 = vmatprep.subr.bf16.mxu0 0
        %880 = vmatpush1.bf16.msra.mxu0 0
        %881 = vmatprep.subr.bf16.mxu0 0
        %882 = vmatpush1.bf16.msra.mxu0 0
        %883 = vmatprep.subr.bf16.mxu0 0
        %884 = vmatpush1.bf16.msra.mxu0 0
        %885 = vmatprep.subr.bf16.mxu0 0
        %886 = vmatpush1.bf16.msra.mxu0 0
        %887 = vmatprep.subr.bf16.mxu0 0
        %888 = vmatpush1.bf16.msra.mxu0 0
        %889 = vmatprep.subr.bf16.mxu0 0
        %890 = vmatpush1.bf16.msra.mxu0 0
        %891 = vmatprep.mubr.bf16.mxu0 0
        %892 = vmatmul.mubr.bf16.gmra.mrb[0].mxu0 %v848
        %v893 = vpop.f32.mrb[0].mxu0
        %v894 = vadd.f32 %v800, %v893
        %v895 = vpop.f32.mrb[0].mxu0
        %v896 = vpop.f32.mrb[0].mxu0
        %v897 = vadd.f32 %v800, %v896
        %v898 = vpop.f32.mrb[0].mxu0
        %899 = vmatprep.mubr.bf16.mxu0 0
        %900 = vmatmul.mubr.bf16.gmra.mrb[0].mxu0 %v851
        %v901 = vpop.f32.mrb[0].mxu0
        %v902 = vadd.f32 %v800, %v901
        %v903 = vpop.f32.mrb[0].mxu0
        %v904 = vpop.f32.mrb[0].mxu0
        %v905 = vadd.f32 %v800, %v904
        %v906 = vpop.f32.mrb[0].mxu0
        %907 = vmatprep.mubr.bf16.mxu0 0
        %908 = vmatmul.mubr.bf16.gmra.mrb[0].mxu0 %v854
        %v909 = vpop.f32.mrb[0].mxu0
        %v910 = vadd.f32 %v800, %v909
        %v911 = vpop.f32.mrb[0].mxu0
        %v912 = vpop.f32.mrb[0].mxu0
        %v913 = vadd.f32 %v800, %v912
        %v914 = vpop.f32.mrb[0].mxu0
        %915 = vmatprep.mubr.bf16.mxu0 0
        %916 = vmatmul.mubr.bf16.gmra.mrb[0].mxu0 %v857
        %v917 = vpop.f32.mrb[0].mxu0
        %v918 = vadd.f32 %v800, %v917
        %v919 = vpop.f32.mrb[0].mxu0
        %v920 = vpop.f32.mrb[0].mxu0
        %v921 = vadd.f32 %v800, %v920
        %v922 = vpop.f32.mrb[0].mxu0
        %923 = vdwg.mxu0
        %v924 = vmax.f32 %v894, 0.0
        %v925 = vmax.f32 %v897, 0.0
        %v926 = vmax.f32 %v902, 0.0
        %v927 = vmax.f32 %v905, 0.0
        %v928 = vmax.f32 %v910, 0.0
        %v929 = vmax.f32 %v913, 0.0
        %v930 = vmax.f32 %v918, 0.0
        %v931 = vmax.f32 %v921, 0.0
        %v932 = vpack.c.bf16 %v925, %v924
        %v933 = vpack.c.bf16 %v927, %v926
        %v934 = vpack.c.bf16 %v929, %v928
        %v935 = vpack.c.bf16 %v931, %v930
        %vm936 = vsmask.f32 4352
        %v938 = vshrl.u32 %v932, 16
        %v940 = vrot.slane %v938, 3
        %v941 = vshll.u32 %v932, 16
        %v943 = vrot.slane %v941, 4
        %v944 = vor.u32 %v940, %v943
        %v946 = vshrl.u32 %v933, 16
        %v948 = vrot.slane %v946, 3
        %v949 = vshll.u32 %v933, 16
        %v951 = vrot.slane %v949, 4
        %v952 = vor.u32 %v948, %v951
        %v953 = vsel %vm936, %v944, %v952
        %v955 = vshrl.u32 %v934, 16
        %v957 = vrot.slane %v955, 3
        %v958 = vshll.u32 %v934, 16
        %v960 = vrot.slane %v958, 4
        %v961 = vor.u32 %v957, %v960
        %v962 = vsel %vm936, %v952, %v961
        %v964 = vshrl.u32 %v935, 16
        %v966 = vrot.slane %v964, 3
        %v967 = vshll.u32 %v935, 16
        %v969 = vrot.slane %v967, 4
        %v970 = vor.u32 %v966, %v969
        %v971 = vsel %vm936, %v961, %v970
        %vm977 = vcmask 1044480
        %vm978 = vmand %vm977, %vm936
        %v979 = vsel %vm978, 0, %v944
        %v980 = vsel %vm978, %v970, 0
        %v981 = vsel %vm763, 1, 0
        %v982 = vsel %vm764, 1, 0
        %v983 = vsel %vm765, 1, 0
        %v984 = vsel %vm766, 1, 0
        %v985 = vsel %vm767, 1, 0
        %v986 = vsel %vm768, 1, 0
        %v987 = vsel %vm769, 1, 0
        %v988 = vsel %vm770, 1, 0
        %vm989 = vcmp.eq.s32.totalorder %v981, 1
        %vm990 = vcmp.eq.s32.totalorder %v982, 1
        %vm991 = vcmp.eq.s32.totalorder %v983, 1
        %vm992 = vcmp.eq.s32.totalorder %v984, 1
        %vm993 = vcmp.eq.s32.totalorder %v985, 1
        %vm994 = vcmp.eq.s32.totalorder %v986, 1
        %vm995 = vcmp.eq.s32.totalorder %v987, 1
        %vm996 = vcmp.eq.s32.totalorder %v988, 1
        %vm997 = vmpackc.low %vm989, %vm989
        %vm998 = vmpackc.low %vm990, %vm990
        %vm999 = vmpackc.low %vm991, %vm991
        %vm1000 = vmpackc.low %vm992, %vm992
        %vm1001 = vmpackc.low %vm993, %vm993
        %vm1002 = vmpackc.low %vm994, %vm994
        %vm1003 = vmpackc.low %vm995, %vm995
        %vm1004 = vmpackc.low %vm996, %vm996
        %v1005 = vsel %vm997, 65537, 0
        %v1006 = vsel %vm998, 65537, 0
        %v1007 = vsel %vm999, 65537, 0
        %v1008 = vsel %vm1000, 65537, 0
        %v1009 = vsel %vm1001, 65537, 0
        %v1010 = vsel %vm1002, 65537, 0
        %v1011 = vsel %vm1003, 65537, 0
        %v1012 = vsel %vm1004, 65537, 0
        %v1013 = vunpack.c.l.b16 %v1005
        %v1014 = vunpack.c.l.b16 %v1006
        %v1015 = vunpack.c.l.b16 %v1007
        %v1016 = vunpack.c.l.b16 %v1008
        %v1017 = vunpack.c.l.b16 %v1009
        %v1018 = vunpack.c.l.b16 %v1010
        %v1019 = vunpack.c.l.b16 %v1011
        %v1020 = vunpack.c.l.b16 %v1012
        %v1021 = vpack.c.b16 %v1014, %v1013
        %v1022 = vpack.c.b16 %v1016, %v1015
        %v1023 = vpack.c.b16 %v1018, %v1017
        %v1024 = vpack.c.b16 %v1020, %v1019
        %vm1025 = vcmp.ne.s16.totalorder %v1021, 0
        %vm1026 = vcmp.ne.s16.totalorder %v1022, 0
        %vm1027 = vcmp.ne.s16.totalorder %v1023, 0
        %vm1028 = vcmp.ne.s16.totalorder %v1024, 0
        %v1029 = vsel %vm1025, %v979, 0
        %v1030 = vsel %vm1026, %v953, 0
        %v1031 = vsel %vm1027, %v962, 0
        %v1032 = vsel %vm1028, %v971, 0
        %v1033 = vsel %vm771, 1, 0
        %v1034 = vsel %vm772, 1, 0
        %v1035 = vsel %vm773, 1, 0
        %v1036 = vsel %vm774, 1, 0
        %v1037 = vsel %vm775, 1, 0
        %v1038 = vsel %vm776, 1, 0
        %v1039 = vsel %vm777, 1, 0
        %v1040 = vsel %vm778, 1, 0
        %vm1041 = vcmp.eq.s32.totalorder %v1033, 1
        %vm1042 = vcmp.eq.s32.totalorder %v1034, 1
        %vm1043 = vcmp.eq.s32.totalorder %v1035, 1
        %vm1044 = vcmp.eq.s32.totalorder %v1036, 1
        %vm1045 = vcmp.eq.s32.totalorder %v1037, 1
        %vm1046 = vcmp.eq.s32.totalorder %v1038, 1
        %vm1047 = vcmp.eq.s32.totalorder %v1039, 1
        %vm1048 = vcmp.eq.s32.totalorder %v1040, 1
        %vm1049 = vmpackc.low %vm1041, %vm1041
        %vm1050 = vmpackc.low %vm1042, %vm1042
        %vm1051 = vmpackc.low %vm1043, %vm1043
        %vm1052 = vmpackc.low %vm1044, %vm1044
        %vm1053 = vmpackc.low %vm1045, %vm1045
        %vm1054 = vmpackc.low %vm1046, %vm1046
        %vm1055 = vmpackc.low %vm1047, %vm1047
        %vm1056 = vmpackc.low %vm1048, %vm1048
        %v1057 = vsel %vm1049, 65537, 0
        %v1058 = vsel %vm1050, 65537, 0
        %v1059 = vsel %vm1051, 65537, 0
        %v1060 = vsel %vm1052, 65537, 0
        %v1061 = vsel %vm1053, 65537, 0
        %v1062 = vsel %vm1054, 65537, 0
        %v1063 = vsel %vm1055, 65537, 0
        %v1064 = vsel %vm1056, 65537, 0
        %v1065 = vunpack.c.l.b16 %v1057
        %v1066 = vunpack.c.l.b16 %v1058
        %v1067 = vunpack.c.l.b16 %v1059
        %v1068 = vunpack.c.l.b16 %v1060
        %v1069 = vunpack.c.l.b16 %v1061
        %v1070 = vunpack.c.l.b16 %v1062
        %v1071 = vunpack.c.l.b16 %v1063
        %v1072 = vunpack.c.l.b16 %v1064
        %v1073 = vpack.c.b16 %v1066, %v1065
        %v1074 = vpack.c.b16 %v1068, %v1067
        %v1075 = vpack.c.b16 %v1070, %v1069
        %v1076 = vpack.c.b16 %v1072, %v1071
        %vm1077 = vcmask 1040384
        %v1078 = vrot.slane %v1073, 7
        %v1079 = vrot.slane %v1074, 7
        %v1080 = vsel %vm1077, %v1078, %v1079
        %v1081 = vrot.slane %v1075, 7
        %v1082 = vsel %vm1077, %v1079, %v1081
        %v1083 = vrot.slane %v1076, 7
        %v1084 = vsel %vm1077, %v1081, %v1083
        %vm1085 = vcmp.ne.s16.totalorder %v1078, 0
        %vm1086 = vcmp.ne.s16.totalorder %v1080, 0
        %vm1087 = vcmp.ne.s16.totalorder %v1082, 0
        %vm1088 = vcmp.ne.s16.totalorder %v1084, 0
        %vm1089 = vcmp.ne.s16.totalorder %v1083, 0
        %v1090 = vsel %vm1085, %v979, 0
        %v1091 = vsel %vm1086, %v953, 0
        %v1092 = vsel %vm1087, %v962, 0
        %v1093 = vsel %vm1088, %v971, 0
        %v1094 = vsel %vm1089, %v980, 0
        %v1095 = vpack.c.b16 %v1013, %v1013
        %v1096 = vpack.c.b16 %v1015, %v1014
        %v1097 = vpack.c.b16 %v1017, %v1016
        %v1098 = vpack.c.b16 %v1019, %v1018
        %v1099 = vpack.c.b16 %v1020, %v1020
        %vm1100 = vcmp.ne.s16.totalorder %v1095, 0
        %vm1101 = vcmp.ne.s16.totalorder %v1096, 0
        %vm1102 = vcmp.ne.s16.totalorder %v1097, 0
        %vm1103 = vcmp.ne.s16.totalorder %v1098, 0
        %vm1104 = vcmp.ne.s16.totalorder %v1099, 0
        %v1105 = vsel %vm1100, %v979, 0
        %v1106 = vsel %vm1101, %v953, 0
        %v1107 = vsel %vm1102, %v962, 0
        %v1108 = vsel %vm1103, %v971, 0
        %v1109 = vsel %vm1104, %v980, 0
        %v1110 = vrot.slane %v1073, 3
        %v1111 = vrot.slane %v1074, 3
        %v1112 = vsel %vm977, %v1110, %v1111
        %v1113 = vrot.slane %v1075, 3
        %v1114 = vsel %vm977, %v1111, %v1113
        %v1115 = vrot.slane %v1076, 3
        %v1116 = vsel %vm977, %v1113, %v1115
        %vm1117 = vcmp.ne.s16.totalorder %v1110, 0
        %vm1118 = vcmp.ne.s16.totalorder %v1112, 0
        %vm1119 = vcmp.ne.s16.totalorder %v1114, 0
        %vm1120 = vcmp.ne.s16.totalorder %v1116, 0
        %vm1121 = vcmp.ne.s16.totalorder %v1115, 0
        %v1122 = vsel %vm1117, %v979, 0
        %v1123 = vsel %vm1118, %v953, 0
        %v1124 = vsel %vm1119, %v962, 0
        %v1125 = vsel %vm1120, %v971, 0
        %v1126 = vsel %vm1121, %v980, 0
        %v1127 = vsel %vm1025, %v953, 0
        %v1128 = vsel %vm1026, %v962, 0
        %v1129 = vsel %vm1027, %v971, 0
        %v1130 = vsel %vm1028, %v980, 0
        %v1131 = vsel %vm1085, %v953, 0
        %v1132 = vsel %vm1086, %v962, 0
        %v1133 = vsel %vm1087, %v971, 0
        %v1134 = vsel %vm1088, %v980, 0
        %vm1135 = vsmask.f32 7424
        %v1137 = vshrl.u32 %v979, 16
        %v1139 = vshll.u32 %v979, 16
        %v1141 = vrot.slane %v1139, 1
        %v1142 = vor.u32 %v1137, %v1141
        %v1144 = vshll.u32 %v953, 16
        %v1146 = vrot.slane %v1144, 1
        %v1147 = vsel %vm1135, %v1142, %v1146
        %v1148 = vshrl.u32 %v953, 16
        %v1150 = vor.u32 %v1148, %v1146
        %v1152 = vshll.u32 %v962, 16
        %v1154 = vrot.slane %v1152, 1
        %v1155 = vsel %vm1135, %v1150, %v1154
        %v1156 = vshrl.u32 %v962, 16
        %v1158 = vor.u32 %v1156, %v1154
        %v1160 = vshll.u32 %v971, 16
        %v1162 = vrot.slane %v1160, 1
        %v1163 = vsel %vm1135, %v1158, %v1162
        %v1164 = vshrl.u32 %v971, 16
        %v1166 = vor.u32 %v1164, %v1162
        %v1168 = vshll.u32 %v980, 16
        %v1170 = vrot.slane %v1168, 1
        %v1171 = vsel %vm1135, %v1166, %v1170
        %1172 = vrot.lane.b32.xlu0 %v1147, 64
        %v1173 = vpop.permute.xlu0 %1172
        %1174 = vrot.lane.b32.xlu0 %v1155, 64
        %v1175 = vpop.permute.xlu0 %1174
        %1176 = vrot.lane.b32.xlu0 %v1163, 64
        %v1177 = vpop.permute.xlu0 %1176
        %1178 = vrot.lane.b32.xlu0 %v1171, 64
        %v1179 = vpop.permute.xlu0 %1178
        %vm1185 = vcmask 1046528
        %v1186 = vrot.slane %v1090, 1
        %v1187 = vrot.slane %v1091, 1
        %v1188 = vsel %vm1185, %v1186, %v1187
        %v1189 = vrot.slane %v1092, 1
        %v1190 = vsel %vm1185, %v1187, %v1189
        %v1191 = vrot.slane %v1093, 1
        %v1192 = vsel %vm1185, %v1189, %v1191
        %v1193 = vrot.slane %v1094, 1
        %v1194 = vsel %vm1185, %v1191, %v1193
        %vm1200 = vcmask 1043456
        %v1201 = vrot.slane %v1105, 4
        %v1202 = vrot.slane %v1106, 4
        %v1203 = vsel %vm1200, %v1201, %v1202
        %v1204 = vrot.slane %v1107, 4
        %v1205 = vsel %vm1200, %v1202, %v1204
        %v1206 = vrot.slane %v1108, 4
        %v1207 = vsel %vm1200, %v1204, %v1206
        %v1208 = vrot.slane %v1109, 4
        %v1209 = vsel %vm1200, %v1206, %v1208
        %1210 = vrot.lane.b32.xlu0 %v1203, 64
        %v1211 = vpop.permute.xlu0 %1210
        %1212 = vrot.lane.b32.xlu0 %v1205, 64
        %v1213 = vpop.permute.xlu0 %1212
        %1214 = vrot.lane.b32.xlu0 %v1207, 64
        %v1215 = vpop.permute.xlu0 %1214
        %1216 = vrot.lane.b32.xlu0 %v1209, 64
        %v1217 = vpop.permute.xlu0 %1216
        %vm1218 = vsmask.f32 3328
        %v1219 = vrot.slane %v1137, 4
        %v1220 = vrot.slane %v1139, 5
        %v1221 = vor.u32 %v1219, %v1220
        %v1222 = vrot.slane %v1148, 4
        %v1223 = vrot.slane %v1144, 5
        %v1224 = vor.u32 %v1222, %v1223
        %v1225 = vsel %vm1218, %v1221, %v1224
        %v1226 = vrot.slane %v1156, 4
        %v1227 = vrot.slane %v1152, 5
        %v1228 = vor.u32 %v1226, %v1227
        %v1229 = vsel %vm1218, %v1224, %v1228
        %v1230 = vrot.slane %v1164, 4
        %v1231 = vrot.slane %v1160, 5
        %v1232 = vor.u32 %v1230, %v1231
        %v1233 = vsel %vm1218, %v1228, %v1232
        %v1234 = vshrl.u32 %v980, 16
        %v1236 = vrot.slane %v1234, 4
        %v1237 = vrot.slane %v1168, 5
        %v1238 = vor.u32 %v1236, %v1237
        %v1239 = vsel %vm1218, %v1232, %v1238
        %vm1245 = vcmask 1042432
        %v1246 = vrot.slane %v1122, 5
        %v1247 = vrot.slane %v1123, 5
        %v1248 = vsel %vm1245, %v1246, %v1247
        %v1249 = vrot.slane %v1124, 5
        %v1250 = vsel %vm1245, %v1247, %v1249
        %v1251 = vrot.slane %v1125, 5
        %v1252 = vsel %vm1245, %v1249, %v1251
        %v1253 = vrot.slane %v1126, 5
        %v1254 = vsel %vm1245, %v1251, %v1253
        %1255 = vrot.lane.b32.xlu0 %v1248, 64
        %v1256 = vpop.permute.xlu0 %1255
        %1257 = vrot.lane.b32.xlu0 %v1250, 64
        %v1258 = vpop.permute.xlu0 %1257
        %1259 = vrot.lane.b32.xlu0 %v1252, 64
        %v1260 = vpop.permute.xlu0 %1259
        %1261 = vrot.lane.b32.xlu0 %v1254, 64
        %v1262 = vpop.permute.xlu0 %1261
        %v1263 = vor.u32 %v1234, %v1170
        %v1265 = vshll.u32 0, 16
        %v1267 = vrot.slane %v1265, 1
        %v1268 = vsel %vm1135, %v1263, %v1267
        %1269 = vrot.lane.b32.xlu0 %v1268, 64
        %v1270 = vpop.permute.xlu0 %1269
        %v1276 = vrot.slane %v1131, 1
        %v1277 = vrot.slane %v1132, 1
        %v1278 = vsel %vm1185, %v1276, %v1277
        %v1279 = vrot.slane %v1133, 1
        %v1280 = vsel %vm1185, %v1277, %v1279
        %v1281 = vrot.slane %v1134, 1
        %v1282 = vsel %vm1185, %v1279, %v1281
        %v1283 = vrot.slane 0, 1
        %v1284 = vsel %vm1185, %v1281, %v1283
        %v1287 = vsel %vm846, %v1029, %v1173
        %v1291 = vsel %vm846, %v1030, %v1175
        %v1295 = vsel %vm846, %v1031, %v1177
        %v1299 = vsel %vm846, %v1032, %v1179
        %v1303 = vsel %vm846, %v1188, %v1211
        %v1307 = vsel %vm846, %v1190, %v1213
        %v1311 = vsel %vm846, %v1192, %v1215
        %v1315 = vsel %vm846, %v1194, %v1217
        %v1319 = vsel %vm846, %v1225, %v1256
        %v1323 = vsel %vm846, %v1229, %v1258
        %v1327 = vsel %vm846, %v1233, %v1260
        %v1331 = vsel %vm846, %v1239, %v1262
        %v1334 = vsel %vm846, %v1127, %v1175
        %v1337 = vsel %vm846, %v1128, %v1177
        %v1340 = vsel %vm846, %v1129, %v1179
        %v1344 = vsel %vm846, %v1130, %v1270
        %v1346 = vld [vmem:[%s3] sm:$0xf]
        %v1347 = vld [vmem:[%s3 + $0x4] sm:$0xf]
        %v1348 = vld [vmem:[%s3 + $0x8] sm:$0xf]
        %v1349 = vld [vmem:[%s3 + $0xc] sm:$0xf]
        %v1350 = vld [vmem:[%s3 + $0x10] sm:$0xf]
        %v1351 = vld [vmem:[%s3 + $0x14] sm:$0xf]
        %v1352 = vld [vmem:[%s3 + $0x18] sm:$0xf]
        %v1353 = vld [vmem:[%s3 + $0x1c] sm:$0xf]
        %v1354 = vld [vmem:[%s3 + $0x20] sm:$0xf]
        %v1355 = vld [vmem:[%s3 + $0x24] sm:$0xf]
        %v1356 = vld [vmem:[%s3 + $0x28] sm:$0xf]
        %v1357 = vld [vmem:[%s3 + $0x2c] sm:$0xf]
        %v1358 = vld [vmem:[%s3 + $0x30] sm:$0xf]
        %v1359 = vld [vmem:[%s3 + $0x34] sm:$0xf]
        %v1360 = vld [vmem:[%s3 + $0x38] sm:$0xf]
        %v1361 = vld [vmem:[%s3 + $0x3c] sm:$0xf]
        %v1362 = vld [vmem:[%s3 + $0x40] sm:$0xf]
        %v1363 = vld [vmem:[%s3 + $0x44] sm:$0xf]
        %v1364 = vld [vmem:[%s3 + $0x48] sm:$0xf]
        %v1365 = vld [vmem:[%s3 + $0x4c] sm:$0xf]
        %v1366 = vld [vmem:[%s3 + $0x50] sm:$0xf]
        %v1367 = vld [vmem:[%s3 + $0x54] sm:$0xf]
        %v1368 = vld [vmem:[%s3 + $0x58] sm:$0xf]
        %v1369 = vld [vmem:[%s3 + $0x5c] sm:$0xf]
        %v1370 = vld [vmem:[%s3 + $0x60] sm:$0xf]
        %v1371 = vld [vmem:[%s3 + $0x64] sm:$0xf]
        %v1372 = vld [vmem:[%s3 + $0x68] sm:$0xf]
        %v1373 = vld [vmem:[%s3 + $0x6c] sm:$0xf]
        %v1374 = vld [vmem:[%s3 + $0x70] sm:$0xf]
        %v1375 = vld [vmem:[%s3 + $0x74] sm:$0xf]
        %v1376 = vld [vmem:[%s3 + $0x78] sm:$0xf]
        %v1377 = vld [vmem:[%s3 + $0x7c] sm:$0xf]
        %v1378 = vld [vmem:[%s3 + $0x80] sm:$0xf]
        %v1379 = vld [vmem:[%s3 + $0x84] sm:$0xf]
        %v1380 = vld [vmem:[%s3 + $0x88] sm:$0xf]
        %v1381 = vld [vmem:[%s3 + $0x8c] sm:$0xf]
        %v1382 = vld [vmem:[%s3 + $0x90] sm:$0xf]
        %v1383 = vld [vmem:[%s3 + $0x94] sm:$0xf]
        %v1384 = vld [vmem:[%s3 + $0x98] sm:$0xf]
        %v1385 = vld [vmem:[%s3 + $0x9c] sm:$0xf]
        %v1386 = vld [vmem:[%s3 + $0xa0] sm:$0xf]
        %v1387 = vld [vmem:[%s3 + $0xa4] sm:$0xf]
        %v1388 = vld [vmem:[%s3 + $0xa8] sm:$0xf]
        %v1389 = vld [vmem:[%s3 + $0xac] sm:$0xf]
        %v1390 = vld [vmem:[%s3 + $0xb0] sm:$0xf]
        %v1391 = vld [vmem:[%s3 + $0xb4] sm:$0xf]
        %v1392 = vld [vmem:[%s3 + $0xb8] sm:$0xf]
        %v1393 = vld [vmem:[%s3 + $0xbc] sm:$0xf]
        %v1394 = vld [vmem:[%s3 + $0xc0] sm:$0xf]
        %v1395 = vld [vmem:[%s3 + $0xc4] sm:$0xf]
        %v1396 = vld [vmem:[%s3 + $0xc8] sm:$0xf]
        %v1397 = vld [vmem:[%s3 + $0xcc] sm:$0xf]
        %v1398 = vld [vmem:[%s3 + $0xd0] sm:$0xf]
        %v1399 = vld [vmem:[%s3 + $0xd4] sm:$0xf]
        %v1400 = vld [vmem:[%s3 + $0xd8] sm:$0xf]
        %v1401 = vld [vmem:[%s3 + $0xdc] sm:$0xf]
        %v1402 = vld [vmem:[%s3 + $0xe0] sm:$0xf]
        %v1403 = vld [vmem:[%s3 + $0xe4] sm:$0xf]
        %v1404 = vld [vmem:[%s3 + $0xe8] sm:$0xf]
        %v1405 = vld [vmem:[%s3 + $0xec] sm:$0xf]
        %v1406 = vld [vmem:[%s3 + $0xf0] sm:$0xf]
        %v1407 = vld [vmem:[%s3 + $0xf4] sm:$0xf]
        %v1408 = vld [vmem:[%s3 + $0xf8] sm:$0xf]
        %v1409 = vld [vmem:[%s3 + $0xfc] sm:$0xf]
        %v1410 = vld [vmem:[%s3 + $0x100] sm:$0xf]
        %v1411 = vld [vmem:[%s3 + $0x104] sm:$0xf]
        %v1412 = vld [vmem:[%s3 + $0x108] sm:$0xf]
        %v1413 = vld [vmem:[%s3 + $0x10c] sm:$0xf]
        %v1414 = vld [vmem:[%s3 + $0x110] sm:$0xf]
        %v1415 = vld [vmem:[%s3 + $0x114] sm:$0xf]
        %v1416 = vld [vmem:[%s3 + $0x118] sm:$0xf]
        %v1417 = vld [vmem:[%s3 + $0x11c] sm:$0xf]
        %v1418 = vld [vmem:[%s4] sm:$0x1]
        %v1420 = vlaneseq
        %v1421 = vshrl.u32 %v1420, 7
        %v1422 = vsub.s32 0, %v1421
        %v1423 = vrot.slane %v1418, %v1422
        %v1497 = vunpack.c.l.b16 %v1346
        %v1498 = vunpack.c.l.b16 %v1347
        %v1499 = vunpack.c.l.b16 %v1348
        %v1500 = vunpack.c.l.b16 %v1349
        %v1501 = vunpack.c.l.b16 %v1350
        %v1502 = vunpack.c.l.b16 %v1351
        %v1503 = vunpack.c.l.b16 %v1352
        %v1504 = vunpack.c.l.b16 %v1353
        %v1505 = vunpack.c.l.b16 %v1354
        %v1506 = vunpack.c.l.b16 %v1355
        %v1507 = vunpack.c.l.b16 %v1356
        %v1508 = vunpack.c.l.b16 %v1357
        %v1509 = vunpack.c.l.b16 %v1358
        %v1510 = vunpack.c.l.b16 %v1359
        %v1511 = vunpack.c.l.b16 %v1360
        %v1512 = vunpack.c.l.b16 %v1361
        %v1513 = vunpack.c.l.b16 %v1362
        %v1514 = vunpack.c.l.b16 %v1363
        %v1515 = vunpack.c.l.b16 %v1364
        %v1516 = vunpack.c.l.b16 %v1365
        %v1517 = vunpack.c.l.b16 %v1366
        %v1518 = vunpack.c.l.b16 %v1367
        %v1519 = vunpack.c.l.b16 %v1368
        %v1520 = vunpack.c.l.b16 %v1369
        %v1521 = vunpack.c.l.b16 %v1370
        %v1522 = vunpack.c.l.b16 %v1371
        %v1523 = vunpack.c.l.b16 %v1372
        %v1524 = vunpack.c.l.b16 %v1373
        %v1525 = vunpack.c.l.b16 %v1374
        %v1526 = vunpack.c.l.b16 %v1375
        %v1527 = vunpack.c.l.b16 %v1376
        %v1528 = vunpack.c.l.b16 %v1377
        %v1529 = vunpack.c.l.b16 %v1378
        %v1530 = vunpack.c.l.b16 %v1379
        %v1531 = vunpack.c.l.b16 %v1380
        %v1532 = vunpack.c.l.b16 %v1381
        %v1533 = vunpack.c.l.b16 %v1382
        %v1534 = vunpack.c.l.b16 %v1383
        %v1535 = vunpack.c.l.b16 %v1384
        %v1536 = vunpack.c.l.b16 %v1385
        %v1537 = vunpack.c.l.b16 %v1386
        %v1538 = vunpack.c.l.b16 %v1387
        %v1539 = vunpack.c.l.b16 %v1388
        %v1540 = vunpack.c.l.b16 %v1389
        %v1541 = vunpack.c.l.b16 %v1390
        %v1542 = vunpack.c.l.b16 %v1391
        %v1543 = vunpack.c.l.b16 %v1392
        %v1544 = vunpack.c.l.b16 %v1393
        %v1545 = vunpack.c.l.b16 %v1394
        %v1546 = vunpack.c.l.b16 %v1395
        %v1547 = vunpack.c.l.b16 %v1396
        %v1548 = vunpack.c.l.b16 %v1397
        %v1549 = vunpack.c.l.b16 %v1398
        %v1550 = vunpack.c.l.b16 %v1399
        %v1551 = vunpack.c.l.b16 %v1400
        %v1552 = vunpack.c.l.b16 %v1401
        %v1553 = vunpack.c.l.b16 %v1402
        %v1554 = vunpack.c.l.b16 %v1403
        %v1555 = vunpack.c.l.b16 %v1404
        %v1556 = vunpack.c.l.b16 %v1405
        %v1557 = vunpack.c.l.b16 %v1406
        %v1558 = vunpack.c.l.b16 %v1407
        %v1559 = vunpack.c.l.b16 %v1408
        %v1560 = vunpack.c.l.b16 %v1409
        %v1561 = vunpack.c.l.b16 %v1410
        %v1562 = vunpack.c.l.b16 %v1411
        %v1563 = vunpack.c.l.b16 %v1412
        %v1564 = vunpack.c.l.b16 %v1413
        %v1565 = vunpack.c.l.b16 %v1414
        %v1566 = vunpack.c.l.b16 %v1415
        %v1567 = vunpack.c.l.b16 %v1416
        %v1568 = vunpack.c.l.b16 %v1417
        %v1569 = vpack.c.b16 %v1498, %v1497
        %v1570 = vpack.c.b16 %v1500, %v1499
        %v1571 = vpack.c.b16 %v1502, %v1501
        %v1572 = vpack.c.b16 %v1504, %v1503
        %v1573 = vpack.c.b16 %v1506, %v1505
        %v1574 = vpack.c.b16 %v1508, %v1507
        %v1575 = vpack.c.b16 %v1510, %v1509
        %v1576 = vpack.c.b16 %v1512, %v1511
        %v1577 = vpack.c.b16 %v1514, %v1513
        %v1578 = vpack.c.b16 %v1516, %v1515
        %v1579 = vpack.c.b16 %v1518, %v1517
        %v1580 = vpack.c.b16 %v1520, %v1519
        %v1581 = vpack.c.b16 %v1522, %v1521
        %v1582 = vpack.c.b16 %v1524, %v1523
        %v1583 = vpack.c.b16 %v1526, %v1525
        %v1584 = vpack.c.b16 %v1528, %v1527
        %v1585 = vpack.c.b16 %v1530, %v1529
        %v1586 = vpack.c.b16 %v1532, %v1531
        %v1587 = vpack.c.b16 %v1534, %v1533
        %v1588 = vpack.c.b16 %v1536, %v1535
        %v1589 = vpack.c.b16 %v1538, %v1537
        %v1590 = vpack.c.b16 %v1540, %v1539
        %v1591 = vpack.c.b16 %v1542, %v1541
        %v1592 = vpack.c.b16 %v1544, %v1543
        %v1593 = vpack.c.b16 %v1546, %v1545
        %v1594 = vpack.c.b16 %v1548, %v1547
        %v1595 = vpack.c.b16 %v1550, %v1549
        %v1596 = vpack.c.b16 %v1552, %v1551
        %v1597 = vpack.c.b16 %v1554, %v1553
        %v1598 = vpack.c.b16 %v1556, %v1555
        %v1599 = vpack.c.b16 %v1558, %v1557
        %v1600 = vpack.c.b16 %v1560, %v1559
        %v1601 = vpack.c.b16 %v1562, %v1561
        %v1602 = vpack.c.b16 %v1564, %v1563
        %v1603 = vpack.c.b16 %v1566, %v1565
        %v1604 = vpack.c.b16 %v1568, %v1567
        %v1642 = vsel %vm846, %v1278, 0
        %v1645 = vsel %vm846, %v1280, 0
        %v1648 = vsel %vm846, %v1282, 0
        %v1651 = vsel %vm846, %v1284, 0
        %1653 = vmatprep.subr.bf16.mxu0 0
        %1654 = vmatpush1.bf16.msra.mxu0 %v1569
        %1655 = vmatprep.subr.bf16.mxu0 0
        %1656 = vmatpush1.bf16.msra.mxu0 %v1570
        %1657 = vmatprep.subr.bf16.mxu0 0
        %1658 = vmatpush1.bf16.msra.mxu0 %v1571
        %1659 = vmatprep.subr.bf16.mxu0 0
        %1660 = vmatpush1.bf16.msra.mxu0 %v1572
        %1661 = vmatprep.subr.bf16.mxu0 0
        %1662 = vmatpush1.bf16.msra.mxu0 %v1573
        %1663 = vmatprep.subr.bf16.mxu0 0
        %1664 = vmatpush1.bf16.msra.mxu0 %v1574
        %1665 = vmatprep.subr.bf16.mxu0 0
        %1666 = vmatpush1.bf16.msra.mxu0 %v1575
        %1667 = vmatprep.subr.bf16.mxu0 0
        %1668 = vmatpush1.bf16.msra.mxu0 %v1576
        %1669 = vmatprep.subr.bf16.mxu0 0
        %1670 = vmatpush1.bf16.msra.mxu0 %v1577
        %1671 = vmatprep.subr.bf16.mxu0 0
        %1672 = vmatpush1.bf16.msra.mxu0 %v1578
        %1673 = vmatprep.subr.bf16.mxu0 0
        %1674 = vmatpush1.bf16.msra.mxu0 %v1579
        %1675 = vmatprep.subr.bf16.mxu0 0
        %1676 = vmatpush1.bf16.msra.mxu0 %v1580
        %1677 = vmatprep.subr.bf16.mxu0 0
        %1678 = vmatpush1.bf16.msra.mxu0 %v1581
        %1679 = vmatprep.subr.bf16.mxu0 0
        %1680 = vmatpush1.bf16.msra.mxu0 %v1582
        %1681 = vmatprep.subr.bf16.mxu0 0
        %1682 = vmatpush1.bf16.msra.mxu0 %v1583
        %1683 = vmatprep.subr.bf16.mxu0 0
        %1684 = vmatpush1.bf16.msra.mxu0 %v1584
        %1685 = vmatprep.mubr.bf16.mxu0 %v1303
        %1686 = vmatmul.mubr.bf16.gmra.mrb[0].mxu0 %v1287
        %v1687 = vpop.f32.mrb[0].mxu0
        %v1688 = vadd.f32 %v1423, %v1687
        %v1689 = vpop.f32.mrb[0].mxu0
        %v1690 = vpop.f32.mrb[0].mxu0
        %v1691 = vadd.f32 %v1423, %v1690
        %v1692 = vpop.f32.mrb[0].mxu0
        %1693 = vmatprep.mubr.bf16.mxu0 %v1307
        %1694 = vmatmul.mubr.bf16.gmra.mrb[0].mxu0 %v1291
        %v1695 = vpop.f32.mrb[0].mxu0
        %v1696 = vadd.f32 %v1423, %v1695
        %v1697 = vpop.f32.mrb[0].mxu0
        %v1698 = vpop.f32.mrb[0].mxu0
        %v1699 = vadd.f32 %v1423, %v1698
        %v1700 = vpop.f32.mrb[0].mxu0
        %1701 = vmatprep.mubr.bf16.mxu0 %v1311
        %1702 = vmatmul.mubr.bf16.gmra.mrb[0].mxu0 %v1295
        %v1703 = vpop.f32.mrb[0].mxu0
        %v1704 = vadd.f32 %v1423, %v1703
        %v1705 = vpop.f32.mrb[0].mxu0
        %v1706 = vpop.f32.mrb[0].mxu0
        %v1707 = vadd.f32 %v1423, %v1706
        %v1708 = vpop.f32.mrb[0].mxu0
        %1709 = vmatprep.mubr.bf16.mxu0 %v1315
        %1710 = vmatmul.mubr.bf16.gmra.mrb[0].mxu0 %v1299
        %v1711 = vpop.f32.mrb[0].mxu0
        %v1712 = vadd.f32 %v1423, %v1711
        %v1713 = vpop.f32.mrb[0].mxu0
        %v1714 = vpop.f32.mrb[0].mxu0
        %v1715 = vadd.f32 %v1423, %v1714
        %v1716 = vpop.f32.mrb[0].mxu0
        %1717 = vdwg.mxu0
        %1718 = vmatprep.subr.bf16.mxu0 0
        %1719 = vmatpush1.bf16.msra.mxu0 %v1585
        %1720 = vmatprep.subr.bf16.mxu0 0
        %1721 = vmatpush1.bf16.msra.mxu0 %v1586
        %1722 = vmatprep.subr.bf16.mxu0 0
        %1723 = vmatpush1.bf16.msra.mxu0 %v1587
        %1724 = vmatprep.subr.bf16.mxu0 0
        %1725 = vmatpush1.bf16.msra.mxu0 %v1588
        %1726 = vmatprep.subr.bf16.mxu0 0
        %1727 = vmatpush1.bf16.msra.mxu0 %v1589
        %1728 = vmatprep.subr.bf16.mxu0 0
        %1729 = vmatpush1.bf16.msra.mxu0 %v1590
        %1730 = vmatprep.subr.bf16.mxu0 0
        %1731 = vmatpush1.bf16.msra.mxu0 %v1591
        %1732 = vmatprep.subr.bf16.mxu0 0
        %1733 = vmatpush1.bf16.msra.mxu0 %v1592
        %1734 = vmatprep.subr.bf16.mxu0 0
        %1735 = vmatpush1.bf16.msra.mxu0 %v1593
        %1736 = vmatprep.subr.bf16.mxu0 0
        %1737 = vmatpush1.bf16.msra.mxu0 %v1594
        %1738 = vmatprep.subr.bf16.mxu0 0
        %1739 = vmatpush1.bf16.msra.mxu0 %v1595
        %1740 = vmatprep.subr.bf16.mxu0 0
        %1741 = vmatpush1.bf16.msra.mxu0 %v1596
        %1742 = vmatprep.subr.bf16.mxu0 0
        %1743 = vmatpush1.bf16.msra.mxu0 %v1597
        %1744 = vmatprep.subr.bf16.mxu0 0
        %1745 = vmatpush1.bf16.msra.mxu0 %v1598
        %1746 = vmatprep.subr.bf16.mxu0 0
        %1747 = vmatpush1.bf16.msra.mxu0 %v1599
        %1748 = vmatprep.subr.bf16.mxu0 0
        %1749 = vmatpush1.bf16.msra.mxu0 %v1600
        %1750 = vmatprep.mubr.bf16.mxu0 %v1334
        %1751 = vmatmul.mubr.bf16.gmra.mrb[0].mxu0 %v1319
        %v1752 = vpop.f32.mrb[0].mxu0
        %v1753 = vadd.f32 %v1688, %v1752
        %v1754 = vpop.f32.mrb[0].mxu0
        %v1755 = vpop.f32.mrb[0].mxu0
        %v1756 = vadd.f32 %v1691, %v1755
        %v1757 = vpop.f32.mrb[0].mxu0
        %1758 = vmatprep.mubr.bf16.mxu0 %v1337
        %1759 = vmatmul.mubr.bf16.gmra.mrb[0].mxu0 %v1323
        %v1760 = vpop.f32.mrb[0].mxu0
        %v1761 = vadd.f32 %v1696, %v1760
        %v1762 = vpop.f32.mrb[0].mxu0
        %v1763 = vpop.f32.mrb[0].mxu0
        %v1764 = vadd.f32 %v1699, %v1763
        %v1765 = vpop.f32.mrb[0].mxu0
        %1766 = vmatprep.mubr.bf16.mxu0 %v1340
        %1767 = vmatmul.mubr.bf16.gmra.mrb[0].mxu0 %v1327
        %v1768 = vpop.f32.mrb[0].mxu0
        %v1769 = vadd.f32 %v1704, %v1768
        %v1770 = vpop.f32.mrb[0].mxu0
        %v1771 = vpop.f32.mrb[0].mxu0
        %v1772 = vadd.f32 %v1707, %v1771
        %v1773 = vpop.f32.mrb[0].mxu0
        %1774 = vmatprep.mubr.bf16.mxu0 %v1344
        %1775 = vmatmul.mubr.bf16.gmra.mrb[0].mxu0 %v1331
        %v1776 = vpop.f32.mrb[0].mxu0
        %v1777 = vadd.f32 %v1712, %v1776
        %v1778 = vpop.f32.mrb[0].mxu0
        %v1779 = vpop.f32.mrb[0].mxu0
        %v1780 = vadd.f32 %v1715, %v1779
        %v1781 = vpop.f32.mrb[0].mxu0
        %1782 = vdwg.mxu0
        %1783 = vmatprep.subr.bf16.mxu0 0
        %1784 = vmatpush1.bf16.msra.mxu0 %v1601
        %1785 = vmatprep.subr.bf16.mxu0 0
        %1786 = vmatpush1.bf16.msra.mxu0 %v1602
        %1787 = vmatprep.subr.bf16.mxu0 0
        %1788 = vmatpush1.bf16.msra.mxu0 %v1603
        %1789 = vmatprep.subr.bf16.mxu0 0
        %1790 = vmatpush1.bf16.msra.mxu0 %v1604
        %1791 = vmatprep.subr.bf16.mxu0 0
        %1792 = vmatpush1.bf16.msra.mxu0 0
        %1793 = vmatprep.subr.bf16.mxu0 0
        %1794 = vmatpush1.bf16.msra.mxu0 0
        %1795 = vmatprep.subr.bf16.mxu0 0
        %1796 = vmatpush1.bf16.msra.mxu0 0
        %1797 = vmatprep.subr.bf16.mxu0 0
        %1798 = vmatpush1.bf16.msra.mxu0 0
        %1799 = vmatprep.subr.bf16.mxu0 0
        %1800 = vmatpush1.bf16.msra.mxu0 0
        %1801 = vmatprep.subr.bf16.mxu0 0
        %1802 = vmatpush1.bf16.msra.mxu0 0
        %1803 = vmatprep.subr.bf16.mxu0 0
        %1804 = vmatpush1.bf16.msra.mxu0 0
        %1805 = vmatprep.subr.bf16.mxu0 0
        %1806 = vmatpush1.bf16.msra.mxu0 0
        %1807 = vmatprep.subr.bf16.mxu0 0
        %1808 = vmatpush1.bf16.msra.mxu0 0
        %1809 = vmatprep.subr.bf16.mxu0 0
        %1810 = vmatpush1.bf16.msra.mxu0 0
        %1811 = vmatprep.subr.bf16.mxu0 0
        %1812 = vmatpush1.bf16.msra.mxu0 0
        %1813 = vmatprep.subr.bf16.mxu0 0
        %1814 = vmatpush1.bf16.msra.mxu0 0
        %1815 = vmatprep.mubr.bf16.mxu0 0
        %1816 = vmatmul.mubr.bf16.gmra.mrb[0].mxu0 %v1642
        %v1817 = vpop.f32.mrb[0].mxu0
        %v1818 = vadd.f32 %v1753, %v1817
        %v1819 = vpop.f32.mrb[0].mxu0
        %v1820 = vpop.f32.mrb[0].mxu0
        %v1821 = vadd.f32 %v1756, %v1820
        %v1822 = vpop.f32.mrb[0].mxu0
        %1823 = vmatprep.mubr.bf16.mxu0 0
        %1824 = vmatmul.mubr.bf16.gmra.mrb[0].mxu0 %v1645
        %v1825 = vpop.f32.mrb[0].mxu0
        %v1826 = vadd.f32 %v1761, %v1825
        %v1827 = vpop.f32.mrb[0].mxu0
        %v1828 = vpop.f32.mrb[0].mxu0
        %v1829 = vadd.f32 %v1764, %v1828
        %v1830 = vpop.f32.mrb[0].mxu0
        %1831 = vmatprep.mubr.bf16.mxu0 0
        %1832 = vmatmul.mubr.bf16.gmra.mrb[0].mxu0 %v1648
        %v1833 = vpop.f32.mrb[0].mxu0
        %v1834 = vadd.f32 %v1769, %v1833
        %v1835 = vpop.f32.mrb[0].mxu0
        %v1836 = vpop.f32.mrb[0].mxu0
        %v1837 = vadd.f32 %v1772, %v1836
        %v1838 = vpop.f32.mrb[0].mxu0
        %1839 = vmatprep.mubr.bf16.mxu0 0
        %1840 = vmatmul.mubr.bf16.gmra.mrb[0].mxu0 %v1651
        %v1841 = vpop.f32.mrb[0].mxu0
        %v1842 = vadd.f32 %v1777, %v1841
        %v1843 = vpop.f32.mrb[0].mxu0
        %v1844 = vpop.f32.mrb[0].mxu0
        %v1845 = vadd.f32 %v1780, %v1844
        %v1846 = vpop.f32.mrb[0].mxu0
        %1847 = vdwg.mxu0
        %v1848 = vmax.f32 %v1818, 0.0
        %v1849 = vmax.f32 %v1821, 0.0
        %v1850 = vmax.f32 %v1826, 0.0
        %v1851 = vmax.f32 %v1829, 0.0
        %v1852 = vmax.f32 %v1834, 0.0
        %v1853 = vmax.f32 %v1837, 0.0
        %v1854 = vmax.f32 %v1842, 0.0
        %v1855 = vmax.f32 %v1845, 0.0
        %v1856 = vpack.c.bf16 %v1849, %v1848
        %v1857 = vpack.c.bf16 %v1851, %v1850
        %v1858 = vpack.c.bf16 %v1853, %v1852
        %v1859 = vpack.c.bf16 %v1855, %v1854
        %v1860 = vld [vmem:[%s5] sm:$0xff]
        %v1861 = vld [vmem:[%s5 + $0x8] sm:$0xff]
        %v1862 = vld [vmem:[%s5 + $0x10] sm:$0xff]
        %v1863 = vld [vmem:[%s5 + $0x18] sm:$0xff]
        %v1864 = vld [vmem:[%s5 + $0x20] sm:$0xff]
        %v1865 = vld [vmem:[%s5 + $0x28] sm:$0xff]
        %v1866 = vld [vmem:[%s5 + $0x30] sm:$0xff]
        %v1867 = vld [vmem:[%s5 + $0x38] sm:$0xff]
        %v1868 = vld [vmem:[%s6] sm:$0x3]
        %v1870 = vlaneseq
        %v1871 = vshrl.u32 %v1870, 7
        %v1872 = vsub.s32 0, %v1871
        %v1873 = vrot.slane %v1868, %v1872
        %v1874 = vlaneseq
        %v1875 = vshrl.u32 %v1874, 7
        %v1876 = vsub.s32 1, %v1875
        %v1877 = vrot.slane %v1868, %v1876
        %v1888 = vunpack.c.l.b16 %v1860
        %v1889 = vunpack.c.h.b16 %v1860
        %v1890 = vunpack.c.l.b16 %v1861
        %v1891 = vunpack.c.h.b16 %v1861
        %v1892 = vunpack.c.l.b16 %v1862
        %v1893 = vunpack.c.h.b16 %v1862
        %v1894 = vunpack.c.l.b16 %v1863
        %v1895 = vunpack.c.h.b16 %v1863
        %v1896 = vunpack.c.l.b16 %v1864
        %v1897 = vunpack.c.h.b16 %v1864
        %v1898 = vunpack.c.l.b16 %v1865
        %v1899 = vunpack.c.h.b16 %v1865
        %v1900 = vunpack.c.l.b16 %v1866
        %v1901 = vunpack.c.h.b16 %v1866
        %v1902 = vunpack.c.l.b16 %v1867
        %v1903 = vunpack.c.h.b16 %v1867
        %v1904 = vpack.c.b16 %v1890, %v1888
        %v1905 = vpack.c.b16 %v1891, %v1889
        %v1906 = vpack.c.b16 %v1894, %v1892
        %v1907 = vpack.c.b16 %v1895, %v1893
        %v1908 = vpack.c.b16 %v1898, %v1896
        %v1909 = vpack.c.b16 %v1899, %v1897
        %v1910 = vpack.c.b16 %v1902, %v1900
        %v1911 = vpack.c.b16 %v1903, %v1901
        %v1921 = vsel %vm846, %v1856, 0
        %v1924 = vsel %vm846, %v1857, 0
        %v1927 = vsel %vm846, %v1858, 0
        %v1930 = vsel %vm846, %v1859, 0
        %1932 = vmatprep.subr.bf16.mxu0 %v1905
        %1933 = vmatpush1.bf16.msra.mxu0 %v1904
        %1934 = vmatprep.subr.bf16.mxu0 %v1907
        %1935 = vmatpush1.bf16.msra.mxu0 %v1906
        %1936 = vmatprep.subr.bf16.mxu0 %v1909
        %1937 = vmatpush1.bf16.msra.mxu0 %v1908
        %1938 = vmatprep.subr.bf16.mxu0 %v1911
        %1939 = vmatpush1.bf16.msra.mxu0 %v1910
        %1940 = vmatprep.subr.bf16.mxu0 0
        %1941 = vmatpush1.bf16.msra.mxu0 0
        %1942 = vmatprep.subr.bf16.mxu0 0
        %1943 = vmatpush1.bf16.msra.mxu0 0
        %1944 = vmatprep.subr.bf16.mxu0 0
        %1945 = vmatpush1.bf16.msra.mxu0 0
        %1946 = vmatprep.subr.bf16.mxu0 0
        %1947 = vmatpush1.bf16.msra.mxu0 0
        %1948 = vmatprep.subr.bf16.mxu0 0
        %1949 = vmatpush1.bf16.msra.mxu0 0
        %1950 = vmatprep.subr.bf16.mxu0 0
        %1951 = vmatpush1.bf16.msra.mxu0 0
        %1952 = vmatprep.subr.bf16.mxu0 0
        %1953 = vmatpush1.bf16.msra.mxu0 0
        %1954 = vmatprep.subr.bf16.mxu0 0
        %1955 = vmatpush1.bf16.msra.mxu0 0
        %1956 = vmatprep.subr.bf16.mxu0 0
        %1957 = vmatpush1.bf16.msra.mxu0 0
        %1958 = vmatprep.subr.bf16.mxu0 0
        %1959 = vmatpush1.bf16.msra.mxu0 0
        %1960 = vmatprep.subr.bf16.mxu0 0
        %1961 = vmatpush1.bf16.msra.mxu0 0
        %1962 = vmatprep.subr.bf16.mxu0 0
        %1963 = vmatpush1.bf16.msra.mxu0 0
        %1964 = vmatprep.mubr.bf16.mxu0 0
        %1965 = vmatmul.mubr.bf16.gmra.mrb[0].mxu0 %v1921
        %v1966 = vpop.f32.mrb[0].mxu0
        %v1967 = vadd.f32 %v1873, %v1966
        %v1968 = vpop.f32.mrb[0].mxu0
        %v1969 = vadd.f32 %v1877, %v1968
        %v1970 = vpop.f32.mrb[0].mxu0
        %v1971 = vadd.f32 %v1873, %v1970
        %v1972 = vpop.f32.mrb[0].mxu0
        %v1973 = vadd.f32 %v1877, %v1972
        %1974 = vmatprep.mubr.bf16.mxu0 0
        %1975 = vmatmul.mubr.bf16.gmra.mrb[0].mxu0 %v1924
        %v1976 = vpop.f32.mrb[0].mxu0
        %v1977 = vadd.f32 %v1873, %v1976
        %v1978 = vpop.f32.mrb[0].mxu0
        %v1979 = vadd.f32 %v1877, %v1978
        %v1980 = vpop.f32.mrb[0].mxu0
        %v1981 = vadd.f32 %v1873, %v1980
        %v1982 = vpop.f32.mrb[0].mxu0
        %v1983 = vadd.f32 %v1877, %v1982
        %1984 = vmatprep.mubr.bf16.mxu0 0
        %1985 = vmatmul.mubr.bf16.gmra.mrb[0].mxu0 %v1927
        %v1986 = vpop.f32.mrb[0].mxu0
        %v1987 = vadd.f32 %v1873, %v1986
        %v1988 = vpop.f32.mrb[0].mxu0
        %v1989 = vadd.f32 %v1877, %v1988
        %v1990 = vpop.f32.mrb[0].mxu0
        %v1991 = vadd.f32 %v1873, %v1990
        %v1992 = vpop.f32.mrb[0].mxu0
        %v1993 = vadd.f32 %v1877, %v1992
        %1994 = vmatprep.mubr.bf16.mxu0 0
        %1995 = vmatmul.mubr.bf16.gmra.mrb[0].mxu0 %v1930
        %v1996 = vpop.f32.mrb[0].mxu0
        %v1997 = vadd.f32 %v1873, %v1996
        %v1998 = vpop.f32.mrb[0].mxu0
        %v1999 = vadd.f32 %v1877, %v1998
        %v2000 = vpop.f32.mrb[0].mxu0
        %v2001 = vadd.f32 %v1873, %v2000
        %v2002 = vpop.f32.mrb[0].mxu0
        %v2003 = vadd.f32 %v1877, %v2002
        %2004 = vdwg.mxu0
        %v2005 = vld [vmem:[%s7] sm:$0xff]
        %v2006 = vld [vmem:[%s7 + $0x8] sm:$0xff]
        %v2007 = vld [vmem:[%s7 + $0x10] sm:$0xff]
        %v2008 = vld [vmem:[%s7 + $0x18] sm:$0xff]
        %v2009 = vld [vmem:[%s7 + $0x20] sm:$0xff]
        %v2010 = vld [vmem:[%s7 + $0x28] sm:$0xff]
        %v2011 = vld [vmem:[%s7 + $0x30] sm:$0xff]
        %v2012 = vld [vmem:[%s7 + $0x38] sm:$0xff]
        %v2013 = vld [vmem:[%s8] sm:$0x3]
        %v2015 = vlaneseq
        %v2016 = vshrl.u32 %v2015, 7
        %v2017 = vsub.s32 0, %v2016
        %v2018 = vrot.slane %v2013, %v2017
        %v2019 = vlaneseq
        %v2020 = vshrl.u32 %v2019, 7
        %v2021 = vsub.s32 1, %v2020
        %v2022 = vrot.slane %v2013, %v2021
        %v2033 = vunpack.c.l.b16 %v2005
        %v2034 = vunpack.c.h.b16 %v2005
        %v2035 = vunpack.c.l.b16 %v2006
        %v2036 = vunpack.c.h.b16 %v2006
        %v2037 = vunpack.c.l.b16 %v2007
        %v2038 = vunpack.c.h.b16 %v2007
        %v2039 = vunpack.c.l.b16 %v2008
        %v2040 = vunpack.c.h.b16 %v2008
        %v2041 = vunpack.c.l.b16 %v2009
        %v2042 = vunpack.c.h.b16 %v2009
        %v2043 = vunpack.c.l.b16 %v2010
        %v2044 = vunpack.c.h.b16 %v2010
        %v2045 = vunpack.c.l.b16 %v2011
        %v2046 = vunpack.c.h.b16 %v2011
        %v2047 = vunpack.c.l.b16 %v2012
        %v2048 = vunpack.c.h.b16 %v2012
        %v2049 = vpack.c.b16 %v2035, %v2033
        %v2050 = vpack.c.b16 %v2036, %v2034
        %v2051 = vpack.c.b16 %v2039, %v2037
        %v2052 = vpack.c.b16 %v2040, %v2038
        %v2053 = vpack.c.b16 %v2043, %v2041
        %v2054 = vpack.c.b16 %v2044, %v2042
        %v2055 = vpack.c.b16 %v2047, %v2045
        %v2056 = vpack.c.b16 %v2048, %v2046
        %2065 = vmatprep.subr.bf16.mxu0 %v2050
        %2066 = vmatpush1.bf16.msra.mxu0 %v2049
        %2067 = vmatprep.subr.bf16.mxu0 %v2052
        %2068 = vmatpush1.bf16.msra.mxu0 %v2051
        %2069 = vmatprep.subr.bf16.mxu0 %v2054
        %2070 = vmatpush1.bf16.msra.mxu0 %v2053
        %2071 = vmatprep.subr.bf16.mxu0 %v2056
        %2072 = vmatpush1.bf16.msra.mxu0 %v2055
        %2073 = vmatprep.subr.bf16.mxu0 0
        %2074 = vmatpush1.bf16.msra.mxu0 0
        %2075 = vmatprep.subr.bf16.mxu0 0
        %2076 = vmatpush1.bf16.msra.mxu0 0
        %2077 = vmatprep.subr.bf16.mxu0 0
        %2078 = vmatpush1.bf16.msra.mxu0 0
        %2079 = vmatprep.subr.bf16.mxu0 0
        %2080 = vmatpush1.bf16.msra.mxu0 0
        %2081 = vmatprep.subr.bf16.mxu0 0
        %2082 = vmatpush1.bf16.msra.mxu0 0
        %2083 = vmatprep.subr.bf16.mxu0 0
        %2084 = vmatpush1.bf16.msra.mxu0 0
        %2085 = vmatprep.subr.bf16.mxu0 0
        %2086 = vmatpush1.bf16.msra.mxu0 0
        %2087 = vmatprep.subr.bf16.mxu0 0
        %2088 = vmatpush1.bf16.msra.mxu0 0
        %2089 = vmatprep.subr.bf16.mxu0 0
        %2090 = vmatpush1.bf16.msra.mxu0 0
        %2091 = vmatprep.subr.bf16.mxu0 0
        %2092 = vmatpush1.bf16.msra.mxu0 0
        %2093 = vmatprep.subr.bf16.mxu0 0
        %2094 = vmatpush1.bf16.msra.mxu0 0
        %2095 = vmatprep.subr.bf16.mxu0 0
        %2096 = vmatpush1.bf16.msra.mxu0 0
        %2097 = vmatprep.mubr.bf16.mxu0 0
        %2098 = vmatmul.mubr.bf16.gmra.mrb[0].mxu0 %v848
        %v2099 = vpop.f32.mrb[0].mxu0
        %v2100 = vadd.f32 %v2018, %v2099
        %v2101 = vpop.f32.mrb[0].mxu0
        %v2102 = vadd.f32 %v2022, %v2101
        %v2103 = vpop.f32.mrb[0].mxu0
        %v2104 = vadd.f32 %v2018, %v2103
        %v2105 = vpop.f32.mrb[0].mxu0
        %v2106 = vadd.f32 %v2022, %v2105
        %2107 = vmatprep.mubr.bf16.mxu0 0
        %2108 = vmatmul.mubr.bf16.gmra.mrb[0].mxu0 %v851
        %v2109 = vpop.f32.mrb[0].mxu0
        %v2110 = vadd.f32 %v2018, %v2109
        %v2111 = vpop.f32.mrb[0].mxu0
        %v2112 = vadd.f32 %v2022, %v2111
        %v2113 = vpop.f32.mrb[0].mxu0
        %v2114 = vadd.f32 %v2018, %v2113
        %v2115 = vpop.f32.mrb[0].mxu0
        %v2116 = vadd.f32 %v2022, %v2115
        %2117 = vmatprep.mubr.bf16.mxu0 0
        %2118 = vmatmul.mubr.bf16.gmra.mrb[0].mxu0 %v854
        %v2119 = vpop.f32.mrb[0].mxu0
        %v2120 = vadd.f32 %v2018, %v2119
        %v2121 = vpop.f32.mrb[0].mxu0
        %v2122 = vadd.f32 %v2022, %v2121
        %v2123 = vpop.f32.mrb[0].mxu0
        %v2124 = vadd.f32 %v2018, %v2123
        %v2125 = vpop.f32.mrb[0].mxu0
        %v2126 = vadd.f32 %v2022, %v2125
        %2127 = vmatprep.mubr.bf16.mxu0 0
        %2128 = vmatmul.mubr.bf16.gmra.mrb[0].mxu0 %v857
        %v2129 = vpop.f32.mrb[0].mxu0
        %v2130 = vadd.f32 %v2018, %v2129
        %v2131 = vpop.f32.mrb[0].mxu0
        %v2132 = vadd.f32 %v2022, %v2131
        %v2133 = vpop.f32.mrb[0].mxu0
        %v2134 = vadd.f32 %v2018, %v2133
        %v2135 = vpop.f32.mrb[0].mxu0
        %v2136 = vadd.f32 %v2022, %v2135
        %2137 = vdwg.mxu0
        %v2138 = vadd.f32 %v1967, %v2100
        %v2139 = vadd.f32 %v1969, %v2102
        %v2140 = vadd.f32 %v1971, %v2104
        %v2141 = vadd.f32 %v1973, %v2106
        %v2142 = vadd.f32 %v1977, %v2110
        %v2143 = vadd.f32 %v1979, %v2112
        %v2144 = vadd.f32 %v1981, %v2114
        %v2145 = vadd.f32 %v1983, %v2116
        %v2146 = vadd.f32 %v1987, %v2120
        %v2147 = vadd.f32 %v1989, %v2122
        %v2148 = vadd.f32 %v1991, %v2124
        %v2149 = vadd.f32 %v1993, %v2126
        %v2150 = vadd.f32 %v1997, %v2130
        %v2151 = vadd.f32 %v1999, %v2132
        %v2152 = vadd.f32 %v2001, %v2134
        %v2153 = vadd.f32 %v2003, %v2136
        %v2154 = vmax.f32 %v2138, 0.0
        %v2155 = vmax.f32 %v2139, 0.0
        %v2156 = vmax.f32 %v2140, 0.0
        %v2157 = vmax.f32 %v2141, 0.0
        %v2158 = vmax.f32 %v2142, 0.0
        %v2159 = vmax.f32 %v2143, 0.0
        %v2160 = vmax.f32 %v2144, 0.0
        %v2161 = vmax.f32 %v2145, 0.0
        %v2162 = vmax.f32 %v2146, 0.0
        %v2163 = vmax.f32 %v2147, 0.0
        %v2164 = vmax.f32 %v2148, 0.0
        %v2165 = vmax.f32 %v2149, 0.0
        %v2166 = vmax.f32 %v2150, 0.0
        %v2167 = vmax.f32 %v2151, 0.0
        %v2168 = vmax.f32 %v2152, 0.0
        %v2169 = vmax.f32 %v2153, 0.0
        %v2170 = vpack.c.bf16 %v2156, %v2154
        %v2171 = vpack.c.bf16 %v2157, %v2155
        %v2172 = vpack.c.bf16 %v2160, %v2158
        %v2173 = vpack.c.bf16 %v2161, %v2159
        %v2174 = vpack.c.bf16 %v2164, %v2162
        %v2175 = vpack.c.bf16 %v2165, %v2163
        %v2176 = vpack.c.bf16 %v2168, %v2166
        %v2177 = vpack.c.bf16 %v2169, %v2167
        %v2178 = vld [vmem:[%s9] sm:$0xf]
        %v2179 = vld [vmem:[%s9 + $0x4] sm:$0xf]
        %v2180 = vld [vmem:[%s9 + $0x8] sm:$0xf]
        %v2181 = vld [vmem:[%s9 + $0xc] sm:$0xf]
        %v2182 = vld [vmem:[%s9 + $0x10] sm:$0xf]
        %v2183 = vld [vmem:[%s9 + $0x14] sm:$0xf]
        %v2184 = vld [vmem:[%s9 + $0x18] sm:$0xf]
        %v2185 = vld [vmem:[%s9 + $0x1c] sm:$0xf]
        %v2186 = vld [vmem:[%s9 + $0x20] sm:$0xf]
        %v2187 = vld [vmem:[%s9 + $0x24] sm:$0xf]
        %v2188 = vld [vmem:[%s9 + $0x28] sm:$0xf]
        %v2189 = vld [vmem:[%s9 + $0x2c] sm:$0xf]
        %v2190 = vld [vmem:[%s9 + $0x30] sm:$0xf]
        %v2191 = vld [vmem:[%s9 + $0x34] sm:$0xf]
        %v2192 = vld [vmem:[%s9 + $0x38] sm:$0xf]
        %v2193 = vld [vmem:[%s9 + $0x3c] sm:$0xf]
        %v2194 = vld [vmem:[%s9 + $0x40] sm:$0xf]
        %v2195 = vld [vmem:[%s9 + $0x44] sm:$0xf]
        %v2196 = vld [vmem:[%s9 + $0x48] sm:$0xf]
        %v2197 = vld [vmem:[%s9 + $0x4c] sm:$0xf]
        %v2198 = vld [vmem:[%s9 + $0x50] sm:$0xf]
        %v2199 = vld [vmem:[%s9 + $0x54] sm:$0xf]
        %v2200 = vld [vmem:[%s9 + $0x58] sm:$0xf]
        %v2201 = vld [vmem:[%s9 + $0x5c] sm:$0xf]
        %v2202 = vld [vmem:[%s9 + $0x60] sm:$0xf]
        %v2203 = vld [vmem:[%s9 + $0x64] sm:$0xf]
        %v2204 = vld [vmem:[%s9 + $0x68] sm:$0xf]
        %v2205 = vld [vmem:[%s9 + $0x6c] sm:$0xf]
        %v2206 = vld [vmem:[%s9 + $0x70] sm:$0xf]
        %v2207 = vld [vmem:[%s9 + $0x74] sm:$0xf]
        %v2208 = vld [vmem:[%s9 + $0x78] sm:$0xf]
        %v2209 = vld [vmem:[%s9 + $0x7c] sm:$0xf]
        %v2210 = vld [vmem:[%s10] sm:$0x1]
        %v2212 = vlaneseq
        %v2213 = vshrl.u32 %v2212, 7
        %v2214 = vsub.s32 0, %v2213
        %v2215 = vrot.slane %v2210, %v2214
        %v2249 = vunpack.c.l.b16 %v2178
        %v2250 = vunpack.c.l.b16 %v2179
        %v2251 = vunpack.c.l.b16 %v2180
        %v2252 = vunpack.c.l.b16 %v2181
        %v2253 = vunpack.c.l.b16 %v2182
        %v2254 = vunpack.c.l.b16 %v2183
        %v2255 = vunpack.c.l.b16 %v2184
        %v2256 = vunpack.c.l.b16 %v2185
        %v2257 = vunpack.c.l.b16 %v2186
        %v2258 = vunpack.c.l.b16 %v2187
        %v2259 = vunpack.c.l.b16 %v2188
        %v2260 = vunpack.c.l.b16 %v2189
        %v2261 = vunpack.c.l.b16 %v2190
        %v2262 = vunpack.c.l.b16 %v2191
        %v2263 = vunpack.c.l.b16 %v2192
        %v2264 = vunpack.c.l.b16 %v2193
        %v2265 = vunpack.c.l.b16 %v2194
        %v2266 = vunpack.c.l.b16 %v2195
        %v2267 = vunpack.c.l.b16 %v2196
        %v2268 = vunpack.c.l.b16 %v2197
        %v2269 = vunpack.c.l.b16 %v2198
        %v2270 = vunpack.c.l.b16 %v2199
        %v2271 = vunpack.c.l.b16 %v2200
        %v2272 = vunpack.c.l.b16 %v2201
        %v2273 = vunpack.c.l.b16 %v2202
        %v2274 = vunpack.c.l.b16 %v2203
        %v2275 = vunpack.c.l.b16 %v2204
        %v2276 = vunpack.c.l.b16 %v2205
        %v2277 = vunpack.c.l.b16 %v2206
        %v2278 = vunpack.c.l.b16 %v2207
        %v2279 = vunpack.c.l.b16 %v2208
        %v2280 = vunpack.c.l.b16 %v2209
        %v2281 = vpack.c.b16 %v2250, %v2249
        %v2282 = vpack.c.b16 %v2252, %v2251
        %v2283 = vpack.c.b16 %v2254, %v2253
        %v2284 = vpack.c.b16 %v2256, %v2255
        %v2285 = vpack.c.b16 %v2258, %v2257
        %v2286 = vpack.c.b16 %v2260, %v2259
        %v2287 = vpack.c.b16 %v2262, %v2261
        %v2288 = vpack.c.b16 %v2264, %v2263
        %v2289 = vpack.c.b16 %v2266, %v2265
        %v2290 = vpack.c.b16 %v2268, %v2267
        %v2291 = vpack.c.b16 %v2270, %v2269
        %v2292 = vpack.c.b16 %v2272, %v2271
        %v2293 = vpack.c.b16 %v2274, %v2273
        %v2294 = vpack.c.b16 %v2276, %v2275
        %v2295 = vpack.c.b16 %v2278, %v2277
        %v2296 = vpack.c.b16 %v2280, %v2279
        %2313 = vmatprep.subr.bf16.mxu0 0
        %2314 = vmatpush1.bf16.msra.mxu0 %v2281
        %2315 = vmatprep.subr.bf16.mxu0 0
        %2316 = vmatpush1.bf16.msra.mxu0 %v2282
        %2317 = vmatprep.subr.bf16.mxu0 0
        %2318 = vmatpush1.bf16.msra.mxu0 %v2283
        %2319 = vmatprep.subr.bf16.mxu0 0
        %2320 = vmatpush1.bf16.msra.mxu0 %v2284
        %2321 = vmatprep.subr.bf16.mxu0 0
        %2322 = vmatpush1.bf16.msra.mxu0 %v2285
        %2323 = vmatprep.subr.bf16.mxu0 0
        %2324 = vmatpush1.bf16.msra.mxu0 %v2286
        %2325 = vmatprep.subr.bf16.mxu0 0
        %2326 = vmatpush1.bf16.msra.mxu0 %v2287
        %2327 = vmatprep.subr.bf16.mxu0 0
        %2328 = vmatpush1.bf16.msra.mxu0 %v2288
        %2329 = vmatprep.subr.bf16.mxu0 0
        %2330 = vmatpush1.bf16.msra.mxu0 %v2289
        %2331 = vmatprep.subr.bf16.mxu0 0
        %2332 = vmatpush1.bf16.msra.mxu0 %v2290
        %2333 = vmatprep.subr.bf16.mxu0 0
        %2334 = vmatpush1.bf16.msra.mxu0 %v2291
        %2335 = vmatprep.subr.bf16.mxu0 0
        %2336 = vmatpush1.bf16.msra.mxu0 %v2292
        %2337 = vmatprep.subr.bf16.mxu0 0
        %2338 = vmatpush1.bf16.msra.mxu0 %v2293
        %2339 = vmatprep.subr.bf16.mxu0 0
        %2340 = vmatpush1.bf16.msra.mxu0 %v2294
        %2341 = vmatprep.subr.bf16.mxu0 0
        %2342 = vmatpush1.bf16.msra.mxu0 %v2295
        %2343 = vmatprep.subr.bf16.mxu0 0
        %2344 = vmatpush1.bf16.msra.mxu0 %v2296
        %2345 = vmatprep.mubr.bf16.mxu0 %v2171
        %2346 = vmatmul.mubr.bf16.gmra.mrb[0].mxu0 %v2170
        %v2347 = vpop.f32.mrb[0].mxu0
        %v2348 = vadd.f32 %v2215, %v2347
        %v2349 = vpop.f32.mrb[0].mxu0
        %v2350 = vpop.f32.mrb[0].mxu0
        %v2351 = vadd.f32 %v2215, %v2350
        %v2352 = vpop.f32.mrb[0].mxu0
        %2353 = vmatprep.mubr.bf16.mxu0 %v2173
        %2354 = vmatmul.mubr.bf16.gmra.mrb[0].mxu0 %v2172
        %v2355 = vpop.f32.mrb[0].mxu0
        %v2356 = vadd.f32 %v2215, %v2355
        %v2357 = vpop.f32.mrb[0].mxu0
        %v2358 = vpop.f32.mrb[0].mxu0
        %v2359 = vadd.f32 %v2215, %v2358
        %v2360 = vpop.f32.mrb[0].mxu0
        %2361 = vmatprep.mubr.bf16.mxu0 %v2175
        %2362 = vmatmul.mubr.bf16.gmra.mrb[0].mxu0 %v2174
        %v2363 = vpop.f32.mrb[0].mxu0
        %v2364 = vadd.f32 %v2215, %v2363
        %v2365 = vpop.f32.mrb[0].mxu0
        %v2366 = vpop.f32.mrb[0].mxu0
        %v2367 = vadd.f32 %v2215, %v2366
        %v2368 = vpop.f32.mrb[0].mxu0
        %2369 = vmatprep.mubr.bf16.mxu0 %v2177
        %2370 = vmatmul.mubr.bf16.gmra.mrb[0].mxu0 %v2176
        %v2371 = vpop.f32.mrb[0].mxu0
        %v2372 = vadd.f32 %v2215, %v2371
        %v2373 = vpop.f32.mrb[0].mxu0
        %v2374 = vpop.f32.mrb[0].mxu0
        %v2375 = vadd.f32 %v2215, %v2374
        %v2376 = vpop.f32.mrb[0].mxu0
        %2377 = vdwg.mxu0
        %v2378 = vmax.f32 %v2348, 0.0
        %v2379 = vmax.f32 %v2351, 0.0
        %v2380 = vmax.f32 %v2356, 0.0
        %v2381 = vmax.f32 %v2359, 0.0
        %v2382 = vmax.f32 %v2364, 0.0
        %v2383 = vmax.f32 %v2367, 0.0
        %v2384 = vmax.f32 %v2372, 0.0
        %v2385 = vmax.f32 %v2375, 0.0
        %v2386 = vpack.c.bf16 %v2379, %v2378
        %v2387 = vpack.c.bf16 %v2381, %v2380
        %v2388 = vpack.c.bf16 %v2383, %v2382
        %v2389 = vpack.c.bf16 %v2385, %v2384
        %v2391 = vshrl.u32 %v2386, 16
        %v2393 = vrot.slane %v2391, 3
        %v2394 = vshll.u32 %v2386, 16
        %v2396 = vrot.slane %v2394, 4
        %v2397 = vor.u32 %v2393, %v2396
        %v2399 = vshrl.u32 %v2387, 16
        %v2401 = vrot.slane %v2399, 3
        %v2402 = vshll.u32 %v2387, 16
        %v2404 = vrot.slane %v2402, 4
        %v2405 = vor.u32 %v2401, %v2404
        %v2406 = vsel %vm936, %v2397, %v2405
        %v2408 = vshrl.u32 %v2388, 16
        %v2410 = vrot.slane %v2408, 3
        %v2411 = vshll.u32 %v2388, 16
        %v2413 = vrot.slane %v2411, 4
        %v2414 = vor.u32 %v2410, %v2413
        %v2415 = vsel %vm936, %v2405, %v2414
        %v2417 = vshrl.u32 %v2389, 16
        %v2419 = vrot.slane %v2417, 3
        %v2420 = vshll.u32 %v2389, 16
        %v2422 = vrot.slane %v2420, 4
        %v2423 = vor.u32 %v2419, %v2422
        %v2424 = vsel %vm936, %v2414, %v2423
        %v2430 = vsel %vm978, 0, %v2397
        %v2431 = vsel %vm978, %v2423, 0
        %v2432 = vsel %vm1025, %v2430, 0
        %v2433 = vsel %vm1026, %v2406, 0
        %v2434 = vsel %vm1027, %v2415, 0
        %v2435 = vsel %vm1028, %v2424, 0
        %v2436 = vsel %vm1085, %v2430, 0
        %v2437 = vsel %vm1086, %v2406, 0
        %v2438 = vsel %vm1087, %v2415, 0
        %v2439 = vsel %vm1088, %v2424, 0
        %v2440 = vsel %vm1089, %v2431, 0
        %v2441 = vsel %vm1100, %v2430, 0
        %v2442 = vsel %vm1101, %v2406, 0
        %v2443 = vsel %vm1102, %v2415, 0
        %v2444 = vsel %vm1103, %v2424, 0
        %v2445 = vsel %vm1104, %v2431, 0
        %v2446 = vsel %vm1117, %v2430, 0
        %v2447 = vsel %vm1118, %v2406, 0
        %v2448 = vsel %vm1119, %v2415, 0
        %v2449 = vsel %vm1120, %v2424, 0
        %v2450 = vsel %vm1121, %v2431, 0
        %v2451 = vsel %vm1025, %v2406, 0
        %v2452 = vsel %vm1026, %v2415, 0
        %v2453 = vsel %vm1027, %v2424, 0
        %v2454 = vsel %vm1028, %v2431, 0
        %v2455 = vsel %vm1085, %v2406, 0
        %v2456 = vsel %vm1086, %v2415, 0
        %v2457 = vsel %vm1087, %v2424, 0
        %v2458 = vsel %vm1088, %v2431, 0
        %v2460 = vshrl.u32 %v2430, 16
        %v2462 = vshll.u32 %v2430, 16
        %v2464 = vrot.slane %v2462, 1
        %v2465 = vor.u32 %v2460, %v2464
        %v2467 = vshll.u32 %v2406, 16
        %v2469 = vrot.slane %v2467, 1
        %v2470 = vsel %vm1135, %v2465, %v2469
        %v2471 = vshrl.u32 %v2406, 16
        %v2473 = vor.u32 %v2471, %v2469
        %v2475 = vshll.u32 %v2415, 16
        %v2477 = vrot.slane %v2475, 1
        %v2478 = vsel %vm1135, %v2473, %v2477
        %v2479 = vshrl.u32 %v2415, 16
        %v2481 = vor.u32 %v2479, %v2477
        %v2483 = vshll.u32 %v2424, 16
        %v2485 = vrot.slane %v2483, 1
        %v2486 = vsel %vm1135, %v2481, %v2485
        %v2487 = vshrl.u32 %v2424, 16
        %v2489 = vor.u32 %v2487, %v2485
        %v2491 = vshll.u32 %v2431, 16
        %v2493 = vrot.slane %v2491, 1
        %v2494 = vsel %vm1135, %v2489, %v2493
        %2495 = vrot.lane.b32.xlu0 %v2470, 64
        %v2496 = vpop.permute.xlu0 %2495
        %2497 = vrot.lane.b32.xlu0 %v2478, 64
        %v2498 = vpop.permute.xlu0 %2497
        %2499 = vrot.lane.b32.xlu0 %v2486, 64
        %v2500 = vpop.permute.xlu0 %2499
        %2501 = vrot.lane.b32.xlu0 %v2494, 64
        %v2502 = vpop.permute.xlu0 %2501
        %v2508 = vrot.slane %v2436, 1
        %v2509 = vrot.slane %v2437, 1
        %v2510 = vsel %vm1185, %v2508, %v2509
        %v2511 = vrot.slane %v2438, 1
        %v2512 = vsel %vm1185, %v2509, %v2511
        %v2513 = vrot.slane %v2439, 1
        %v2514 = vsel %vm1185, %v2511, %v2513
        %v2515 = vrot.slane %v2440, 1
        %v2516 = vsel %vm1185, %v2513, %v2515
        %v2522 = vrot.slane %v2441, 4
        %v2523 = vrot.slane %v2442, 4
        %v2524 = vsel %vm1200, %v2522, %v2523
        %v2525 = vrot.slane %v2443, 4
        %v2526 = vsel %vm1200, %v2523, %v2525
        %v2527 = vrot.slane %v2444, 4
        %v2528 = vsel %vm1200, %v2525, %v2527
        %v2529 = vrot.slane %v2445, 4
        %v2530 = vsel %vm1200, %v2527, %v2529
        %2531 = vrot.lane.b32.xlu0 %v2524, 64
        %v2532 = vpop.permute.xlu0 %2531
        %2533 = vrot.lane.b32.xlu0 %v2526, 64
        %v2534 = vpop.permute.xlu0 %2533
        %2535 = vrot.lane.b32.xlu0 %v2528, 64
        %v2536 = vpop.permute.xlu0 %2535
        %2537 = vrot.lane.b32.xlu0 %v2530, 64
        %v2538 = vpop.permute.xlu0 %2537
        %v2539 = vrot.slane %v2460, 4
        %v2540 = vrot.slane %v2462, 5
        %v2541 = vor.u32 %v2539, %v2540
        %v2542 = vrot.slane %v2471, 4
        %v2543 = vrot.slane %v2467, 5
        %v2544 = vor.u32 %v2542, %v2543
        %v2545 = vsel %vm1218, %v2541, %v2544
        %v2546 = vrot.slane %v2479, 4
        %v2547 = vrot.slane %v2475, 5
        %v2548 = vor.u32 %v2546, %v2547
        %v2549 = vsel %vm1218, %v2544, %v2548
        %v2550 = vrot.slane %v2487, 4
        %v2551 = vrot.slane %v2483, 5
        %v2552 = vor.u32 %v2550, %v2551
        %v2553 = vsel %vm1218, %v2548, %v2552
        %v2554 = vshrl.u32 %v2431, 16
        %v2556 = vrot.slane %v2554, 4
        %v2557 = vrot.slane %v2491, 5
        %v2558 = vor.u32 %v2556, %v2557
        %v2559 = vsel %vm1218, %v2552, %v2558
        %v2565 = vrot.slane %v2446, 5
        %v2566 = vrot.slane %v2447, 5
        %v2567 = vsel %vm1245, %v2565, %v2566
        %v2568 = vrot.slane %v2448, 5
        %v2569 = vsel %vm1245, %v2566, %v2568
        %v2570 = vrot.slane %v2449, 5
        %v2571 = vsel %vm1245, %v2568, %v2570
        %v2572 = vrot.slane %v2450, 5
        %v2573 = vsel %vm1245, %v2570, %v2572
        %2574 = vrot.lane.b32.xlu0 %v2567, 64
        %v2575 = vpop.permute.xlu0 %2574
        %2576 = vrot.lane.b32.xlu0 %v2569, 64
        %v2577 = vpop.permute.xlu0 %2576
        %2578 = vrot.lane.b32.xlu0 %v2571, 64
        %v2579 = vpop.permute.xlu0 %2578
        %2580 = vrot.lane.b32.xlu0 %v2573, 64
        %v2581 = vpop.permute.xlu0 %2580
        %v2582 = vor.u32 %v2554, %v2493
        %v2583 = vsel %vm1135, %v2582, %v1267
        %2584 = vrot.lane.b32.xlu0 %v2583, 64
        %v2585 = vpop.permute.xlu0 %2584
        %v2590 = vrot.slane %v2455, 1
        %v2591 = vrot.slane %v2456, 1
        %v2592 = vsel %vm1185, %v2590, %v2591
        %v2593 = vrot.slane %v2457, 1
        %v2594 = vsel %vm1185, %v2591, %v2593
        %v2595 = vrot.slane %v2458, 1
        %v2596 = vsel %vm1185, %v2593, %v2595
        %v2597 = vsel %vm1185, %v2595, %v1283
        %v2600 = vsel %vm846, %v2432, %v2496
        %v2604 = vsel %vm846, %v2433, %v2498
        %v2608 = vsel %vm846, %v2434, %v2500
        %v2612 = vsel %vm846, %v2435, %v2502
        %v2616 = vsel %vm846, %v2510, %v2532
        %v2620 = vsel %vm846, %v2512, %v2534
        %v2624 = vsel %vm846, %v2514, %v2536
        %v2628 = vsel %vm846, %v2516, %v2538
        %v2632 = vsel %vm846, %v2545, %v2575
        %v2636 = vsel %vm846, %v2549, %v2577
        %v2640 = vsel %vm846, %v2553, %v2579
        %v2644 = vsel %vm846, %v2559, %v2581
        %v2647 = vsel %vm846, %v2451, %v2498
        %v2650 = vsel %vm846, %v2452, %v2500
        %v2653 = vsel %vm846, %v2453, %v2502
        %v2657 = vsel %vm846, %v2454, %v2585
        %v2659 = vld [vmem:[%s11] sm:$0xf]
        %v2660 = vld [vmem:[%s11 + $0x4] sm:$0xf]
        %v2661 = vld [vmem:[%s11 + $0x8] sm:$0xf]
        %v2662 = vld [vmem:[%s11 + $0xc] sm:$0xf]
        %v2663 = vld [vmem:[%s11 + $0x10] sm:$0xf]
        %v2664 = vld [vmem:[%s11 + $0x14] sm:$0xf]
        %v2665 = vld [vmem:[%s11 + $0x18] sm:$0xf]
        %v2666 = vld [vmem:[%s11 + $0x1c] sm:$0xf]
        %v2667 = vld [vmem:[%s11 + $0x20] sm:$0xf]
        %v2668 = vld [vmem:[%s11 + $0x24] sm:$0xf]
        %v2669 = vld [vmem:[%s11 + $0x28] sm:$0xf]
        %v2670 = vld [vmem:[%s11 + $0x2c] sm:$0xf]
        %v2671 = vld [vmem:[%s11 + $0x30] sm:$0xf]
        %v2672 = vld [vmem:[%s11 + $0x34] sm:$0xf]
        %v2673 = vld [vmem:[%s11 + $0x38] sm:$0xf]
        %v2674 = vld [vmem:[%s11 + $0x3c] sm:$0xf]
        %v2675 = vld [vmem:[%s11 + $0x40] sm:$0xf]
        %v2676 = vld [vmem:[%s11 + $0x44] sm:$0xf]
        %v2677 = vld [vmem:[%s11 + $0x48] sm:$0xf]
        %v2678 = vld [vmem:[%s11 + $0x4c] sm:$0xf]
        %v2679 = vld [vmem:[%s11 + $0x50] sm:$0xf]
        %v2680 = vld [vmem:[%s11 + $0x54] sm:$0xf]
        %v2681 = vld [vmem:[%s11 + $0x58] sm:$0xf]
        %v2682 = vld [vmem:[%s11 + $0x5c] sm:$0xf]
        %v2683 = vld [vmem:[%s11 + $0x60] sm:$0xf]
        %v2684 = vld [vmem:[%s11 + $0x64] sm:$0xf]
        %v2685 = vld [vmem:[%s11 + $0x68] sm:$0xf]
        %v2686 = vld [vmem:[%s11 + $0x6c] sm:$0xf]
        %v2687 = vld [vmem:[%s11 + $0x70] sm:$0xf]
        %v2688 = vld [vmem:[%s11 + $0x74] sm:$0xf]
        %v2689 = vld [vmem:[%s11 + $0x78] sm:$0xf]
        %v2690 = vld [vmem:[%s11 + $0x7c] sm:$0xf]
        %v2691 = vld [vmem:[%s11 + $0x80] sm:$0xf]
        %v2692 = vld [vmem:[%s11 + $0x84] sm:$0xf]
        %v2693 = vld [vmem:[%s11 + $0x88] sm:$0xf]
        %v2694 = vld [vmem:[%s11 + $0x8c] sm:$0xf]
        %v2695 = vld [vmem:[%s11 + $0x90] sm:$0xf]
        %v2696 = vld [vmem:[%s11 + $0x94] sm:$0xf]
        %v2697 = vld [vmem:[%s11 + $0x98] sm:$0xf]
        %v2698 = vld [vmem:[%s11 + $0x9c] sm:$0xf]
        %v2699 = vld [vmem:[%s11 + $0xa0] sm:$0xf]
        %v2700 = vld [vmem:[%s11 + $0xa4] sm:$0xf]
        %v2701 = vld [vmem:[%s11 + $0xa8] sm:$0xf]
        %v2702 = vld [vmem:[%s11 + $0xac] sm:$0xf]
        %v2703 = vld [vmem:[%s11 + $0xb0] sm:$0xf]
        %v2704 = vld [vmem:[%s11 + $0xb4] sm:$0xf]
        %v2705 = vld [vmem:[%s11 + $0xb8] sm:$0xf]
        %v2706 = vld [vmem:[%s11 + $0xbc] sm:$0xf]
        %v2707 = vld [vmem:[%s11 + $0xc0] sm:$0xf]
        %v2708 = vld [vmem:[%s11 + $0xc4] sm:$0xf]
        %v2709 = vld [vmem:[%s11 + $0xc8] sm:$0xf]
        %v2710 = vld [vmem:[%s11 + $0xcc] sm:$0xf]
        %v2711 = vld [vmem:[%s11 + $0xd0] sm:$0xf]
        %v2712 = vld [vmem:[%s11 + $0xd4] sm:$0xf]
        %v2713 = vld [vmem:[%s11 + $0xd8] sm:$0xf]
        %v2714 = vld [vmem:[%s11 + $0xdc] sm:$0xf]
        %v2715 = vld [vmem:[%s11 + $0xe0] sm:$0xf]
        %v2716 = vld [vmem:[%s11 + $0xe4] sm:$0xf]
        %v2717 = vld [vmem:[%s11 + $0xe8] sm:$0xf]
        %v2718 = vld [vmem:[%s11 + $0xec] sm:$0xf]
        %v2719 = vld [vmem:[%s11 + $0xf0] sm:$0xf]
        %v2720 = vld [vmem:[%s11 + $0xf4] sm:$0xf]
        %v2721 = vld [vmem:[%s11 + $0xf8] sm:$0xf]
        %v2722 = vld [vmem:[%s11 + $0xfc] sm:$0xf]
        %v2723 = vld [vmem:[%s11 + $0x100] sm:$0xf]
        %v2724 = vld [vmem:[%s11 + $0x104] sm:$0xf]
        %v2725 = vld [vmem:[%s11 + $0x108] sm:$0xf]
        %v2726 = vld [vmem:[%s11 + $0x10c] sm:$0xf]
        %v2727 = vld [vmem:[%s11 + $0x110] sm:$0xf]
        %v2728 = vld [vmem:[%s11 + $0x114] sm:$0xf]
        %v2729 = vld [vmem:[%s11 + $0x118] sm:$0xf]
        %v2730 = vld [vmem:[%s11 + $0x11c] sm:$0xf]
        %v2731 = vld [vmem:[%s12] sm:$0x1]
        %v2733 = vlaneseq
        %v2734 = vshrl.u32 %v2733, 7
        %v2735 = vsub.s32 0, %v2734
        %v2736 = vrot.slane %v2731, %v2735
        %v2810 = vunpack.c.l.b16 %v2659
        %v2811 = vunpack.c.l.b16 %v2660
        %v2812 = vunpack.c.l.b16 %v2661
        %v2813 = vunpack.c.l.b16 %v2662
        %v2814 = vunpack.c.l.b16 %v2663
        %v2815 = vunpack.c.l.b16 %v2664
        %v2816 = vunpack.c.l.b16 %v2665
        %v2817 = vunpack.c.l.b16 %v2666
        %v2818 = vunpack.c.l.b16 %v2667
        %v2819 = vunpack.c.l.b16 %v2668
        %v2820 = vunpack.c.l.b16 %v2669
        %v2821 = vunpack.c.l.b16 %v2670
        %v2822 = vunpack.c.l.b16 %v2671
        %v2823 = vunpack.c.l.b16 %v2672
        %v2824 = vunpack.c.l.b16 %v2673
        %v2825 = vunpack.c.l.b16 %v2674
        %v2826 = vunpack.c.l.b16 %v2675
        %v2827 = vunpack.c.l.b16 %v2676
        %v2828 = vunpack.c.l.b16 %v2677
        %v2829 = vunpack.c.l.b16 %v2678
        %v2830 = vunpack.c.l.b16 %v2679
        %v2831 = vunpack.c.l.b16 %v2680
        %v2832 = vunpack.c.l.b16 %v2681
        %v2833 = vunpack.c.l.b16 %v2682
        %v2834 = vunpack.c.l.b16 %v2683
        %v2835 = vunpack.c.l.b16 %v2684
        %v2836 = vunpack.c.l.b16 %v2685
        %v2837 = vunpack.c.l.b16 %v2686
        %v2838 = vunpack.c.l.b16 %v2687
        %v2839 = vunpack.c.l.b16 %v2688
        %v2840 = vunpack.c.l.b16 %v2689
        %v2841 = vunpack.c.l.b16 %v2690
        %v2842 = vunpack.c.l.b16 %v2691
        %v2843 = vunpack.c.l.b16 %v2692
        %v2844 = vunpack.c.l.b16 %v2693
        %v2845 = vunpack.c.l.b16 %v2694
        %v2846 = vunpack.c.l.b16 %v2695
        %v2847 = vunpack.c.l.b16 %v2696
        %v2848 = vunpack.c.l.b16 %v2697
        %v2849 = vunpack.c.l.b16 %v2698
        %v2850 = vunpack.c.l.b16 %v2699
        %v2851 = vunpack.c.l.b16 %v2700
        %v2852 = vunpack.c.l.b16 %v2701
        %v2853 = vunpack.c.l.b16 %v2702
        %v2854 = vunpack.c.l.b16 %v2703
        %v2855 = vunpack.c.l.b16 %v2704
        %v2856 = vunpack.c.l.b16 %v2705
        %v2857 = vunpack.c.l.b16 %v2706
        %v2858 = vunpack.c.l.b16 %v2707
        %v2859 = vunpack.c.l.b16 %v2708
        %v2860 = vunpack.c.l.b16 %v2709
        %v2861 = vunpack.c.l.b16 %v2710
        %v2862 = vunpack.c.l.b16 %v2711
        %v2863 = vunpack.c.l.b16 %v2712
        %v2864 = vunpack.c.l.b16 %v2713
        %v2865 = vunpack.c.l.b16 %v2714
        %v2866 = vunpack.c.l.b16 %v2715
        %v2867 = vunpack.c.l.b16 %v2716
        %v2868 = vunpack.c.l.b16 %v2717
        %v2869 = vunpack.c.l.b16 %v2718
        %v2870 = vunpack.c.l.b16 %v2719
        %v2871 = vunpack.c.l.b16 %v2720
        %v2872 = vunpack.c.l.b16 %v2721
        %v2873 = vunpack.c.l.b16 %v2722
        %v2874 = vunpack.c.l.b16 %v2723
        %v2875 = vunpack.c.l.b16 %v2724
        %v2876 = vunpack.c.l.b16 %v2725
        %v2877 = vunpack.c.l.b16 %v2726
        %v2878 = vunpack.c.l.b16 %v2727
        %v2879 = vunpack.c.l.b16 %v2728
        %v2880 = vunpack.c.l.b16 %v2729
        %v2881 = vunpack.c.l.b16 %v2730
        %v2882 = vpack.c.b16 %v2811, %v2810
        %v2883 = vpack.c.b16 %v2813, %v2812
        %v2884 = vpack.c.b16 %v2815, %v2814
        %v2885 = vpack.c.b16 %v2817, %v2816
        %v2886 = vpack.c.b16 %v2819, %v2818
        %v2887 = vpack.c.b16 %v2821, %v2820
        %v2888 = vpack.c.b16 %v2823, %v2822
        %v2889 = vpack.c.b16 %v2825, %v2824
        %v2890 = vpack.c.b16 %v2827, %v2826
        %v2891 = vpack.c.b16 %v2829, %v2828
        %v2892 = vpack.c.b16 %v2831, %v2830
        %v2893 = vpack.c.b16 %v2833, %v2832
        %v2894 = vpack.c.b16 %v2835, %v2834
        %v2895 = vpack.c.b16 %v2837, %v2836
        %v2896 = vpack.c.b16 %v2839, %v2838
        %v2897 = vpack.c.b16 %v2841, %v2840
        %v2898 = vpack.c.b16 %v2843, %v2842
        %v2899 = vpack.c.b16 %v2845, %v2844
        %v2900 = vpack.c.b16 %v2847, %v2846
        %v2901 = vpack.c.b16 %v2849, %v2848
        %v2902 = vpack.c.b16 %v2851, %v2850
        %v2903 = vpack.c.b16 %v2853, %v2852
        %v2904 = vpack.c.b16 %v2855, %v2854
        %v2905 = vpack.c.b16 %v2857, %v2856
        %v2906 = vpack.c.b16 %v2859, %v2858
        %v2907 = vpack.c.b16 %v2861, %v2860
        %v2908 = vpack.c.b16 %v2863, %v2862
        %v2909 = vpack.c.b16 %v2865, %v2864
        %v2910 = vpack.c.b16 %v2867, %v2866
        %v2911 = vpack.c.b16 %v2869, %v2868
        %v2912 = vpack.c.b16 %v2871, %v2870
        %v2913 = vpack.c.b16 %v2873, %v2872
        %v2914 = vpack.c.b16 %v2875, %v2874
        %v2915 = vpack.c.b16 %v2877, %v2876
        %v2916 = vpack.c.b16 %v2879, %v2878
        %v2917 = vpack.c.b16 %v2881, %v2880
        %v2955 = vsel %vm846, %v2592, 0
        %v2958 = vsel %vm846, %v2594, 0
        %v2961 = vsel %vm846, %v2596, 0
        %v2964 = vsel %vm846, %v2597, 0
        %2966 = vmatprep.subr.bf16.mxu0 0
        %2967 = vmatpush1.bf16.msra.mxu0 %v2882
        %2968 = vmatprep.subr.bf16.mxu0 0
        %2969 = vmatpush1.bf16.msra.mxu0 %v2883
        %2970 = vmatprep.subr.bf16.mxu0 0
        %2971 = vmatpush1.bf16.msra.mxu0 %v2884
        %2972 = vmatprep.subr.bf16.mxu0 0
        %2973 = vmatpush1.bf16.msra.mxu0 %v2885
        %2974 = vmatprep.subr.bf16.mxu0 0
        %2975 = vmatpush1.bf16.msra.mxu0 %v2886
        %2976 = vmatprep.subr.bf16.mxu0 0
        %2977 = vmatpush1.bf16.msra.mxu0 %v2887
        %2978 = vmatprep.subr.bf16.mxu0 0
        %2979 = vmatpush1.bf16.msra.mxu0 %v2888
        %2980 = vmatprep.subr.bf16.mxu0 0
        %2981 = vmatpush1.bf16.msra.mxu0 %v2889
        %2982 = vmatprep.subr.bf16.mxu0 0
        %2983 = vmatpush1.bf16.msra.mxu0 %v2890
        %2984 = vmatprep.subr.bf16.mxu0 0
        %2985 = vmatpush1.bf16.msra.mxu0 %v2891
        %2986 = vmatprep.subr.bf16.mxu0 0
        %2987 = vmatpush1.bf16.msra.mxu0 %v2892
        %2988 = vmatprep.subr.bf16.mxu0 0
        %2989 = vmatpush1.bf16.msra.mxu0 %v2893
        %2990 = vmatprep.subr.bf16.mxu0 0
        %2991 = vmatpush1.bf16.msra.mxu0 %v2894
        %2992 = vmatprep.subr.bf16.mxu0 0
        %2993 = vmatpush1.bf16.msra.mxu0 %v2895
        %2994 = vmatprep.subr.bf16.mxu0 0
        %2995 = vmatpush1.bf16.msra.mxu0 %v2896
        %2996 = vmatprep.subr.bf16.mxu0 0
        %2997 = vmatpush1.bf16.msra.mxu0 %v2897
        %2998 = vmatprep.mubr.bf16.mxu0 %v2616
        %2999 = vmatmul.mubr.bf16.gmra.mrb[0].mxu0 %v2600
        %v3000 = vpop.f32.mrb[0].mxu0
        %v3001 = vadd.f32 %v2736, %v3000
        %v3002 = vpop.f32.mrb[0].mxu0
        %v3003 = vpop.f32.mrb[0].mxu0
        %v3004 = vadd.f32 %v2736, %v3003
        %v3005 = vpop.f32.mrb[0].mxu0
        %3006 = vmatprep.mubr.bf16.mxu0 %v2620
        %3007 = vmatmul.mubr.bf16.gmra.mrb[0].mxu0 %v2604
        %v3008 = vpop.f32.mrb[0].mxu0
        %v3009 = vadd.f32 %v2736, %v3008
        %v3010 = vpop.f32.mrb[0].mxu0
        %v3011 = vpop.f32.mrb[0].mxu0
        %v3012 = vadd.f32 %v2736, %v3011
        %v3013 = vpop.f32.mrb[0].mxu0
        %3014 = vmatprep.mubr.bf16.mxu0 %v2624
        %3015 = vmatmul.mubr.bf16.gmra.mrb[0].mxu0 %v2608
        %v3016 = vpop.f32.mrb[0].mxu0
        %v3017 = vadd.f32 %v2736, %v3016
        %v3018 = vpop.f32.mrb[0].mxu0
        %v3019 = vpop.f32.mrb[0].mxu0
        %v3020 = vadd.f32 %v2736, %v3019
        %v3021 = vpop.f32.mrb[0].mxu0
        %3022 = vmatprep.mubr.bf16.mxu0 %v2628
        %3023 = vmatmul.mubr.bf16.gmra.mrb[0].mxu0 %v2612
        %v3024 = vpop.f32.mrb[0].mxu0
        %v3025 = vadd.f32 %v2736, %v3024
        %v3026 = vpop.f32.mrb[0].mxu0
        %v3027 = vpop.f32.mrb[0].mxu0
        %v3028 = vadd.f32 %v2736, %v3027
        %v3029 = vpop.f32.mrb[0].mxu0
        %3030 = vdwg.mxu0
        %3031 = vmatprep.subr.bf16.mxu0 0
        %3032 = vmatpush1.bf16.msra.mxu0 %v2898
        %3033 = vmatprep.subr.bf16.mxu0 0
        %3034 = vmatpush1.bf16.msra.mxu0 %v2899
        %3035 = vmatprep.subr.bf16.mxu0 0
        %3036 = vmatpush1.bf16.msra.mxu0 %v2900
        %3037 = vmatprep.subr.bf16.mxu0 0
        %3038 = vmatpush1.bf16.msra.mxu0 %v2901
        %3039 = vmatprep.subr.bf16.mxu0 0
        %3040 = vmatpush1.bf16.msra.mxu0 %v2902
        %3041 = vmatprep.subr.bf16.mxu0 0
        %3042 = vmatpush1.bf16.msra.mxu0 %v2903
        %3043 = vmatprep.subr.bf16.mxu0 0
        %3044 = vmatpush1.bf16.msra.mxu0 %v2904
        %3045 = vmatprep.subr.bf16.mxu0 0
        %3046 = vmatpush1.bf16.msra.mxu0 %v2905
        %3047 = vmatprep.subr.bf16.mxu0 0
        %3048 = vmatpush1.bf16.msra.mxu0 %v2906
        %3049 = vmatprep.subr.bf16.mxu0 0
        %3050 = vmatpush1.bf16.msra.mxu0 %v2907
        %3051 = vmatprep.subr.bf16.mxu0 0
        %3052 = vmatpush1.bf16.msra.mxu0 %v2908
        %3053 = vmatprep.subr.bf16.mxu0 0
        %3054 = vmatpush1.bf16.msra.mxu0 %v2909
        %3055 = vmatprep.subr.bf16.mxu0 0
        %3056 = vmatpush1.bf16.msra.mxu0 %v2910
        %3057 = vmatprep.subr.bf16.mxu0 0
        %3058 = vmatpush1.bf16.msra.mxu0 %v2911
        %3059 = vmatprep.subr.bf16.mxu0 0
        %3060 = vmatpush1.bf16.msra.mxu0 %v2912
        %3061 = vmatprep.subr.bf16.mxu0 0
        %3062 = vmatpush1.bf16.msra.mxu0 %v2913
        %3063 = vmatprep.mubr.bf16.mxu0 %v2647
        %3064 = vmatmul.mubr.bf16.gmra.mrb[0].mxu0 %v2632
        %v3065 = vpop.f32.mrb[0].mxu0
        %v3066 = vadd.f32 %v3001, %v3065
        %v3067 = vpop.f32.mrb[0].mxu0
        %v3068 = vpop.f32.mrb[0].mxu0
        %v3069 = vadd.f32 %v3004, %v3068
        %v3070 = vpop.f32.mrb[0].mxu0
        %3071 = vmatprep.mubr.bf16.mxu0 %v2650
        %3072 = vmatmul.mubr.bf16.gmra.mrb[0].mxu0 %v2636
        %v3073 = vpop.f32.mrb[0].mxu0
        %v3074 = vadd.f32 %v3009, %v3073
        %v3075 = vpop.f32.mrb[0].mxu0
        %v3076 = vpop.f32.mrb[0].mxu0
        %v3077 = vadd.f32 %v3012, %v3076
        %v3078 = vpop.f32.mrb[0].mxu0
        %3079 = vmatprep.mubr.bf16.mxu0 %v2653
        %3080 = vmatmul.mubr.bf16.gmra.mrb[0].mxu0 %v2640
        %v3081 = vpop.f32.mrb[0].mxu0
        %v3082 = vadd.f32 %v3017, %v3081
        %v3083 = vpop.f32.mrb[0].mxu0
        %v3084 = vpop.f32.mrb[0].mxu0
        %v3085 = vadd.f32 %v3020, %v3084
        %v3086 = vpop.f32.mrb[0].mxu0
        %3087 = vmatprep.mubr.bf16.mxu0 %v2657
        %3088 = vmatmul.mubr.bf16.gmra.mrb[0].mxu0 %v2644
        %v3089 = vpop.f32.mrb[0].mxu0
        %v3090 = vadd.f32 %v3025, %v3089
        %v3091 = vpop.f32.mrb[0].mxu0
        %v3092 = vpop.f32.mrb[0].mxu0
        %v3093 = vadd.f32 %v3028, %v3092
        %v3094 = vpop.f32.mrb[0].mxu0
        %3095 = vdwg.mxu0
        %3096 = vmatprep.subr.bf16.mxu0 0
        %3097 = vmatpush1.bf16.msra.mxu0 %v2914
        %3098 = vmatprep.subr.bf16.mxu0 0
        %3099 = vmatpush1.bf16.msra.mxu0 %v2915
        %3100 = vmatprep.subr.bf16.mxu0 0
        %3101 = vmatpush1.bf16.msra.mxu0 %v2916
        %3102 = vmatprep.subr.bf16.mxu0 0
        %3103 = vmatpush1.bf16.msra.mxu0 %v2917
        %3104 = vmatprep.subr.bf16.mxu0 0
        %3105 = vmatpush1.bf16.msra.mxu0 0
        %3106 = vmatprep.subr.bf16.mxu0 0
        %3107 = vmatpush1.bf16.msra.mxu0 0
        %3108 = vmatprep.subr.bf16.mxu0 0
        %3109 = vmatpush1.bf16.msra.mxu0 0
        %3110 = vmatprep.subr.bf16.mxu0 0
        %3111 = vmatpush1.bf16.msra.mxu0 0
        %3112 = vmatprep.subr.bf16.mxu0 0
        %3113 = vmatpush1.bf16.msra.mxu0 0
        %3114 = vmatprep.subr.bf16.mxu0 0
        %3115 = vmatpush1.bf16.msra.mxu0 0
        %3116 = vmatprep.subr.bf16.mxu0 0
        %3117 = vmatpush1.bf16.msra.mxu0 0
        %3118 = vmatprep.subr.bf16.mxu0 0
        %3119 = vmatpush1.bf16.msra.mxu0 0
        %3120 = vmatprep.subr.bf16.mxu0 0
        %3121 = vmatpush1.bf16.msra.mxu0 0
        %3122 = vmatprep.subr.bf16.mxu0 0
        %3123 = vmatpush1.bf16.msra.mxu0 0
        %3124 = vmatprep.subr.bf16.mxu0 0
        %3125 = vmatpush1.bf16.msra.mxu0 0
        %3126 = vmatprep.subr.bf16.mxu0 0
        %3127 = vmatpush1.bf16.msra.mxu0 0
        %3128 = vmatprep.mubr.bf16.mxu0 0
        %3129 = vmatmul.mubr.bf16.gmra.mrb[0].mxu0 %v2955
        %v3130 = vpop.f32.mrb[0].mxu0
        %v3131 = vadd.f32 %v3066, %v3130
        %v3132 = vpop.f32.mrb[0].mxu0
        %v3133 = vpop.f32.mrb[0].mxu0
        %v3134 = vadd.f32 %v3069, %v3133
        %v3135 = vpop.f32.mrb[0].mxu0
        %3136 = vmatprep.mubr.bf16.mxu0 0
        %3137 = vmatmul.mubr.bf16.gmra.mrb[0].mxu0 %v2958
        %v3138 = vpop.f32.mrb[0].mxu0
        %v3139 = vadd.f32 %v3074, %v3138
        %v3140 = vpop.f32.mrb[0].mxu0
        %v3141 = vpop.f32.mrb[0].mxu0
        %v3142 = vadd.f32 %v3077, %v3141
        %v3143 = vpop.f32.mrb[0].mxu0
        %3144 = vmatprep.mubr.bf16.mxu0 0
        %3145 = vmatmul.mubr.bf16.gmra.mrb[0].mxu0 %v2961
        %v3146 = vpop.f32.mrb[0].mxu0
        %v3147 = vadd.f32 %v3082, %v3146
        %v3148 = vpop.f32.mrb[0].mxu0
        %v3149 = vpop.f32.mrb[0].mxu0
        %v3150 = vadd.f32 %v3085, %v3149
        %v3151 = vpop.f32.mrb[0].mxu0
        %3152 = vmatprep.mubr.bf16.mxu0 0
        %3153 = vmatmul.mubr.bf16.gmra.mrb[0].mxu0 %v2964
        %v3154 = vpop.f32.mrb[0].mxu0
        %v3155 = vadd.f32 %v3090, %v3154
        %v3156 = vpop.f32.mrb[0].mxu0
        %v3157 = vpop.f32.mrb[0].mxu0
        %v3158 = vadd.f32 %v3093, %v3157
        %v3159 = vpop.f32.mrb[0].mxu0
        %3160 = vdwg.mxu0
        %v3161 = vmax.f32 %v3131, 0.0
        %v3162 = vmax.f32 %v3134, 0.0
        %v3163 = vmax.f32 %v3139, 0.0
        %v3164 = vmax.f32 %v3142, 0.0
        %v3165 = vmax.f32 %v3147, 0.0
        %v3166 = vmax.f32 %v3150, 0.0
        %v3167 = vmax.f32 %v3155, 0.0
        %v3168 = vmax.f32 %v3158, 0.0
        %v3169 = vpack.c.bf16 %v3162, %v3161
        %v3170 = vpack.c.bf16 %v3164, %v3163
        %v3171 = vpack.c.bf16 %v3166, %v3165
        %v3172 = vpack.c.bf16 %v3168, %v3167
        %v3173 = vld [vmem:[%s13] sm:$0xff]
        %v3174 = vld [vmem:[%s13 + $0x8] sm:$0xff]
        %v3175 = vld [vmem:[%s13 + $0x10] sm:$0xff]
        %v3176 = vld [vmem:[%s13 + $0x18] sm:$0xff]
        %v3177 = vld [vmem:[%s13 + $0x20] sm:$0xff]
        %v3178 = vld [vmem:[%s13 + $0x28] sm:$0xff]
        %v3179 = vld [vmem:[%s13 + $0x30] sm:$0xff]
        %v3180 = vld [vmem:[%s13 + $0x38] sm:$0xff]
        %v3181 = vld [vmem:[%s14] sm:$0x3]
        %v3183 = vlaneseq
        %v3184 = vshrl.u32 %v3183, 7
        %v3185 = vsub.s32 0, %v3184
        %v3186 = vrot.slane %v3181, %v3185
        %v3187 = vlaneseq
        %v3188 = vshrl.u32 %v3187, 7
        %v3189 = vsub.s32 1, %v3188
        %v3190 = vrot.slane %v3181, %v3189
        %v3201 = vunpack.c.l.b16 %v3173
        %v3202 = vunpack.c.h.b16 %v3173
        %v3203 = vunpack.c.l.b16 %v3174
        %v3204 = vunpack.c.h.b16 %v3174
        %v3205 = vunpack.c.l.b16 %v3175
        %v3206 = vunpack.c.h.b16 %v3175
        %v3207 = vunpack.c.l.b16 %v3176
        %v3208 = vunpack.c.h.b16 %v3176
        %v3209 = vunpack.c.l.b16 %v3177
        %v3210 = vunpack.c.h.b16 %v3177
        %v3211 = vunpack.c.l.b16 %v3178
        %v3212 = vunpack.c.h.b16 %v3178
        %v3213 = vunpack.c.l.b16 %v3179
        %v3214 = vunpack.c.h.b16 %v3179
        %v3215 = vunpack.c.l.b16 %v3180
        %v3216 = vunpack.c.h.b16 %v3180
        %v3217 = vpack.c.b16 %v3203, %v3201
        %v3218 = vpack.c.b16 %v3204, %v3202
        %v3219 = vpack.c.b16 %v3207, %v3205
        %v3220 = vpack.c.b16 %v3208, %v3206
        %v3221 = vpack.c.b16 %v3211, %v3209
        %v3222 = vpack.c.b16 %v3212, %v3210
        %v3223 = vpack.c.b16 %v3215, %v3213
        %v3224 = vpack.c.b16 %v3216, %v3214
        %v3234 = vsel %vm846, %v3169, 0
        %v3237 = vsel %vm846, %v3170, 0
        %v3240 = vsel %vm846, %v3171, 0
        %v3243 = vsel %vm846, %v3172, 0
        %3245 = vmatprep.subr.bf16.mxu0 %v3218
        %3246 = vmatpush1.bf16.msra.mxu0 %v3217
        %3247 = vmatprep.subr.bf16.mxu0 %v3220
        %3248 = vmatpush1.bf16.msra.mxu0 %v3219
        %3249 = vmatprep.subr.bf16.mxu0 %v3222
        %3250 = vmatpush1.bf16.msra.mxu0 %v3221
        %3251 = vmatprep.subr.bf16.mxu0 %v3224
        %3252 = vmatpush1.bf16.msra.mxu0 %v3223
        %3253 = vmatprep.subr.bf16.mxu0 0
        %3254 = vmatpush1.bf16.msra.mxu0 0
        %3255 = vmatprep.subr.bf16.mxu0 0
        %3256 = vmatpush1.bf16.msra.mxu0 0
        %3257 = vmatprep.subr.bf16.mxu0 0
        %3258 = vmatpush1.bf16.msra.mxu0 0
        %3259 = vmatprep.subr.bf16.mxu0 0
        %3260 = vmatpush1.bf16.msra.mxu0 0
        %3261 = vmatprep.subr.bf16.mxu0 0
        %3262 = vmatpush1.bf16.msra.mxu0 0
        %3263 = vmatprep.subr.bf16.mxu0 0
        %3264 = vmatpush1.bf16.msra.mxu0 0
        %3265 = vmatprep.subr.bf16.mxu0 0
        %3266 = vmatpush1.bf16.msra.mxu0 0
        %3267 = vmatprep.subr.bf16.mxu0 0
        %3268 = vmatpush1.bf16.msra.mxu0 0
        %3269 = vmatprep.subr.bf16.mxu0 0
        %3270 = vmatpush1.bf16.msra.mxu0 0
        %3271 = vmatprep.subr.bf16.mxu0 0
        %3272 = vmatpush1.bf16.msra.mxu0 0
        %3273 = vmatprep.subr.bf16.mxu0 0
        %3274 = vmatpush1.bf16.msra.mxu0 0
        %3275 = vmatprep.subr.bf16.mxu0 0
        %3276 = vmatpush1.bf16.msra.mxu0 0
        %3277 = vmatprep.mubr.bf16.mxu0 0
        %3278 = vmatmul.mubr.bf16.gmra.mrb[0].mxu0 %v3234
        %v3279 = vpop.f32.mrb[0].mxu0
        %v3280 = vadd.f32 %v3186, %v3279
        %v3281 = vpop.f32.mrb[0].mxu0
        %v3282 = vadd.f32 %v3190, %v3281
        %v3283 = vpop.f32.mrb[0].mxu0
        %v3284 = vadd.f32 %v3186, %v3283
        %v3285 = vpop.f32.mrb[0].mxu0
        %v3286 = vadd.f32 %v3190, %v3285
        %3287 = vmatprep.mubr.bf16.mxu0 0
        %3288 = vmatmul.mubr.bf16.gmra.mrb[0].mxu0 %v3237
        %v3289 = vpop.f32.mrb[0].mxu0
        %v3290 = vadd.f32 %v3186, %v3289
        %v3291 = vpop.f32.mrb[0].mxu0
        %v3292 = vadd.f32 %v3190, %v3291
        %v3293 = vpop.f32.mrb[0].mxu0
        %v3294 = vadd.f32 %v3186, %v3293
        %v3295 = vpop.f32.mrb[0].mxu0
        %v3296 = vadd.f32 %v3190, %v3295
        %3297 = vmatprep.mubr.bf16.mxu0 0
        %3298 = vmatmul.mubr.bf16.gmra.mrb[0].mxu0 %v3240
        %v3299 = vpop.f32.mrb[0].mxu0
        %v3300 = vadd.f32 %v3186, %v3299
        %v3301 = vpop.f32.mrb[0].mxu0
        %v3302 = vadd.f32 %v3190, %v3301
        %v3303 = vpop.f32.mrb[0].mxu0
        %v3304 = vadd.f32 %v3186, %v3303
        %v3305 = vpop.f32.mrb[0].mxu0
        %v3306 = vadd.f32 %v3190, %v3305
        %3307 = vmatprep.mubr.bf16.mxu0 0
        %3308 = vmatmul.mubr.bf16.gmra.mrb[0].mxu0 %v3243
        %v3309 = vpop.f32.mrb[0].mxu0
        %v3310 = vadd.f32 %v3186, %v3309
        %v3311 = vpop.f32.mrb[0].mxu0
        %v3312 = vadd.f32 %v3190, %v3311
        %v3313 = vpop.f32.mrb[0].mxu0
        %v3314 = vadd.f32 %v3186, %v3313
        %v3315 = vpop.f32.mrb[0].mxu0
        %v3316 = vadd.f32 %v3190, %v3315
        %3317 = vdwg.mxu0
        %v3318 = vunpack.c.l.bf16 %v2170
        %v3319 = vunpack.c.l.bf16 %v2171
        %v3320 = vunpack.c.h.bf16 %v2170
        %v3321 = vunpack.c.h.bf16 %v2171
        %v3322 = vunpack.c.l.bf16 %v2172
        %v3323 = vunpack.c.l.bf16 %v2173
        %v3324 = vunpack.c.h.bf16 %v2172
        %v3325 = vunpack.c.h.bf16 %v2173
        %v3326 = vunpack.c.l.bf16 %v2174
        %v3327 = vunpack.c.l.bf16 %v2175
        %v3328 = vunpack.c.h.bf16 %v2174
        %v3329 = vunpack.c.h.bf16 %v2175
        %v3330 = vunpack.c.l.bf16 %v2176
        %v3331 = vunpack.c.l.bf16 %v2177
        %v3332 = vunpack.c.h.bf16 %v2176
        %v3333 = vunpack.c.h.bf16 %v2177
        %v3334 = vadd.f32 %v3280, %v3318
        %v3335 = vadd.f32 %v3282, %v3319
        %v3336 = vadd.f32 %v3284, %v3320
        %v3337 = vadd.f32 %v3286, %v3321
        %v3338 = vadd.f32 %v3290, %v3322
        %v3339 = vadd.f32 %v3292, %v3323
        %v3340 = vadd.f32 %v3294, %v3324
        %v3341 = vadd.f32 %v3296, %v3325
        %v3342 = vadd.f32 %v3300, %v3326
        %v3343 = vadd.f32 %v3302, %v3327
        %v3344 = vadd.f32 %v3304, %v3328
        %v3345 = vadd.f32 %v3306, %v3329
        %v3346 = vadd.f32 %v3310, %v3330
        %v3347 = vadd.f32 %v3312, %v3331
        %v3348 = vadd.f32 %v3314, %v3332
        %v3349 = vadd.f32 %v3316, %v3333
        %v3350 = vmax.f32 %v3334, 0.0
        %v3351 = vmax.f32 %v3335, 0.0
        %v3352 = vmax.f32 %v3336, 0.0
        %v3353 = vmax.f32 %v3337, 0.0
        %v3354 = vmax.f32 %v3338, 0.0
        %v3355 = vmax.f32 %v3339, 0.0
        %v3356 = vmax.f32 %v3340, 0.0
        %v3357 = vmax.f32 %v3341, 0.0
        %v3358 = vmax.f32 %v3342, 0.0
        %v3359 = vmax.f32 %v3343, 0.0
        %v3360 = vmax.f32 %v3344, 0.0
        %v3361 = vmax.f32 %v3345, 0.0
        %v3362 = vmax.f32 %v3346, 0.0
        %v3363 = vmax.f32 %v3347, 0.0
        %v3364 = vmax.f32 %v3348, 0.0
        %v3365 = vmax.f32 %v3349, 0.0
        %v3366 = vpack.c.bf16 %v3352, %v3350
        %v3367 = vpack.c.bf16 %v3353, %v3351
        %v3368 = vpack.c.bf16 %v3356, %v3354
        %v3369 = vpack.c.bf16 %v3357, %v3355
        %v3370 = vpack.c.bf16 %v3360, %v3358
        %v3371 = vpack.c.bf16 %v3361, %v3359
        %v3372 = vpack.c.bf16 %v3364, %v3362
        %v3373 = vpack.c.bf16 %v3365, %v3363
        %v3374 = vld [vmem:[%s15] sm:$0xf]
        %v3375 = vld [vmem:[%s15 + $0x4] sm:$0xf]
        %v3376 = vld [vmem:[%s15 + $0x8] sm:$0xf]
        %v3377 = vld [vmem:[%s15 + $0xc] sm:$0xf]
        %v3378 = vld [vmem:[%s15 + $0x10] sm:$0xf]
        %v3379 = vld [vmem:[%s15 + $0x14] sm:$0xf]
        %v3380 = vld [vmem:[%s15 + $0x18] sm:$0xf]
        %v3381 = vld [vmem:[%s15 + $0x1c] sm:$0xf]
        %v3382 = vld [vmem:[%s15 + $0x20] sm:$0xf]
        %v3383 = vld [vmem:[%s15 + $0x24] sm:$0xf]
        %v3384 = vld [vmem:[%s15 + $0x28] sm:$0xf]
        %v3385 = vld [vmem:[%s15 + $0x2c] sm:$0xf]
        %v3386 = vld [vmem:[%s15 + $0x30] sm:$0xf]
        %v3387 = vld [vmem:[%s15 + $0x34] sm:$0xf]
        %v3388 = vld [vmem:[%s15 + $0x38] sm:$0xf]
        %v3389 = vld [vmem:[%s15 + $0x3c] sm:$0xf]
        %v3390 = vld [vmem:[%s15 + $0x40] sm:$0xf]
        %v3391 = vld [vmem:[%s15 + $0x44] sm:$0xf]
        %v3392 = vld [vmem:[%s15 + $0x48] sm:$0xf]
        %v3393 = vld [vmem:[%s15 + $0x4c] sm:$0xf]
        %v3394 = vld [vmem:[%s15 + $0x50] sm:$0xf]
        %v3395 = vld [vmem:[%s15 + $0x54] sm:$0xf]
        %v3396 = vld [vmem:[%s15 + $0x58] sm:$0xf]
        %v3397 = vld [vmem:[%s15 + $0x5c] sm:$0xf]
        %v3398 = vld [vmem:[%s15 + $0x60] sm:$0xf]
        %v3399 = vld [vmem:[%s15 + $0x64] sm:$0xf]
        %v3400 = vld [vmem:[%s15 + $0x68] sm:$0xf]
        %v3401 = vld [vmem:[%s15 + $0x6c] sm:$0xf]
        %v3402 = vld [vmem:[%s15 + $0x70] sm:$0xf]
        %v3403 = vld [vmem:[%s15 + $0x74] sm:$0xf]
        %v3404 = vld [vmem:[%s15 + $0x78] sm:$0xf]
        %v3405 = vld [vmem:[%s15 + $0x7c] sm:$0xf]
        %v3406 = vld [vmem:[%s16] sm:$0x1]
        %v3408 = vlaneseq
        %v3409 = vshrl.u32 %v3408, 7
        %v3410 = vsub.s32 0, %v3409
        %v3411 = vrot.slane %v3406, %v3410
        %v3445 = vunpack.c.l.b16 %v3374
        %v3446 = vunpack.c.l.b16 %v3375
        %v3447 = vunpack.c.l.b16 %v3376
        %v3448 = vunpack.c.l.b16 %v3377
        %v3449 = vunpack.c.l.b16 %v3378
        %v3450 = vunpack.c.l.b16 %v3379
        %v3451 = vunpack.c.l.b16 %v3380
        %v3452 = vunpack.c.l.b16 %v3381
        %v3453 = vunpack.c.l.b16 %v3382
        %v3454 = vunpack.c.l.b16 %v3383
        %v3455 = vunpack.c.l.b16 %v3384
        %v3456 = vunpack.c.l.b16 %v3385
        %v3457 = vunpack.c.l.b16 %v3386
        %v3458 = vunpack.c.l.b16 %v3387
        %v3459 = vunpack.c.l.b16 %v3388
        %v3460 = vunpack.c.l.b16 %v3389
        %v3461 = vunpack.c.l.b16 %v3390
        %v3462 = vunpack.c.l.b16 %v3391
        %v3463 = vunpack.c.l.b16 %v3392
        %v3464 = vunpack.c.l.b16 %v3393
        %v3465 = vunpack.c.l.b16 %v3394
        %v3466 = vunpack.c.l.b16 %v3395
        %v3467 = vunpack.c.l.b16 %v3396
        %v3468 = vunpack.c.l.b16 %v3397
        %v3469 = vunpack.c.l.b16 %v3398
        %v3470 = vunpack.c.l.b16 %v3399
        %v3471 = vunpack.c.l.b16 %v3400
        %v3472 = vunpack.c.l.b16 %v3401
        %v3473 = vunpack.c.l.b16 %v3402
        %v3474 = vunpack.c.l.b16 %v3403
        %v3475 = vunpack.c.l.b16 %v3404
        %v3476 = vunpack.c.l.b16 %v3405
        %v3477 = vpack.c.b16 %v3446, %v3445
        %v3478 = vpack.c.b16 %v3448, %v3447
        %v3479 = vpack.c.b16 %v3450, %v3449
        %v3480 = vpack.c.b16 %v3452, %v3451
        %v3481 = vpack.c.b16 %v3454, %v3453
        %v3482 = vpack.c.b16 %v3456, %v3455
        %v3483 = vpack.c.b16 %v3458, %v3457
        %v3484 = vpack.c.b16 %v3460, %v3459
        %v3485 = vpack.c.b16 %v3462, %v3461
        %v3486 = vpack.c.b16 %v3464, %v3463
        %v3487 = vpack.c.b16 %v3466, %v3465
        %v3488 = vpack.c.b16 %v3468, %v3467
        %v3489 = vpack.c.b16 %v3470, %v3469
        %v3490 = vpack.c.b16 %v3472, %v3471
        %v3491 = vpack.c.b16 %v3474, %v3473
        %v3492 = vpack.c.b16 %v3476, %v3475
        %3509 = vmatprep.subr.bf16.mxu0 0
        %3510 = vmatpush1.bf16.msra.mxu0 %v3477
        %3511 = vmatprep.subr.bf16.mxu0 0
        %3512 = vmatpush1.bf16.msra.mxu0 %v3478
        %3513 = vmatprep.subr.bf16.mxu0 0
        %3514 = vmatpush1.bf16.msra.mxu0 %v3479
        %3515 = vmatprep.subr.bf16.mxu0 0
        %3516 = vmatpush1.bf16.msra.mxu0 %v3480
        %3517 = vmatprep.subr.bf16.mxu0 0
        %3518 = vmatpush1.bf16.msra.mxu0 %v3481
        %3519 = vmatprep.subr.bf16.mxu0 0
        %3520 = vmatpush1.bf16.msra.mxu0 %v3482
        %3521 = vmatprep.subr.bf16.mxu0 0
        %3522 = vmatpush1.bf16.msra.mxu0 %v3483
        %3523 = vmatprep.subr.bf16.mxu0 0
        %3524 = vmatpush1.bf16.msra.mxu0 %v3484
        %3525 = vmatprep.subr.bf16.mxu0 0
        %3526 = vmatpush1.bf16.msra.mxu0 %v3485
        %3527 = vmatprep.subr.bf16.mxu0 0
        %3528 = vmatpush1.bf16.msra.mxu0 %v3486
        %3529 = vmatprep.subr.bf16.mxu0 0
        %3530 = vmatpush1.bf16.msra.mxu0 %v3487
        %3531 = vmatprep.subr.bf16.mxu0 0
        %3532 = vmatpush1.bf16.msra.mxu0 %v3488
        %3533 = vmatprep.subr.bf16.mxu0 0
        %3534 = vmatpush1.bf16.msra.mxu0 %v3489
        %3535 = vmatprep.subr.bf16.mxu0 0
        %3536 = vmatpush1.bf16.msra.mxu0 %v3490
        %3537 = vmatprep.subr.bf16.mxu0 0
        %3538 = vmatpush1.bf16.msra.mxu0 %v3491
        %3539 = vmatprep.subr.bf16.mxu0 0
        %3540 = vmatpush1.bf16.msra.mxu0 %v3492
        %3541 = vmatprep.mubr.bf16.mxu0 %v3367
        %3542 = vmatmul.mubr.bf16.gmra.mrb[0].mxu0 %v3366
        %v3543 = vpop.f32.mrb[0].mxu0
        %v3544 = vadd.f32 %v3411, %v3543
        %v3545 = vpop.f32.mrb[0].mxu0
        %v3546 = vpop.f32.mrb[0].mxu0
        %v3547 = vadd.f32 %v3411, %v3546
        %v3548 = vpop.f32.mrb[0].mxu0
        %3549 = vmatprep.mubr.bf16.mxu0 %v3369
        %3550 = vmatmul.mubr.bf16.gmra.mrb[0].mxu0 %v3368
        %v3551 = vpop.f32.mrb[0].mxu0
        %v3552 = vadd.f32 %v3411, %v3551
        %v3553 = vpop.f32.mrb[0].mxu0
        %v3554 = vpop.f32.mrb[0].mxu0
        %v3555 = vadd.f32 %v3411, %v3554
        %v3556 = vpop.f32.mrb[0].mxu0
        %3557 = vmatprep.mubr.bf16.mxu0 %v3371
        %3558 = vmatmul.mubr.bf16.gmra.mrb[0].mxu0 %v3370
        %v3559 = vpop.f32.mrb[0].mxu0
        %v3560 = vadd.f32 %v3411, %v3559
        %v3561 = vpop.f32.mrb[0].mxu0
        %v3562 = vpop.f32.mrb[0].mxu0
        %v3563 = vadd.f32 %v3411, %v3562
        %v3564 = vpop.f32.mrb[0].mxu0
        %3565 = vmatprep.mubr.bf16.mxu0 %v3373
        %3566 = vmatmul.mubr.bf16.gmra.mrb[0].mxu0 %v3372
        %v3567 = vpop.f32.mrb[0].mxu0
        %v3568 = vadd.f32 %v3411, %v3567
        %v3569 = vpop.f32.mrb[0].mxu0
        %v3570 = vpop.f32.mrb[0].mxu0
        %v3571 = vadd.f32 %v3411, %v3570
        %v3572 = vpop.f32.mrb[0].mxu0
        %3573 = vdwg.mxu0
        %v3574 = vmax.f32 %v3544, 0.0
        %v3575 = vmax.f32 %v3547, 0.0
        %v3576 = vmax.f32 %v3552, 0.0
        %v3577 = vmax.f32 %v3555, 0.0
        %v3578 = vmax.f32 %v3560, 0.0
        %v3579 = vmax.f32 %v3563, 0.0
        %v3580 = vmax.f32 %v3568, 0.0
        %v3581 = vmax.f32 %v3571, 0.0
        %v3582 = vpack.c.bf16 %v3575, %v3574
        %v3583 = vpack.c.bf16 %v3577, %v3576
        %v3584 = vpack.c.bf16 %v3579, %v3578
        %v3585 = vpack.c.bf16 %v3581, %v3580
        %v3587 = vshrl.u32 %v3582, 16
        %v3589 = vrot.slane %v3587, 3
        %v3590 = vshll.u32 %v3582, 16
        %v3592 = vrot.slane %v3590, 4
        %v3593 = vor.u32 %v3589, %v3592
        %v3595 = vshrl.u32 %v3583, 16
        %v3597 = vrot.slane %v3595, 3
        %v3598 = vshll.u32 %v3583, 16
        %v3600 = vrot.slane %v3598, 4
        %v3601 = vor.u32 %v3597, %v3600
        %v3602 = vsel %vm936, %v3593, %v3601
        %v3604 = vshrl.u32 %v3584, 16
        %v3606 = vrot.slane %v3604, 3
        %v3607 = vshll.u32 %v3584, 16
        %v3609 = vrot.slane %v3607, 4
        %v3610 = vor.u32 %v3606, %v3609
        %v3611 = vsel %vm936, %v3601, %v3610
        %v3613 = vshrl.u32 %v3585, 16
        %v3615 = vrot.slane %v3613, 3
        %v3616 = vshll.u32 %v3585, 16
        %v3618 = vrot.slane %v3616, 4
        %v3619 = vor.u32 %v3615, %v3618
        %v3620 = vsel %vm936, %v3610, %v3619
        %v3626 = vsel %vm978, 0, %v3593
        %v3627 = vsel %vm978, %v3619, 0
        %v3628 = vsel %vm1025, %v3626, 0
        %v3629 = vsel %vm1026, %v3602, 0
        %v3630 = vsel %vm1027, %v3611, 0
        %v3631 = vsel %vm1028, %v3620, 0
        %v3632 = vsel %vm1085, %v3626, 0
        %v3633 = vsel %vm1086, %v3602, 0
        %v3634 = vsel %vm1087, %v3611, 0
        %v3635 = vsel %vm1088, %v3620, 0
        %v3636 = vsel %vm1089, %v3627, 0
        %v3637 = vsel %vm1100, %v3626, 0
        %v3638 = vsel %vm1101, %v3602, 0
        %v3639 = vsel %vm1102, %v3611, 0
        %v3640 = vsel %vm1103, %v3620, 0
        %v3641 = vsel %vm1104, %v3627, 0
        %v3642 = vsel %vm1117, %v3626, 0
        %v3643 = vsel %vm1118, %v3602, 0
        %v3644 = vsel %vm1119, %v3611, 0
        %v3645 = vsel %vm1120, %v3620, 0
        %v3646 = vsel %vm1121, %v3627, 0
        %v3647 = vsel %vm1025, %v3602, 0
        %v3648 = vsel %vm1026, %v3611, 0
        %v3649 = vsel %vm1027, %v3620, 0
        %v3650 = vsel %vm1028, %v3627, 0
        %v3651 = vsel %vm1085, %v3602, 0
        %v3652 = vsel %vm1086, %v3611, 0
        %v3653 = vsel %vm1087, %v3620, 0
        %v3654 = vsel %vm1088, %v3627, 0
        %v3656 = vshrl.u32 %v3626, 16
        %v3658 = vshll.u32 %v3626, 16
        %v3660 = vrot.slane %v3658, 1
        %v3661 = vor.u32 %v3656, %v3660
        %v3663 = vshll.u32 %v3602, 16
        %v3665 = vrot.slane %v3663, 1
        %v3666 = vsel %vm1135, %v3661, %v3665
        %v3667 = vshrl.u32 %v3602, 16
        %v3669 = vor.u32 %v3667, %v3665
        %v3671 = vshll.u32 %v3611, 16
        %v3673 = vrot.slane %v3671, 1
        %v3674 = vsel %vm1135, %v3669, %v3673
        %v3675 = vshrl.u32 %v3611, 16
        %v3677 = vor.u32 %v3675, %v3673
        %v3679 = vshll.u32 %v3620, 16
        %v3681 = vrot.slane %v3679, 1
        %v3682 = vsel %vm1135, %v3677, %v3681
        %v3683 = vshrl.u32 %v3620, 16
        %v3685 = vor.u32 %v3683, %v3681
        %v3687 = vshll.u32 %v3627, 16
        %v3689 = vrot.slane %v3687, 1
        %v3690 = vsel %vm1135, %v3685, %v3689
        %3691 = vrot.lane.b32.xlu0 %v3666, 64
        %v3692 = vpop.permute.xlu0 %3691
        %3693 = vrot.lane.b32.xlu0 %v3674, 64
        %v3694 = vpop.permute.xlu0 %3693
        %3695 = vrot.lane.b32.xlu0 %v3682, 64
        %v3696 = vpop.permute.xlu0 %3695
        %3697 = vrot.lane.b32.xlu0 %v3690, 64
        %v3698 = vpop.permute.xlu0 %3697
        %v3704 = vrot.slane %v3632, 1
        %v3705 = vrot.slane %v3633, 1
        %v3706 = vsel %vm1185, %v3704, %v3705
        %v3707 = vrot.slane %v3634, 1
        %v3708 = vsel %vm1185, %v3705, %v3707
        %v3709 = vrot.slane %v3635, 1
        %v3710 = vsel %vm1185, %v3707, %v3709
        %v3711 = vrot.slane %v3636, 1
        %v3712 = vsel %vm1185, %v3709, %v3711
        %v3718 = vrot.slane %v3637, 4
        %v3719 = vrot.slane %v3638, 4
        %v3720 = vsel %vm1200, %v3718, %v3719
        %v3721 = vrot.slane %v3639, 4
        %v3722 = vsel %vm1200, %v3719, %v3721
        %v3723 = vrot.slane %v3640, 4
        %v3724 = vsel %vm1200, %v3721, %v3723
        %v3725 = vrot.slane %v3641, 4
        %v3726 = vsel %vm1200, %v3723, %v3725
        %3727 = vrot.lane.b32.xlu0 %v3720, 64
        %v3728 = vpop.permute.xlu0 %3727
        %3729 = vrot.lane.b32.xlu0 %v3722, 64
        %v3730 = vpop.permute.xlu0 %3729
        %3731 = vrot.lane.b32.xlu0 %v3724, 64
        %v3732 = vpop.permute.xlu0 %3731
        %3733 = vrot.lane.b32.xlu0 %v3726, 64
        %v3734 = vpop.permute.xlu0 %3733
        %v3735 = vrot.slane %v3656, 4
        %v3736 = vrot.slane %v3658, 5
        %v3737 = vor.u32 %v3735, %v3736
        %v3738 = vrot.slane %v3667, 4
        %v3739 = vrot.slane %v3663, 5
        %v3740 = vor.u32 %v3738, %v3739
        %v3741 = vsel %vm1218, %v3737, %v3740
        %v3742 = vrot.slane %v3675, 4
        %v3743 = vrot.slane %v3671, 5
        %v3744 = vor.u32 %v3742, %v3743
        %v3745 = vsel %vm1218, %v3740, %v3744
        %v3746 = vrot.slane %v3683, 4
        %v3747 = vrot.slane %v3679, 5
        %v3748 = vor.u32 %v3746, %v3747
        %v3749 = vsel %vm1218, %v3744, %v3748
        %v3750 = vshrl.u32 %v3627, 16
        %v3752 = vrot.slane %v3750, 4
        %v3753 = vrot.slane %v3687, 5
        %v3754 = vor.u32 %v3752, %v3753
        %v3755 = vsel %vm1218, %v3748, %v3754
        %v3761 = vrot.slane %v3642, 5
        %v3762 = vrot.slane %v3643, 5
        %v3763 = vsel %vm1245, %v3761, %v3762
        %v3764 = vrot.slane %v3644, 5
        %v3765 = vsel %vm1245, %v3762, %v3764
        %v3766 = vrot.slane %v3645, 5
        %v3767 = vsel %vm1245, %v3764, %v3766
        %v3768 = vrot.slane %v3646, 5
        %v3769 = vsel %vm1245, %v3766, %v3768
        %3770 = vrot.lane.b32.xlu0 %v3763, 64
        %v3771 = vpop.permute.xlu0 %3770
        %3772 = vrot.lane.b32.xlu0 %v3765, 64
        %v3773 = vpop.permute.xlu0 %3772
        %3774 = vrot.lane.b32.xlu0 %v3767, 64
        %v3775 = vpop.permute.xlu0 %3774
        %3776 = vrot.lane.b32.xlu0 %v3769, 64
        %v3777 = vpop.permute.xlu0 %3776
        %v3778 = vor.u32 %v3750, %v3689
        %v3779 = vsel %vm1135, %v3778, %v1267
        %3780 = vrot.lane.b32.xlu0 %v3779, 64
        %v3781 = vpop.permute.xlu0 %3780
        %v3786 = vrot.slane %v3651, 1
        %v3787 = vrot.slane %v3652, 1
        %v3788 = vsel %vm1185, %v3786, %v3787
        %v3789 = vrot.slane %v3653, 1
        %v3790 = vsel %vm1185, %v3787, %v3789
        %v3791 = vrot.slane %v3654, 1
        %v3792 = vsel %vm1185, %v3789, %v3791
        %v3793 = vsel %vm1185, %v3791, %v1283
        %v3796 = vsel %vm846, %v3628, %v3692
        %v3800 = vsel %vm846, %v3629, %v3694
        %v3804 = vsel %vm846, %v3630, %v3696
        %v3808 = vsel %vm846, %v3631, %v3698
        %v3812 = vsel %vm846, %v3706, %v3728
        %v3816 = vsel %vm846, %v3708, %v3730
        %v3820 = vsel %vm846, %v3710, %v3732
        %v3824 = vsel %vm846, %v3712, %v3734
        %v3828 = vsel %vm846, %v3741, %v3771
        %v3832 = vsel %vm846, %v3745, %v3773
        %v3836 = vsel %vm846, %v3749, %v3775
        %v3840 = vsel %vm846, %v3755, %v3777
        %v3843 = vsel %vm846, %v3647, %v3694
        %v3846 = vsel %vm846, %v3648, %v3696
        %v3849 = vsel %vm846, %v3649, %v3698
        %v3853 = vsel %vm846, %v3650, %v3781
        %v3855 = vld [vmem:[%s17] sm:$0xf]
        %v3856 = vld [vmem:[%s17 + $0x4] sm:$0xf]
        %v3857 = vld [vmem:[%s17 + $0x8] sm:$0xf]
        %v3858 = vld [vmem:[%s17 + $0xc] sm:$0xf]
        %v3859 = vld [vmem:[%s17 + $0x10] sm:$0xf]
        %v3860 = vld [vmem:[%s17 + $0x14] sm:$0xf]
        %v3861 = vld [vmem:[%s17 + $0x18] sm:$0xf]
        %v3862 = vld [vmem:[%s17 + $0x1c] sm:$0xf]
        %v3863 = vld [vmem:[%s17 + $0x20] sm:$0xf]
        %v3864 = vld [vmem:[%s17 + $0x24] sm:$0xf]
        %v3865 = vld [vmem:[%s17 + $0x28] sm:$0xf]
        %v3866 = vld [vmem:[%s17 + $0x2c] sm:$0xf]
        %v3867 = vld [vmem:[%s17 + $0x30] sm:$0xf]
        %v3868 = vld [vmem:[%s17 + $0x34] sm:$0xf]
        %v3869 = vld [vmem:[%s17 + $0x38] sm:$0xf]
        %v3870 = vld [vmem:[%s17 + $0x3c] sm:$0xf]
        %v3871 = vld [vmem:[%s17 + $0x40] sm:$0xf]
        %v3872 = vld [vmem:[%s17 + $0x44] sm:$0xf]
        %v3873 = vld [vmem:[%s17 + $0x48] sm:$0xf]
        %v3874 = vld [vmem:[%s17 + $0x4c] sm:$0xf]
        %v3875 = vld [vmem:[%s17 + $0x50] sm:$0xf]
        %v3876 = vld [vmem:[%s17 + $0x54] sm:$0xf]
        %v3877 = vld [vmem:[%s17 + $0x58] sm:$0xf]
        %v3878 = vld [vmem:[%s17 + $0x5c] sm:$0xf]
        %v3879 = vld [vmem:[%s17 + $0x60] sm:$0xf]
        %v3880 = vld [vmem:[%s17 + $0x64] sm:$0xf]
        %v3881 = vld [vmem:[%s17 + $0x68] sm:$0xf]
        %v3882 = vld [vmem:[%s17 + $0x6c] sm:$0xf]
        %v3883 = vld [vmem:[%s17 + $0x70] sm:$0xf]
        %v3884 = vld [vmem:[%s17 + $0x74] sm:$0xf]
        %v3885 = vld [vmem:[%s17 + $0x78] sm:$0xf]
        %v3886 = vld [vmem:[%s17 + $0x7c] sm:$0xf]
        %v3887 = vld [vmem:[%s17 + $0x80] sm:$0xf]
        %v3888 = vld [vmem:[%s17 + $0x84] sm:$0xf]
        %v3889 = vld [vmem:[%s17 + $0x88] sm:$0xf]
        %v3890 = vld [vmem:[%s17 + $0x8c] sm:$0xf]
        %v3891 = vld [vmem:[%s17 + $0x90] sm:$0xf]
        %v3892 = vld [vmem:[%s17 + $0x94] sm:$0xf]
        %v3893 = vld [vmem:[%s17 + $0x98] sm:$0xf]
        %v3894 = vld [vmem:[%s17 + $0x9c] sm:$0xf]
        %v3895 = vld [vmem:[%s17 + $0xa0] sm:$0xf]
        %v3896 = vld [vmem:[%s17 + $0xa4] sm:$0xf]
        %v3897 = vld [vmem:[%s17 + $0xa8] sm:$0xf]
        %v3898 = vld [vmem:[%s17 + $0xac] sm:$0xf]
        %v3899 = vld [vmem:[%s17 + $0xb0] sm:$0xf]
        %v3900 = vld [vmem:[%s17 + $0xb4] sm:$0xf]
        %v3901 = vld [vmem:[%s17 + $0xb8] sm:$0xf]
        %v3902 = vld [vmem:[%s17 + $0xbc] sm:$0xf]
        %v3903 = vld [vmem:[%s17 + $0xc0] sm:$0xf]
        %v3904 = vld [vmem:[%s17 + $0xc4] sm:$0xf]
        %v3905 = vld [vmem:[%s17 + $0xc8] sm:$0xf]
        %v3906 = vld [vmem:[%s17 + $0xcc] sm:$0xf]
        %v3907 = vld [vmem:[%s17 + $0xd0] sm:$0xf]
        %v3908 = vld [vmem:[%s17 + $0xd4] sm:$0xf]
        %v3909 = vld [vmem:[%s17 + $0xd8] sm:$0xf]
        %v3910 = vld [vmem:[%s17 + $0xdc] sm:$0xf]
        %v3911 = vld [vmem:[%s17 + $0xe0] sm:$0xf]
        %v3912 = vld [vmem:[%s17 + $0xe4] sm:$0xf]
        %v3913 = vld [vmem:[%s17 + $0xe8] sm:$0xf]
        %v3914 = vld [vmem:[%s17 + $0xec] sm:$0xf]
        %v3915 = vld [vmem:[%s17 + $0xf0] sm:$0xf]
        %v3916 = vld [vmem:[%s17 + $0xf4] sm:$0xf]
        %v3917 = vld [vmem:[%s17 + $0xf8] sm:$0xf]
        %v3918 = vld [vmem:[%s17 + $0xfc] sm:$0xf]
        %v3919 = vld [vmem:[%s17 + $0x100] sm:$0xf]
        %v3920 = vld [vmem:[%s17 + $0x104] sm:$0xf]
        %v3921 = vld [vmem:[%s17 + $0x108] sm:$0xf]
        %v3922 = vld [vmem:[%s17 + $0x10c] sm:$0xf]
        %v3923 = vld [vmem:[%s17 + $0x110] sm:$0xf]
        %v3924 = vld [vmem:[%s17 + $0x114] sm:$0xf]
        %v3925 = vld [vmem:[%s17 + $0x118] sm:$0xf]
        %v3926 = vld [vmem:[%s17 + $0x11c] sm:$0xf]
        %v3927 = vld [vmem:[%s18] sm:$0x1]
        %v3929 = vlaneseq
        %v3930 = vshrl.u32 %v3929, 7
        %v3931 = vsub.s32 0, %v3930
        %v3932 = vrot.slane %v3927, %v3931
        %v4006 = vunpack.c.l.b16 %v3855
        %v4007 = vunpack.c.l.b16 %v3856
        %v4008 = vunpack.c.l.b16 %v3857
        %v4009 = vunpack.c.l.b16 %v3858
        %v4010 = vunpack.c.l.b16 %v3859
        %v4011 = vunpack.c.l.b16 %v3860
        %v4012 = vunpack.c.l.b16 %v3861
        %v4013 = vunpack.c.l.b16 %v3862
        %v4014 = vunpack.c.l.b16 %v3863
        %v4015 = vunpack.c.l.b16 %v3864
        %v4016 = vunpack.c.l.b16 %v3865
        %v4017 = vunpack.c.l.b16 %v3866
        %v4018 = vunpack.c.l.b16 %v3867
        %v4019 = vunpack.c.l.b16 %v3868
        %v4020 = vunpack.c.l.b16 %v3869
        %v4021 = vunpack.c.l.b16 %v3870
        %v4022 = vunpack.c.l.b16 %v3871
        %v4023 = vunpack.c.l.b16 %v3872
        %v4024 = vunpack.c.l.b16 %v3873
        %v4025 = vunpack.c.l.b16 %v3874
        %v4026 = vunpack.c.l.b16 %v3875
        %v4027 = vunpack.c.l.b16 %v3876
        %v4028 = vunpack.c.l.b16 %v3877
        %v4029 = vunpack.c.l.b16 %v3878
        %v4030 = vunpack.c.l.b16 %v3879
        %v4031 = vunpack.c.l.b16 %v3880
        %v4032 = vunpack.c.l.b16 %v3881
        %v4033 = vunpack.c.l.b16 %v3882
        %v4034 = vunpack.c.l.b16 %v3883
        %v4035 = vunpack.c.l.b16 %v3884
        %v4036 = vunpack.c.l.b16 %v3885
        %v4037 = vunpack.c.l.b16 %v3886
        %v4038 = vunpack.c.l.b16 %v3887
        %v4039 = vunpack.c.l.b16 %v3888
        %v4040 = vunpack.c.l.b16 %v3889
        %v4041 = vunpack.c.l.b16 %v3890
        %v4042 = vunpack.c.l.b16 %v3891
        %v4043 = vunpack.c.l.b16 %v3892
        %v4044 = vunpack.c.l.b16 %v3893
        %v4045 = vunpack.c.l.b16 %v3894
        %v4046 = vunpack.c.l.b16 %v3895
        %v4047 = vunpack.c.l.b16 %v3896
        %v4048 = vunpack.c.l.b16 %v3897
        %v4049 = vunpack.c.l.b16 %v3898
        %v4050 = vunpack.c.l.b16 %v3899
        %v4051 = vunpack.c.l.b16 %v3900
        %v4052 = vunpack.c.l.b16 %v3901
        %v4053 = vunpack.c.l.b16 %v3902
        %v4054 = vunpack.c.l.b16 %v3903
        %v4055 = vunpack.c.l.b16 %v3904
        %v4056 = vunpack.c.l.b16 %v3905
        %v4057 = vunpack.c.l.b16 %v3906
        %v4058 = vunpack.c.l.b16 %v3907
        %v4059 = vunpack.c.l.b16 %v3908
        %v4060 = vunpack.c.l.b16 %v3909
        %v4061 = vunpack.c.l.b16 %v3910
        %v4062 = vunpack.c.l.b16 %v3911
        %v4063 = vunpack.c.l.b16 %v3912
        %v4064 = vunpack.c.l.b16 %v3913
        %v4065 = vunpack.c.l.b16 %v3914
        %v4066 = vunpack.c.l.b16 %v3915
        %v4067 = vunpack.c.l.b16 %v3916
        %v4068 = vunpack.c.l.b16 %v3917
        %v4069 = vunpack.c.l.b16 %v3918
        %v4070 = vunpack.c.l.b16 %v3919
        %v4071 = vunpack.c.l.b16 %v3920
        %v4072 = vunpack.c.l.b16 %v3921
        %v4073 = vunpack.c.l.b16 %v3922
        %v4074 = vunpack.c.l.b16 %v3923
        %v4075 = vunpack.c.l.b16 %v3924
        %v4076 = vunpack.c.l.b16 %v3925
        %v4077 = vunpack.c.l.b16 %v3926
        %v4078 = vpack.c.b16 %v4007, %v4006
        %v4079 = vpack.c.b16 %v4009, %v4008
        %v4080 = vpack.c.b16 %v4011, %v4010
        %v4081 = vpack.c.b16 %v4013, %v4012
        %v4082 = vpack.c.b16 %v4015, %v4014
        %v4083 = vpack.c.b16 %v4017, %v4016
        %v4084 = vpack.c.b16 %v4019, %v4018
        %v4085 = vpack.c.b16 %v4021, %v4020
        %v4086 = vpack.c.b16 %v4023, %v4022
        %v4087 = vpack.c.b16 %v4025, %v4024
        %v4088 = vpack.c.b16 %v4027, %v4026
        %v4089 = vpack.c.b16 %v4029, %v4028
        %v4090 = vpack.c.b16 %v4031, %v4030
        %v4091 = vpack.c.b16 %v4033, %v4032
        %v4092 = vpack.c.b16 %v4035, %v4034
        %v4093 = vpack.c.b16 %v4037, %v4036
        %v4094 = vpack.c.b16 %v4039, %v4038
        %v4095 = vpack.c.b16 %v4041, %v4040
        %v4096 = vpack.c.b16 %v4043, %v4042
        %v4097 = vpack.c.b16 %v4045, %v4044
        %v4098 = vpack.c.b16 %v4047, %v4046
        %v4099 = vpack.c.b16 %v4049, %v4048
        %v4100 = vpack.c.b16 %v4051, %v4050
        %v4101 = vpack.c.b16 %v4053, %v4052
        %v4102 = vpack.c.b16 %v4055, %v4054
        %v4103 = vpack.c.b16 %v4057, %v4056
        %v4104 = vpack.c.b16 %v4059, %v4058
        %v4105 = vpack.c.b16 %v4061, %v4060
        %v4106 = vpack.c.b16 %v4063, %v4062
        %v4107 = vpack.c.b16 %v4065, %v4064
        %v4108 = vpack.c.b16 %v4067, %v4066
        %v4109 = vpack.c.b16 %v4069, %v4068
        %v4110 = vpack.c.b16 %v4071, %v4070
        %v4111 = vpack.c.b16 %v4073, %v4072
        %v4112 = vpack.c.b16 %v4075, %v4074
        %v4113 = vpack.c.b16 %v4077, %v4076
        %v4151 = vsel %vm846, %v3788, 0
        %v4154 = vsel %vm846, %v3790, 0
        %v4157 = vsel %vm846, %v3792, 0
        %v4160 = vsel %vm846, %v3793, 0
        %4162 = vmatprep.subr.bf16.mxu0 0
        %4163 = vmatpush1.bf16.msra.mxu0 %v4078
        %4164 = vmatprep.subr.bf16.mxu0 0
        %4165 = vmatpush1.bf16.msra.mxu0 %v4079
        %4166 = vmatprep.subr.bf16.mxu0 0
        %4167 = vmatpush1.bf16.msra.mxu0 %v4080
        %4168 = vmatprep.subr.bf16.mxu0 0
        %4169 = vmatpush1.bf16.msra.mxu0 %v4081
        %4170 = vmatprep.subr.bf16.mxu0 0
        %4171 = vmatpush1.bf16.msra.mxu0 %v4082
        %4172 = vmatprep.subr.bf16.mxu0 0
        %4173 = vmatpush1.bf16.msra.mxu0 %v4083
        %4174 = vmatprep.subr.bf16.mxu0 0
        %4175 = vmatpush1.bf16.msra.mxu0 %v4084
        %4176 = vmatprep.subr.bf16.mxu0 0
        %4177 = vmatpush1.bf16.msra.mxu0 %v4085
        %4178 = vmatprep.subr.bf16.mxu0 0
        %4179 = vmatpush1.bf16.msra.mxu0 %v4086
        %4180 = vmatprep.subr.bf16.mxu0 0
        %4181 = vmatpush1.bf16.msra.mxu0 %v4087
        %4182 = vmatprep.subr.bf16.mxu0 0
        %4183 = vmatpush1.bf16.msra.mxu0 %v4088
        %4184 = vmatprep.subr.bf16.mxu0 0
        %4185 = vmatpush1.bf16.msra.mxu0 %v4089
        %4186 = vmatprep.subr.bf16.mxu0 0
        %4187 = vmatpush1.bf16.msra.mxu0 %v4090
        %4188 = vmatprep.subr.bf16.mxu0 0
        %4189 = vmatpush1.bf16.msra.mxu0 %v4091
        %4190 = vmatprep.subr.bf16.mxu0 0
        %4191 = vmatpush1.bf16.msra.mxu0 %v4092
        %4192 = vmatprep.subr.bf16.mxu0 0
        %4193 = vmatpush1.bf16.msra.mxu0 %v4093
        %4194 = vmatprep.mubr.bf16.mxu0 %v3812
        %4195 = vmatmul.mubr.bf16.gmra.mrb[0].mxu0 %v3796
        %v4196 = vpop.f32.mrb[0].mxu0
        %v4197 = vadd.f32 %v3932, %v4196
        %v4198 = vpop.f32.mrb[0].mxu0
        %v4199 = vpop.f32.mrb[0].mxu0
        %v4200 = vadd.f32 %v3932, %v4199
        %v4201 = vpop.f32.mrb[0].mxu0
        %4202 = vmatprep.mubr.bf16.mxu0 %v3816
        %4203 = vmatmul.mubr.bf16.gmra.mrb[0].mxu0 %v3800
        %v4204 = vpop.f32.mrb[0].mxu0
        %v4205 = vadd.f32 %v3932, %v4204
        %v4206 = vpop.f32.mrb[0].mxu0
        %v4207 = vpop.f32.mrb[0].mxu0
        %v4208 = vadd.f32 %v3932, %v4207
        %v4209 = vpop.f32.mrb[0].mxu0
        %4210 = vmatprep.mubr.bf16.mxu0 %v3820
        %4211 = vmatmul.mubr.bf16.gmra.mrb[0].mxu0 %v3804
        %v4212 = vpop.f32.mrb[0].mxu0
        %v4213 = vadd.f32 %v3932, %v4212
        %v4214 = vpop.f32.mrb[0].mxu0
        %v4215 = vpop.f32.mrb[0].mxu0
        %v4216 = vadd.f32 %v3932, %v4215
        %v4217 = vpop.f32.mrb[0].mxu0
        %4218 = vmatprep.mubr.bf16.mxu0 %v3824
        %4219 = vmatmul.mubr.bf16.gmra.mrb[0].mxu0 %v3808
        %v4220 = vpop.f32.mrb[0].mxu0
        %v4221 = vadd.f32 %v3932, %v4220
        %v4222 = vpop.f32.mrb[0].mxu0
        %v4223 = vpop.f32.mrb[0].mxu0
        %v4224 = vadd.f32 %v3932, %v4223
        %v4225 = vpop.f32.mrb[0].mxu0
        %4226 = vdwg.mxu0
        %4227 = vmatprep.subr.bf16.mxu0 0
        %4228 = vmatpush1.bf16.msra.mxu0 %v4094
        %4229 = vmatprep.subr.bf16.mxu0 0
        %4230 = vmatpush1.bf16.msra.mxu0 %v4095
        %4231 = vmatprep.subr.bf16.mxu0 0
        %4232 = vmatpush1.bf16.msra.mxu0 %v4096
        %4233 = vmatprep.subr.bf16.mxu0 0
        %4234 = vmatpush1.bf16.msra.mxu0 %v4097
        %4235 = vmatprep.subr.bf16.mxu0 0
        %4236 = vmatpush1.bf16.msra.mxu0 %v4098
        %4237 = vmatprep.subr.bf16.mxu0 0
        %4238 = vmatpush1.bf16.msra.mxu0 %v4099
        %4239 = vmatprep.subr.bf16.mxu0 0
        %4240 = vmatpush1.bf16.msra.mxu0 %v4100
        %4241 = vmatprep.subr.bf16.mxu0 0
        %4242 = vmatpush1.bf16.msra.mxu0 %v4101
        %4243 = vmatprep.subr.bf16.mxu0 0
        %4244 = vmatpush1.bf16.msra.mxu0 %v4102
        %4245 = vmatprep.subr.bf16.mxu0 0
        %4246 = vmatpush1.bf16.msra.mxu0 %v4103
        %4247 = vmatprep.subr.bf16.mxu0 0
        %4248 = vmatpush1.bf16.msra.mxu0 %v4104
        %4249 = vmatprep.subr.bf16.mxu0 0
        %4250 = vmatpush1.bf16.msra.mxu0 %v4105
        %4251 = vmatprep.subr.bf16.mxu0 0
        %4252 = vmatpush1.bf16.msra.mxu0 %v4106
        %4253 = vmatprep.subr.bf16.mxu0 0
        %4254 = vmatpush1.bf16.msra.mxu0 %v4107
        %4255 = vmatprep.subr.bf16.mxu0 0
        %4256 = vmatpush1.bf16.msra.mxu0 %v4108
        %4257 = vmatprep.subr.bf16.mxu0 0
        %4258 = vmatpush1.bf16.msra.mxu0 %v4109
        %4259 = vmatprep.mubr.bf16.mxu0 %v3843
        %4260 = vmatmul.mubr.bf16.gmra.mrb[0].mxu0 %v3828
        %v4261 = vpop.f32.mrb[0].mxu0
        %v4262 = vadd.f32 %v4197, %v4261
        %v4263 = vpop.f32.mrb[0].mxu0
        %v4264 = vpop.f32.mrb[0].mxu0
        %v4265 = vadd.f32 %v4200, %v4264
        %v4266 = vpop.f32.mrb[0].mxu0
        %4267 = vmatprep.mubr.bf16.mxu0 %v3846
        %4268 = vmatmul.mubr.bf16.gmra.mrb[0].mxu0 %v3832
        %v4269 = vpop.f32.mrb[0].mxu0
        %v4270 = vadd.f32 %v4205, %v4269
        %v4271 = vpop.f32.mrb[0].mxu0
        %v4272 = vpop.f32.mrb[0].mxu0
        %v4273 = vadd.f32 %v4208, %v4272
        %v4274 = vpop.f32.mrb[0].mxu0
        %4275 = vmatprep.mubr.bf16.mxu0 %v3849
        %4276 = vmatmul.mubr.bf16.gmra.mrb[0].mxu0 %v3836
        %v4277 = vpop.f32.mrb[0].mxu0
        %v4278 = vadd.f32 %v4213, %v4277
        %v4279 = vpop.f32.mrb[0].mxu0
        %v4280 = vpop.f32.mrb[0].mxu0
        %v4281 = vadd.f32 %v4216, %v4280
        %v4282 = vpop.f32.mrb[0].mxu0
        %4283 = vmatprep.mubr.bf16.mxu0 %v3853
        %4284 = vmatmul.mubr.bf16.gmra.mrb[0].mxu0 %v3840
        %v4285 = vpop.f32.mrb[0].mxu0
        %v4286 = vadd.f32 %v4221, %v4285
        %v4287 = vpop.f32.mrb[0].mxu0
        %v4288 = vpop.f32.mrb[0].mxu0
        %v4289 = vadd.f32 %v4224, %v4288
        %v4290 = vpop.f32.mrb[0].mxu0
        %4291 = vdwg.mxu0
        %4292 = vmatprep.subr.bf16.mxu0 0
        %4293 = vmatpush1.bf16.msra.mxu0 %v4110
        %4294 = vmatprep.subr.bf16.mxu0 0
        %4295 = vmatpush1.bf16.msra.mxu0 %v4111
        %4296 = vmatprep.subr.bf16.mxu0 0
        %4297 = vmatpush1.bf16.msra.mxu0 %v4112
        %4298 = vmatprep.subr.bf16.mxu0 0
        %4299 = vmatpush1.bf16.msra.mxu0 %v4113
        %4300 = vmatprep.subr.bf16.mxu0 0
        %4301 = vmatpush1.bf16.msra.mxu0 0
        %4302 = vmatprep.subr.bf16.mxu0 0
        %4303 = vmatpush1.bf16.msra.mxu0 0
        %4304 = vmatprep.subr.bf16.mxu0 0
        %4305 = vmatpush1.bf16.msra.mxu0 0
        %4306 = vmatprep.subr.bf16.mxu0 0
        %4307 = vmatpush1.bf16.msra.mxu0 0
        %4308 = vmatprep.subr.bf16.mxu0 0
        %4309 = vmatpush1.bf16.msra.mxu0 0
        %4310 = vmatprep.subr.bf16.mxu0 0
        %4311 = vmatpush1.bf16.msra.mxu0 0
        %4312 = vmatprep.subr.bf16.mxu0 0
        %4313 = vmatpush1.bf16.msra.mxu0 0
        %4314 = vmatprep.subr.bf16.mxu0 0
        %4315 = vmatpush1.bf16.msra.mxu0 0
        %4316 = vmatprep.subr.bf16.mxu0 0
        %4317 = vmatpush1.bf16.msra.mxu0 0
        %4318 = vmatprep.subr.bf16.mxu0 0
        %4319 = vmatpush1.bf16.msra.mxu0 0
        %4320 = vmatprep.subr.bf16.mxu0 0
        %4321 = vmatpush1.bf16.msra.mxu0 0
        %4322 = vmatprep.subr.bf16.mxu0 0
        %4323 = vmatpush1.bf16.msra.mxu0 0
        %4324 = vmatprep.mubr.bf16.mxu0 0
        %4325 = vmatmul.mubr.bf16.gmra.mrb[0].mxu0 %v4151
        %v4326 = vpop.f32.mrb[0].mxu0
        %v4327 = vadd.f32 %v4262, %v4326
        %v4328 = vpop.f32.mrb[0].mxu0
        %v4329 = vpop.f32.mrb[0].mxu0
        %v4330 = vadd.f32 %v4265, %v4329
        %v4331 = vpop.f32.mrb[0].mxu0
        %4332 = vmatprep.mubr.bf16.mxu0 0
        %4333 = vmatmul.mubr.bf16.gmra.mrb[0].mxu0 %v4154
        %v4334 = vpop.f32.mrb[0].mxu0
        %v4335 = vadd.f32 %v4270, %v4334
        %v4336 = vpop.f32.mrb[0].mxu0
        %v4337 = vpop.f32.mrb[0].mxu0
        %v4338 = vadd.f32 %v4273, %v4337
        %v4339 = vpop.f32.mrb[0].mxu0
        %4340 = vmatprep.mubr.bf16.mxu0 0
        %4341 = vmatmul.mubr.bf16.gmra.mrb[0].mxu0 %v4157
        %v4342 = vpop.f32.mrb[0].mxu0
        %v4343 = vadd.f32 %v4278, %v4342
        %v4344 = vpop.f32.mrb[0].mxu0
        %v4345 = vpop.f32.mrb[0].mxu0
        %v4346 = vadd.f32 %v4281, %v4345
        %v4347 = vpop.f32.mrb[0].mxu0
        %4348 = vmatprep.mubr.bf16.mxu0 0
        %4349 = vmatmul.mubr.bf16.gmra.mrb[0].mxu0 %v4160
        %v4350 = vpop.f32.mrb[0].mxu0
        %v4351 = vadd.f32 %v4286, %v4350
        %v4352 = vpop.f32.mrb[0].mxu0
        %v4353 = vpop.f32.mrb[0].mxu0
        %v4354 = vadd.f32 %v4289, %v4353
        %v4355 = vpop.f32.mrb[0].mxu0
        %4356 = vdwg.mxu0
        %v4357 = vmax.f32 %v4327, 0.0
        %v4358 = vmax.f32 %v4330, 0.0
        %v4359 = vmax.f32 %v4335, 0.0
        %v4360 = vmax.f32 %v4338, 0.0
        %v4361 = vmax.f32 %v4343, 0.0
        %v4362 = vmax.f32 %v4346, 0.0
        %v4363 = vmax.f32 %v4351, 0.0
        %v4364 = vmax.f32 %v4354, 0.0
        %v4365 = vpack.c.bf16 %v4358, %v4357
        %v4366 = vpack.c.bf16 %v4360, %v4359
        %v4367 = vpack.c.bf16 %v4362, %v4361
        %v4368 = vpack.c.bf16 %v4364, %v4363
        %v4369 = vld [vmem:[%s19] sm:$0xff]
        %v4370 = vld [vmem:[%s19 + $0x8] sm:$0xff]
        %v4371 = vld [vmem:[%s19 + $0x10] sm:$0xff]
        %v4372 = vld [vmem:[%s19 + $0x18] sm:$0xff]
        %v4373 = vld [vmem:[%s19 + $0x20] sm:$0xff]
        %v4374 = vld [vmem:[%s19 + $0x28] sm:$0xff]
        %v4375 = vld [vmem:[%s19 + $0x30] sm:$0xff]
        %v4376 = vld [vmem:[%s19 + $0x38] sm:$0xff]
        %v4377 = vld [vmem:[%s20] sm:$0x3]
        %v4379 = vlaneseq
        %v4380 = vshrl.u32 %v4379, 7
        %v4381 = vsub.s32 0, %v4380
        %v4382 = vrot.slane %v4377, %v4381
        %v4383 = vlaneseq
        %v4384 = vshrl.u32 %v4383, 7
        %v4385 = vsub.s32 1, %v4384
        %v4386 = vrot.slane %v4377, %v4385
        %v4397 = vunpack.c.l.b16 %v4369
        %v4398 = vunpack.c.h.b16 %v4369
        %v4399 = vunpack.c.l.b16 %v4370
        %v4400 = vunpack.c.h.b16 %v4370
        %v4401 = vunpack.c.l.b16 %v4371
        %v4402 = vunpack.c.h.b16 %v4371
        %v4403 = vunpack.c.l.b16 %v4372
        %v4404 = vunpack.c.h.b16 %v4372
        %v4405 = vunpack.c.l.b16 %v4373
        %v4406 = vunpack.c.h.b16 %v4373
        %v4407 = vunpack.c.l.b16 %v4374
        %v4408 = vunpack.c.h.b16 %v4374
        %v4409 = vunpack.c.l.b16 %v4375
        %v4410 = vunpack.c.h.b16 %v4375
        %v4411 = vunpack.c.l.b16 %v4376
        %v4412 = vunpack.c.h.b16 %v4376
        %v4413 = vpack.c.b16 %v4399, %v4397
        %v4414 = vpack.c.b16 %v4400, %v4398
        %v4415 = vpack.c.b16 %v4403, %v4401
        %v4416 = vpack.c.b16 %v4404, %v4402
        %v4417 = vpack.c.b16 %v4407, %v4405
        %v4418 = vpack.c.b16 %v4408, %v4406
        %v4419 = vpack.c.b16 %v4411, %v4409
        %v4420 = vpack.c.b16 %v4412, %v4410
        %v4430 = vsel %vm846, %v4365, 0
        %v4433 = vsel %vm846, %v4366, 0
        %v4436 = vsel %vm846, %v4367, 0
        %v4439 = vsel %vm846, %v4368, 0
        %4441 = vmatprep.subr.bf16.mxu0 %v4414
        %4442 = vmatpush1.bf16.msra.mxu0 %v4413
        %4443 = vmatprep.subr.bf16.mxu0 %v4416
        %4444 = vmatpush1.bf16.msra.mxu0 %v4415
        %4445 = vmatprep.subr.bf16.mxu0 %v4418
        %4446 = vmatpush1.bf16.msra.mxu0 %v4417
        %4447 = vmatprep.subr.bf16.mxu0 %v4420
        %4448 = vmatpush1.bf16.msra.mxu0 %v4419
        %4449 = vmatprep.subr.bf16.mxu0 0
        %4450 = vmatpush1.bf16.msra.mxu0 0
        %4451 = vmatprep.subr.bf16.mxu0 0
        %4452 = vmatpush1.bf16.msra.mxu0 0
        %4453 = vmatprep.subr.bf16.mxu0 0
        %4454 = vmatpush1.bf16.msra.mxu0 0
        %4455 = vmatprep.subr.bf16.mxu0 0
        %4456 = vmatpush1.bf16.msra.mxu0 0
        %4457 = vmatprep.subr.bf16.mxu0 0
        %4458 = vmatpush1.bf16.msra.mxu0 0
        %4459 = vmatprep.subr.bf16.mxu0 0
        %4460 = vmatpush1.bf16.msra.mxu0 0
        %4461 = vmatprep.subr.bf16.mxu0 0
        %4462 = vmatpush1.bf16.msra.mxu0 0
        %4463 = vmatprep.subr.bf16.mxu0 0
        %4464 = vmatpush1.bf16.msra.mxu0 0
        %4465 = vmatprep.subr.bf16.mxu0 0
        %4466 = vmatpush1.bf16.msra.mxu0 0
        %4467 = vmatprep.subr.bf16.mxu0 0
        %4468 = vmatpush1.bf16.msra.mxu0 0
        %4469 = vmatprep.subr.bf16.mxu0 0
        %4470 = vmatpush1.bf16.msra.mxu0 0
        %4471 = vmatprep.subr.bf16.mxu0 0
        %4472 = vmatpush1.bf16.msra.mxu0 0
        %4473 = vmatprep.mubr.bf16.mxu0 0
        %4474 = vmatmul.mubr.bf16.gmra.mrb[0].mxu0 %v4430
        %v4475 = vpop.f32.mrb[0].mxu0
        %v4476 = vadd.f32 %v4382, %v4475
        %v4477 = vpop.f32.mrb[0].mxu0
        %v4478 = vadd.f32 %v4386, %v4477
        %v4479 = vpop.f32.mrb[0].mxu0
        %v4480 = vadd.f32 %v4382, %v4479
        %v4481 = vpop.f32.mrb[0].mxu0
        %v4482 = vadd.f32 %v4386, %v4481
        %4483 = vmatprep.mubr.bf16.mxu0 0
        %4484 = vmatmul.mubr.bf16.gmra.mrb[0].mxu0 %v4433
        %v4485 = vpop.f32.mrb[0].mxu0
        %v4486 = vadd.f32 %v4382, %v4485
        %v4487 = vpop.f32.mrb[0].mxu0
        %v4488 = vadd.f32 %v4386, %v4487
        %v4489 = vpop.f32.mrb[0].mxu0
        %v4490 = vadd.f32 %v4382, %v4489
        %v4491 = vpop.f32.mrb[0].mxu0
        %v4492 = vadd.f32 %v4386, %v4491
        %4493 = vmatprep.mubr.bf16.mxu0 0
        %4494 = vmatmul.mubr.bf16.gmra.mrb[0].mxu0 %v4436
        %v4495 = vpop.f32.mrb[0].mxu0
        %v4496 = vadd.f32 %v4382, %v4495
        %v4497 = vpop.f32.mrb[0].mxu0
        %v4498 = vadd.f32 %v4386, %v4497
        %v4499 = vpop.f32.mrb[0].mxu0
        %v4500 = vadd.f32 %v4382, %v4499
        %v4501 = vpop.f32.mrb[0].mxu0
        %v4502 = vadd.f32 %v4386, %v4501
        %4503 = vmatprep.mubr.bf16.mxu0 0
        %4504 = vmatmul.mubr.bf16.gmra.mrb[0].mxu0 %v4439
        %v4505 = vpop.f32.mrb[0].mxu0
        %v4506 = vadd.f32 %v4382, %v4505
        %v4507 = vpop.f32.mrb[0].mxu0
        %v4508 = vadd.f32 %v4386, %v4507
        %v4509 = vpop.f32.mrb[0].mxu0
        %v4510 = vadd.f32 %v4382, %v4509
        %v4511 = vpop.f32.mrb[0].mxu0
        %v4512 = vadd.f32 %v4386, %v4511
        %4513 = vdwg.mxu0
        %v4514 = vunpack.c.l.bf16 %v3366
        %v4515 = vunpack.c.l.bf16 %v3367
        %v4516 = vunpack.c.h.bf16 %v3366
        %v4517 = vunpack.c.h.bf16 %v3367
        %v4518 = vunpack.c.l.bf16 %v3368
        %v4519 = vunpack.c.l.bf16 %v3369
        %v4520 = vunpack.c.h.bf16 %v3368
        %v4521 = vunpack.c.h.bf16 %v3369
        %v4522 = vunpack.c.l.bf16 %v3370
        %v4523 = vunpack.c.l.bf16 %v3371
        %v4524 = vunpack.c.h.bf16 %v3370
        %v4525 = vunpack.c.h.bf16 %v3371
        %v4526 = vunpack.c.l.bf16 %v3372
        %v4527 = vunpack.c.l.bf16 %v3373
        %v4528 = vunpack.c.h.bf16 %v3372
        %v4529 = vunpack.c.h.bf16 %v3373
        %v4530 = vadd.f32 %v4476, %v4514
        %v4531 = vadd.f32 %v4478, %v4515
        %v4532 = vadd.f32 %v4480, %v4516
        %v4533 = vadd.f32 %v4482, %v4517
        %v4534 = vadd.f32 %v4486, %v4518
        %v4535 = vadd.f32 %v4488, %v4519
        %v4536 = vadd.f32 %v4490, %v4520
        %v4537 = vadd.f32 %v4492, %v4521
        %v4538 = vadd.f32 %v4496, %v4522
        %v4539 = vadd.f32 %v4498, %v4523
        %v4540 = vadd.f32 %v4500, %v4524
        %v4541 = vadd.f32 %v4502, %v4525
        %v4542 = vadd.f32 %v4506, %v4526
        %v4543 = vadd.f32 %v4508, %v4527
        %v4544 = vadd.f32 %v4510, %v4528
        %v4545 = vadd.f32 %v4512, %v4529
        %v4546 = vmax.f32 %v4530, 0.0
        %v4547 = vmax.f32 %v4531, 0.0
        %v4548 = vmax.f32 %v4532, 0.0
        %v4549 = vmax.f32 %v4533, 0.0
        %v4550 = vmax.f32 %v4534, 0.0
        %v4551 = vmax.f32 %v4535, 0.0
        %v4552 = vmax.f32 %v4536, 0.0
        %v4553 = vmax.f32 %v4537, 0.0
        %v4554 = vmax.f32 %v4538, 0.0
        %v4555 = vmax.f32 %v4539, 0.0
        %v4556 = vmax.f32 %v4540, 0.0
        %v4557 = vmax.f32 %v4541, 0.0
        %v4558 = vmax.f32 %v4542, 0.0
        %v4559 = vmax.f32 %v4543, 0.0
        %v4560 = vmax.f32 %v4544, 0.0
        %v4561 = vmax.f32 %v4545, 0.0
        %4562 = vst [vmem:[%s649] sm:$0xff] %v4546
        %4563 = vst [vmem:[%s649 + $0x8] sm:$0xff] %v4547
        %4564 = vst [vmem:[%s649 + $0x10] sm:$0xff] %v4548
        %4565 = vst [vmem:[%s649 + $0x18] sm:$0xff] %v4549
        %4566 = vst [vmem:[%s649 + $0x20] sm:$0xff] %v4550
        %4567 = vst [vmem:[%s649 + $0x28] sm:$0xff] %v4551
        %4568 = vst [vmem:[%s649 + $0x30] sm:$0xff] %v4552
        %4569 = vst [vmem:[%s649 + $0x38] sm:$0xff] %v4553
        %4570 = vst [vmem:[%s649 + $0x40] sm:$0xff] %v4554
        %4571 = vst [vmem:[%s649 + $0x48] sm:$0xff] %v4555
        %4572 = vst [vmem:[%s649 + $0x50] sm:$0xff] %v4556
        %4573 = vst [vmem:[%s649 + $0x58] sm:$0xff] %v4557
        %4574 = vst [vmem:[%s649 + $0x60] sm:$0xff] %v4558
        %4575 = vst [vmem:[%s649 + $0x68] sm:$0xff] %v4559
        %4576 = vst [vmem:[%s649 + $0x70] sm:$0xff] %v4560
        %4577 = vst [vmem:[%s649 + $0x78] sm:$0xff] %v4561
        %s4578 = sand.u32 %s489, 1
        %s4579 = scalar_lea.sflag [#allocation3], %s4578
        %s4580 = sand.u32 %s489, 1
        %s4581 = smul.addr %s4580, 128
        %s4582 = scalar_lea.vmem [#allocation2], %s4581
        // Predicated region
        $region105: #{head_forward.3} parent=103 // pred_check
          %p4583 = pneg %p499
        $region106: #{head_forward.3} parent=103 // pred_check_branch
          %4585 = sbr.rel (%p4583) target = $region108
        $region107: #{head_forward.3} parent=103 // pred_region
          %s4587 = ssub.s32 2048, 2048
          %4588 = vsyncadd %s4579, %s4587
          %s4589 = smul.addr %s35, 16
          %s4590 = smul.addr %s4589, 128
          %s4591 = scalar_lea.hbm %s21, %s4590
          %s4592 = sshll.u32 %s4582, 4
          %s4593 = int_to_ptr.vmem [resolvable:$true] %s4592
          %4598 = dma.vmem_to_hbm [thread:$0]  %s4593, 2048, %s4591, %s4579, 256, 256, 16
        $region108: #{head_forward.3} parent=103 // pred_fallthru
          _
      $region104: #{head_forward.3} parent=5 // pred_fallthru
        _
      %p4599 = scmp.le.s32.totalorder 2, %s30
      // Predicated region
      $region109: #{head_forward.3} parent=5 // pred_check
        %p4600 = pneg %p4599
      $region110: #{head_forward.3} parent=5 // pred_check_branch
        %4602 = sbr.rel (%p4600) target = $region112
      $region111: #{head_forward.3} parent=5 // pred_region
        %s4603 = ssub.s32 %s30, 2
        // Predicated region
        $region113: #{head_forward.3} parent=111 // pred_check
          %p4604 = pneg %p505
        $region114: #{head_forward.3} parent=111 // pred_check_branch
          %4606 = sbr.rel (%p4604) target = $region116
        $region115: #{head_forward.3} parent=111 // pred_region
          %s4607 = sand.u32 %s490, 1
          %s4608 = scalar_lea.sflag [#allocation3], %s4607
          %s4609 = sand.u32 %s490, 1
          %s4610 = smul.addr %s4609, 128
          %s4611 = scalar_lea.vmem [#allocation2], %s4610
          %4612 = dma.done %s4608, 2048
        $region116: #{head_forward.3} parent=111 // pred_fallthru
          _
      $region112: #{head_forward.3} parent=5 // pred_fallthru
        _
    $region6: #{head_forward.3} parent=1 // loop_footer
      %s34 = sadd.s32 1, %s30
    $region7: #{head_forward.3} parent=1 // loop_footer_branch
      %29 = sbr.rel target = $region3
    $region8: #{head_forward.3} parent=1 // loop_exit
      _
    %4613 = vsyncpa [#allocation3], 1
    %s4614 = scalar_lea.sflag [#allocation3], 1
    %4615 = vsyncpa %s4614, 1

</llo_original>
